<compile_context>
chip_gen: v6e
topology: v6e:2x2x1
jax: 0.10.0
libtpu: 0.0.40
codegen_flags: <defaults>
</compile_context>

<pallas_src>
import functools

import jax
import jax.numpy as jnp
from jax.experimental import pallas as pl
from jax.experimental.pallas import tpu as pltpu

EPS = 1e-7  # matches the reference RMSNorm default eps=1e-07

# ---------------------------------------------------------------------------
# tiny "llama2" config (scaled down from llama2_7b)
# ---------------------------------------------------------------------------
CONFIG = dict(
    vocab_size=256,
    emb_dim=64,
    hidden_dim=128,
    n_heads=4,
    n_layers=2,
    context_length=16,
)

BATCH = 2
SEQ = 8


# ---------------------------------------------------------------------------
# fused Pallas kernel
# ---------------------------------------------------------------------------
def _rmsnorm(x, gamma):
    # x: (S, D) f32, gamma: (1, D) f32  -- RMS = x * rsqrt(eps + mean(x^2))
    ms = jnp.mean(x * x, axis=-1, keepdims=True)
    return (x * jax.lax.rsqrt(ms + EPS)) * gamma


def llama2_fused_kernel(tok_ref, emb_ref, wqkv_ref, wo_ref, bo_ref, g1_ref,
                        g2_ref, w12_ref, w3_ref, gf_ref, wh_ref, cos_ref,
                        sin_ref, o_ref, *, n_layers, n_heads, hidden_dim):
    """Full Llama2 forward for ONE batch element.

    tok_ref:  (S, 1)        int32
    emb_ref:  (V, D)        f32
    wqkv_ref: (L, D, 5D)    bf16   [Wq*s | Wq*s@R | Wk | Wk@R | Wv]
    wo_ref:   (L, D, D)     bf16
    bo_ref:   (L, 1, D)     f32
    g1/g2:    (L, 1, D)     f32
    w12_ref:  (L, D, 2H)    bf16   fc1|fc2 fused
    w3_ref:   (L, H, D)     bf16
    gf_ref:   (1, D)        f32
    wh_ref:   (D, V)        bf16
    cos/sin:  (S, D)        f32    head-tiled RoPE tables
    o_ref:    (S, V)        f32
    """
    f32 = jnp.float32
    bf16 = jnp.bfloat16

    S = tok_ref.shape[0]
    V, D = emb_ref.shape
    hd = D // n_heads
    H = hidden_dim

    # ---- fused embedding gather: one-hot (S,V) @ (V,D) on the MXU ----
    onehot = (tok_ref[...] ==
              jax.lax.broadcasted_iota(jnp.int32, (S, V), 1)).astype(f32)
    x = jnp.dot(onehot, emb_ref[...], preferred_element_type=f32)    # (S, D)

    # ---- hoisted constants (shared by every layer) ----
    cos = cos_ref[...]                                               # (S, D)
    sin = sin_ref[...]
    row = jax.lax.broadcasted_iota(jnp.int32, (S, S), 0)
    col = jax.lax.broadcasted_iota(jnp.int32, (S, S), 1)
    mask_bias = jnp.where(row >= col, 0.0, -1e30).astype(f32)        # (S, S)

    for l in range(n_layers):                    # static unroll (n_layers=2)
        # ---------------- attention sub-block ----------------
        h = _rmsnorm(x, g1_ref[l]).astype(bf16)                      # (S, D)
        qkv = jnp.dot(h, wqkv_ref[l], preferred_element_type=f32)    # (S, 5D)
        # RoPE + scale pre-folded into the weight columns:
        q = qkv[:, 0:D] * cos + qkv[:, D:2 * D] * sin                # (S, D)
        k = qkv[:, 2 * D:3 * D] * cos + qkv[:, 3 * D:4 * D] * sin    # (S, D)
        v = qkv[:, 4 * D:5 * D]                                      # (S, D)
        qb = q.astype(bf16)
        kb = k.astype(bf16)
        vb = v.astype(bf16)

        head_outs = []
        for hh in range(n_heads):                # static unroll (n_heads=4)
            s0 = hh * hd
            qh = qb[:, s0:s0 + hd]                                   # (S, hd)
            kh = kb[:, s0:s0 + hd]
            vh = vb[:, s0:s0 + hd]
            sc = jax.lax.dot_general(qh, kh, (((1,), (1,)), ((), ())),
                                     preferred_element_type=f32)     # (S, S)
            sc = sc + mask_bias
            sc = sc - jnp.max(sc, axis=-1, keepdims=True)
            e = jnp.exp(sc)
            p = e * pl.reciprocal(jnp.sum(e, axis=-1, keepdims=True),
                                  approx=True)
            head_outs.append(jnp.dot(p.astype(bf16), vh,
                                     preferred_element_type=f32))    # (S, hd)
        att = jnp.concatenate(head_outs, axis=-1).astype(bf16)       # (S, D)
        # single lane-dense contraction: head reduction happens in one matmul
        x = x + jnp.dot(att, wo_ref[l], preferred_element_type=f32) + bo_ref[l]

        # ---------------- SwiGLU feed-forward ----------------
        hf = _rmsnorm(x, g2_ref[l]).astype(bf16)
        x12 = jnp.dot(hf, w12_ref[l], preferred_element_type=f32)    # (S, 2H)
        x1 = x12[:, :H]                                              # lane 0
        x2 = x12[:, H:]                                              # lane 128
        gated = (x1 * jax.nn.sigmoid(x1)) * x2                       # SiLU(x1)*x2
        x = x + jnp.dot(gated.astype(bf16), w3_ref[l],
                        preferred_element_type=f32)

    # ---------------- final RMSNorm + vocab head ----------------
    hf = _rmsnorm(x, gf_ref[...]).astype(bf16)
    o_ref[...] = jnp.dot(hf, wh_ref[...], preferred_element_type=f32)


# ---------------------------------------------------------------------------
# wrapper
# ---------------------------------------------------------------------------
def _replicated(shape):
    zeros = (0,) * len(shape)
    return pl.BlockSpec(shape, lambda b: zeros)


def llama2_forward(tokens, packed, cfg):
    B, S = tokens.shape
    D = cfg["emb_dim"]
    H = cfg["hidden_dim"]
    V = cfg["vocab_size"]
    L = cfg["n_layers"]
    nh = cfg["n_heads"]

    tokens3 = tokens.reshape(B, S, 1).astype(jnp.int32)   # metadata-only reshape

    kernel = functools.partial(llama2_fused_kernel, n_layers=L,
                               n_heads=nh, hidden_dim=H)

    grid_spec = pltpu.PrefetchScalarGridSpec(
        num_scalar_prefetch=0,
        grid=(B,),                               # one batch element per core on v7x
        in_specs=[
            pl.BlockSpec((None, S, 1), lambda b: (b, 0, 0)),   # tokens (squeezed)
            _replicated((V, D)),                               # embedding table
            _replicated((L, D, 5 * D)),                        # fused qkv(+rope)
            _replicated((L, D, D)),                            # wo
            _replicated((L, 1, D)),                            # bo
            _replicated((L, 1, D)),                            # g1
            _replicated((L, 1, D)),                            # g2
            _replicated((L, D, 2 * H)),                        # w12
            _replicated((L, H, D)),                            # w3
            _replicated((1, D)),                               # g_final
            _replicated((D, V)),                               # w_head
            pl.BlockSpec((S, D), lambda b: (0, 0)),            # cos (first S rows)
            pl.BlockSpec((S, D), lambda b: (0, 0)),            # sin
        ],
        out_specs=pl.BlockSpec((None, S, V), lambda b: (b, 0, 0)),
    )
    return pl.pallas_call(
        kernel,
        grid_spec=grid_spec,
        out_shape=jax.ShapeDtypeStruct((B, S, V), jnp.float32),
        compiler_params=pltpu.CompilerParams(
            dimension_semantics=("parallel",),
            vmem_limit_bytes=32 * 1024 * 1024),
    )(tokens3, packed["embedding"], packed["wqkv"], packed["wo"], packed["bo"],
      packed["g1"], packed["g2"], packed["w12"], packed["w3"],
      packed["g_final"], packed["w_head"], packed["cos_t"], packed["sin_t"])


# ---------------------------------------------------------------------------
# deterministic parameter init + kernel-friendly packing
# ---------------------------------------------------------------------------
def get_rope_params(cfg):
    hd = cfg["emb_dim"] // cfg["n_heads"]
    inv_freq = 1.0 / (10000.0 ** (jnp.arange(0, hd, 2, dtype=jnp.float32) / hd))
    pos = jnp.arange(cfg["context_length"], dtype=jnp.float32)
    angles = pos[:, None] * inv_freq[None, :]            # (ctx, hd/2)
    angles = jnp.concatenate([angles, angles], axis=-1)  # (ctx, hd)
    return jnp.cos(angles), jnp.sin(angles)


def init_params(key, cfg):
    D, H, V = cfg["emb_dim"], cfg["hidden_dim"], cfg["vocab_size"]
    n_layers = cfg["n_layers"]
    keys = jax.random.split(key, 2 + n_layers)

    def rnd(k, shape):
        return jax.random.normal(k, shape, jnp.float32) * 0.02

    cos, sin = get_rope_params(cfg)
    layers = []
    for l in range(n_layers):
        lk = jax.random.split(keys[2 + l], 8)
        layers.append(dict(
            g1=jnp.ones((1, D), jnp.float32),
            wq=rnd(lk[0], (D, D)),
            wk=rnd(lk[1], (D, D)),
            wv=rnd(lk[2], (D, D)),
            wo=rnd(lk[3], (D, D)),
            bo=rnd(lk[4], (1, D)),
            g2=jnp.ones((1, D), jnp.float32),
            w1=rnd(lk[5], (D, H)),
            w2=rnd(lk[6], (D, H)),
            w3=rnd(lk[7], (H, D)),
        ))
    return dict(
        embedding=rnd(keys[0], (V, D)),
        layers=layers,
        g_final=jnp.ones((1, D), jnp.float32),
        w_head=rnd(keys[1], (D, V)),
        cos=cos,
        sin=sin,
    )


def _rotate_half_matrix(hd):
    """R such that t @ R == rotate_half(t) == concat([-t2, t1]) per head."""
    half = hd // 2
    r = jnp.zeros((hd, hd), jnp.float32)
    r = r.at[half:, :half].set(-jnp.eye(half, dtype=jnp.float32))
    r = r.at[:half, half:].set(jnp.eye(half, dtype=jnp.float32))
    return r


def pack_params(params, cfg):
    """Stack per-layer weights; fold attention scale + rotate-half RoPE into
    extra Q/K weight columns; fuse fc1|fc2; cast MXU weights to bf16."""
    D, H = cfg["emb_dim"], cfg["hidden_dim"]
    nh = cfg["n_heads"]
    hd = D // nh
    bf16 = jnp.bfloat16
    layers = params["layers"]

    scale = 1.0 / (hd ** 0.5)
    R = jnp.kron(jnp.eye(nh, dtype=jnp.float32), _rotate_half_matrix(hd))  # (D, D)

    def fused_qkv(lyr):
        wq = lyr["wq"] * scale                       # fold 1/sqrt(hd) (linear in q)
        wk = lyr["wk"]
        # columns: [Wq*s | Wq*s@R | Wk | Wk@R | Wv]  -> (D, 5D)
        return jnp.concatenate([wq, wq @ R, wk, wk @ R, lyr["wv"]], axis=1)

    cos_t = jnp.tile(params["cos"], (1, nh))         # (ctx, D) head-tiled
    sin_t = jnp.tile(params["sin"], (1, nh))

    return dict(
        embedding=params["embedding"],
        cos_t=cos_t,
        sin_t=sin_t,
        g_final=params["g_final"],
        w_head=params["w_head"].astype(bf16),
        wqkv=jnp.stack([fused_qkv(l) for l in layers]).astype(bf16),
        wo=jnp.stack([l["wo"] for l in layers]).astype(bf16),
        bo=jnp.stack([l["bo"] for l in layers]),
        g1=jnp.stack([l["g1"] for l in layers]),
        g2=jnp.stack([l["g2"] for l in layers]),
        w12=jnp.stack([jnp.concatenate([l["w1"], l["w2"]], axis=-1)
                       for l in layers]).astype(bf16),
        w3=jnp.stack([l["w3"] for l in layers]).astype(bf16),
    )


# ---------------------------------------------------------------------------
if __name__ == "__main__":
    key = jax.random.PRNGKey(0)
    pkey, tkey = jax.random.split(key)
    params = init_params(pkey, CONFIG)
    packed = pack_params(params, CONFIG)
    tokens = jax.random.randint(tkey, (BATCH, SEQ), 0, CONFIG["vocab_size"],
                                dtype=jnp.int32)

    logits = llama2_forward(tokens, packed, CONFIG)
    logits = jax.block_until_ready(logits)

    assert logits.shape == (BATCH, SEQ, CONFIG["vocab_size"])
    assert logits.dtype == jnp.float32
    assert bool(jnp.all(jnp.isfinite(logits)))
    print("KERNEL_OK")
</pallas_src>

<mosaic_0001>
module attributes {stable_mosaic.version = 11 : i64} {
  func.func @llama2_fused_kernel(%arg0: i32, %arg1: memref<1x8x1xi32, #tpu.memory_space<vmem>>, %arg2: memref<256x64xf32, #tpu.memory_space<vmem>>, %arg3: memref<2x64x320xbf16, #tpu.memory_space<vmem>>, %arg4: memref<2x64x64xbf16, #tpu.memory_space<vmem>>, %arg5: memref<2x1x64xf32, #tpu.memory_space<vmem>>, %arg6: memref<2x1x64xf32, #tpu.memory_space<vmem>>, %arg7: memref<2x1x64xf32, #tpu.memory_space<vmem>>, %arg8: memref<2x64x256xbf16, #tpu.memory_space<vmem>>, %arg9: memref<2x128x64xbf16, #tpu.memory_space<vmem>>, %arg10: memref<1x64xf32, #tpu.memory_space<vmem>>, %arg11: memref<64x256xbf16, #tpu.memory_space<vmem>>, %arg12: memref<8x64xf32, #tpu.memory_space<vmem>>, %arg13: memref<8x64xf32, #tpu.memory_space<vmem>>, %arg14: memref<1x8x256xf32, #tpu.memory_space<vmem>>) attributes {dimension_semantics = [#tpu.dimension_semantics<parallel>], iteration_bounds = array<i64: 2>, scalar_prefetch = 0 : i64, scratch_operands = 0 : i64, tpu.core_type = #tpu.core_type<tc>, window_params = [{transform_indices = @transform_0, window_bounds = array<i64: 1, 8, 1>}, {pipeline_mode = #tpu.pipeline_mode<synchronous>, transform_indices = @transform_1, window_bounds = array<i64: 256, 64>}, {pipeline_mode = #tpu.pipeline_mode<synchronous>, transform_indices = @transform_2, window_bounds = array<i64: 2, 64, 320>}, {pipeline_mode = #tpu.pipeline_mode<synchronous>, transform_indices = @transform_3, window_bounds = array<i64: 2, 64, 64>}, {pipeline_mode = #tpu.pipeline_mode<synchronous>, transform_indices = @transform_4, window_bounds = array<i64: 2, 1, 64>}, {pipeline_mode = #tpu.pipeline_mode<synchronous>, transform_indices = @transform_5, window_bounds = array<i64: 2, 1, 64>}, {pipeline_mode = #tpu.pipeline_mode<synchronous>, transform_indices = @transform_6, window_bounds = array<i64: 2, 1, 64>}, {pipeline_mode = #tpu.pipeline_mode<synchronous>, transform_indices = @transform_7, window_bounds = array<i64: 2, 64, 256>}, {pipeline_mode = #tpu.pipeline_mode<synchronous>, transform_indices = @transform_8, window_bounds = array<i64: 2, 128, 64>}, {pipeline_mode = #tpu.pipeline_mode<synchronous>, transform_indices = @transform_9, window_bounds = array<i64: 1, 64>}, {pipeline_mode = #tpu.pipeline_mode<synchronous>, transform_indices = @transform_10, window_bounds = array<i64: 64, 256>}, {transform_indices = @transform_11, window_bounds = array<i64: 8, 64>}, {transform_indices = @transform_12, window_bounds = array<i64: 8, 64>}, {transform_indices = @transform_13, window_bounds = array<i64: 1, 8, 256>}]} {
    %c0 = arith.constant 0 : index
    %c0_0 = arith.constant 0 : index
    %c0_1 = arith.constant 0 : index
    %0 = vector.load %arg1[%c0, %c0_0, %c0_1] : memref<1x8x1xi32, #tpu.memory_space<vmem>>, vector<1x8x1xi32>
    %1 = vector.shape_cast %0 : vector<1x8x1xi32> to vector<8x1xi32>
    %2 = tpu.iota {dimensions = array<i32: 1>} : vector<8x256xi32>
    %3 = vector.broadcast %1 : vector<8x1xi32> to vector<8x256xi32>
    %4 = arith.cmpi eq, %3, %2 : vector<8x256xi32>
    %5 = arith.extui %4 : vector<8x256xi1> to vector<8x256xi32>
    %6 = arith.sitofp %5 : vector<8x256xi32> to vector<8x256xf32>
    %c0_2 = arith.constant 0 : index
    %c0_3 = arith.constant 0 : index
    %7 = vector.load %arg2[%c0_2, %c0_3] : memref<256x64xf32, #tpu.memory_space<vmem>>, vector<256x64xf32>
    %cst = arith.constant dense<0.000000e+00> : vector<8x64xf32>
    %8 = tpu.matmul %6, %7, %cst {dimension_numbers = #tpu.dot_dimension_numbers<[1], [0], [0], [1], [0, 0, 1, 1], [], []>} : vector<8x256xf32>, vector<256x64xf32>, vector<8x64xf32> -> vector<8x64xf32>
    %c0_4 = arith.constant 0 : index
    %c0_5 = arith.constant 0 : index
    %9 = vector.load %arg12[%c0_4, %c0_5] : memref<8x64xf32, #tpu.memory_space<vmem>>, vector<8x64xf32>
    %c0_6 = arith.constant 0 : index
    %c0_7 = arith.constant 0 : index
    %10 = vector.load %arg13[%c0_6, %c0_7] : memref<8x64xf32, #tpu.memory_space<vmem>>, vector<8x64xf32>
    %11 = tpu.iota {dimensions = array<i32: 0>} : vector<8x8xi32>
    %12 = tpu.iota {dimensions = array<i32: 1>} : vector<8x8xi32>
    %13 = arith.cmpi sge, %11, %12 : vector<8x8xi32>
    %cst_8 = arith.constant 0.000000e+00 : f32
    %cst_9 = arith.constant -1.000000e+30 : f32
    %14 = vector.broadcast %cst_8 : f32 to vector<8x8xf32>
    %15 = vector.broadcast %cst_9 : f32 to vector<8x8xf32>
    %16 = arith.select %13, %14, %15 : vector<8x8xi1>, vector<8x8xf32>
    %c0_10 = arith.constant 0 : index
    %c0_11 = arith.constant 0 : index
    %c0_12 = arith.constant 0 : index
    %17 = vector.load %arg6[%c0_10, %c0_11, %c0_12] : memref<2x1x64xf32, #tpu.memory_space<vmem>>, vector<1x1x64xf32>
    %18 = vector.shape_cast %17 : vector<1x1x64xf32> to vector<1x64xf32>
    %19 = arith.mulf %8, %8 : vector<8x64xf32>
    %cst_13 = arith.constant dense<0.000000e+00> : vector<8xf32>
    %20 = vector.multi_reduction <add>, %19, %cst_13 [1] : vector<8x64xf32> to vector<8xf32>
    %21 = vector.shape_cast %20 : vector<8xf32> to vector<8x1xf32>
    %cst_14 = arith.constant 6.400000e+01 : f32
    %22 = vector.broadcast %cst_14 : f32 to vector<8x1xf32>
    %23 = arith.divf %21, %22 : vector<8x1xf32>
    %cst_15 = arith.constant 1.000000e-07 : f32
    %24 = vector.broadcast %cst_15 : f32 to vector<8x1xf32>
    %25 = arith.addf %23, %24 : vector<8x1xf32>
    %26 = math.rsqrt %25 : vector<8x1xf32>
    %27 = vector.broadcast %26 : vector<8x1xf32> to vector<8x64xf32>
    %28 = arith.mulf %8, %27 : vector<8x64xf32>
    %29 = vector.broadcast %18 : vector<1x64xf32> to vector<8x64xf32>
    %30 = arith.mulf %28, %29 : vector<8x64xf32>
    %31 = arith.truncf %30 : vector<8x64xf32> to vector<8x64xbf16>
    %c0_16 = arith.constant 0 : index
    %c0_17 = arith.constant 0 : index
    %c0_18 = arith.constant 0 : index
    %32 = vector.load %arg3[%c0_16, %c0_17, %c0_18] : memref<2x64x320xbf16, #tpu.memory_space<vmem>>, vector<1x64x320xbf16>
    %33 = vector.shape_cast %32 : vector<1x64x320xbf16> to vector<64x320xbf16>
    %cst_19 = arith.constant dense<0.000000e+00> : vector<8x320xf32>
    %34 = tpu.matmul %31, %33, %cst_19 {dimension_numbers = #tpu.dot_dimension_numbers<[1], [0], [0], [1], [0, 0, 1, 1], [], []>} : vector<8x64xbf16>, vector<64x320xbf16>, vector<8x320xf32> -> vector<8x320xf32>
    %35 = vector.extract_strided_slice %34 {offsets = [0, 0], sizes = [8, 64], strides = [1, 1]} : vector<8x320xf32> to vector<8x64xf32>
    %36 = arith.mulf %35, %9 : vector<8x64xf32>
    %37 = vector.extract_strided_slice %34 {offsets = [0, 64], sizes = [8, 64], strides = [1, 1]} : vector<8x320xf32> to vector<8x64xf32>
    %38 = arith.mulf %37, %10 : vector<8x64xf32>
    %39 = arith.addf %36, %38 : vector<8x64xf32>
    %40 = vector.extract_strided_slice %34 {offsets = [0, 128], sizes = [8, 64], strides = [1, 1]} : vector<8x320xf32> to vector<8x64xf32>
    %41 = arith.mulf %40, %9 : vector<8x64xf32>
    %42 = vector.extract_strided_slice %34 {offsets = [0, 192], sizes = [8, 64], strides = [1, 1]} : vector<8x320xf32> to vector<8x64xf32>
    %43 = arith.mulf %42, %10 : vector<8x64xf32>
    %44 = arith.addf %41, %43 : vector<8x64xf32>
    %45 = vector.extract_strided_slice %34 {offsets = [0, 256], sizes = [8, 64], strides = [1, 1]} : vector<8x320xf32> to vector<8x64xf32>
    %46 = arith.truncf %39 : vector<8x64xf32> to vector<8x64xbf16>
    %47 = arith.truncf %44 : vector<8x64xf32> to vector<8x64xbf16>
    %48 = arith.truncf %45 : vector<8x64xf32> to vector<8x64xbf16>
    %49 = vector.extract_strided_slice %46 {offsets = [0, 0], sizes = [8, 16], strides = [1, 1]} : vector<8x64xbf16> to vector<8x16xbf16>
    %50 = vector.extract_strided_slice %47 {offsets = [0, 0], sizes = [8, 16], strides = [1, 1]} : vector<8x64xbf16> to vector<8x16xbf16>
    %51 = vector.extract_strided_slice %48 {offsets = [0, 0], sizes = [8, 16], strides = [1, 1]} : vector<8x64xbf16> to vector<8x16xbf16>
    %cst_20 = arith.constant dense<0.000000e+00> : vector<8x8xf32>
    %52 = tpu.matmul %49, %50, %cst_20 {dimension_numbers = #tpu.dot_dimension_numbers<[1], [1], [0], [0], [0, 0, 1, 0], [], []>} : vector<8x16xbf16>, vector<8x16xbf16>, vector<8x8xf32> -> vector<8x8xf32>
    %53 = arith.addf %52, %16 : vector<8x8xf32>
    %cst_21 = arith.constant dense<0xFF800000> : vector<8xf32>
    %54 = vector.multi_reduction <maximumf>, %53, %cst_21 [1] : vector<8x8xf32> to vector<8xf32>
    %55 = vector.shape_cast %54 : vector<8xf32> to vector<8x1xf32>
    %56 = vector.broadcast %55 : vector<8x1xf32> to vector<8x8xf32>
    %57 = arith.subf %53, %56 : vector<8x8xf32>
    %58 = math.exp %57 : vector<8x8xf32>
    %cst_22 = arith.constant dense<0.000000e+00> : vector<8xf32>
    %59 = vector.multi_reduction <add>, %58, %cst_22 [1] : vector<8x8xf32> to vector<8xf32>
    %60 = vector.shape_cast %59 : vector<8xf32> to vector<8x1xf32>
    %61 = tpu.reciprocal %60 {approx = true} : vector<8x1xf32> -> vector<8x1xf32>
    %62 = vector.broadcast %61 : vector<8x1xf32> to vector<8x8xf32>
    %63 = arith.mulf %58, %62 : vector<8x8xf32>
    %64 = arith.truncf %63 : vector<8x8xf32> to vector<8x8xbf16>
    %cst_23 = arith.constant dense<0.000000e+00> : vector<8x16xf32>
    %65 = tpu.matmul %64, %51, %cst_23 {dimension_numbers = #tpu.dot_dimension_numbers<[1], [0], [0], [1], [0, 0, 1, 1], [], []>} : vector<8x8xbf16>, vector<8x16xbf16>, vector<8x16xf32> -> vector<8x16xf32>
    %66 = vector.extract_strided_slice %46 {offsets = [0, 16], sizes = [8, 16], strides = [1, 1]} : vector<8x64xbf16> to vector<8x16xbf16>
    %67 = vector.extract_strided_slice %47 {offsets = [0, 16], sizes = [8, 16], strides = [1, 1]} : vector<8x64xbf16> to vector<8x16xbf16>
    %68 = vector.extract_strided_slice %48 {offsets = [0, 16], sizes = [8, 16], strides = [1, 1]} : vector<8x64xbf16> to vector<8x16xbf16>
    %cst_24 = arith.constant dense<0.000000e+00> : vector<8x8xf32>
    %69 = tpu.matmul %66, %67, %cst_24 {dimension_numbers = #tpu.dot_dimension_numbers<[1], [1], [0], [0], [0, 0, 1, 0], [], []>} : vector<8x16xbf16>, vector<8x16xbf16>, vector<8x8xf32> -> vector<8x8xf32>
    %70 = arith.addf %69, %16 : vector<8x8xf32>
    %cst_25 = arith.constant dense<0xFF800000> : vector<8xf32>
    %71 = vector.multi_reduction <maximumf>, %70, %cst_25 [1] : vector<8x8xf32> to vector<8xf32>
    %72 = vector.shape_cast %71 : vector<8xf32> to vector<8x1xf32>
    %73 = vector.broadcast %72 : vector<8x1xf32> to vector<8x8xf32>
    %74 = arith.subf %70, %73 : vector<8x8xf32>
    %75 = math.exp %74 : vector<8x8xf32>
    %cst_26 = arith.constant dense<0.000000e+00> : vector<8xf32>
    %76 = vector.multi_reduction <add>, %75, %cst_26 [1] : vector<8x8xf32> to vector<8xf32>
    %77 = vector.shape_cast %76 : vector<8xf32> to vector<8x1xf32>
    %78 = tpu.reciprocal %77 {approx = true} : vector<8x1xf32> -> vector<8x1xf32>
    %79 = vector.broadcast %78 : vector<8x1xf32> to vector<8x8xf32>
    %80 = arith.mulf %75, %79 : vector<8x8xf32>
    %81 = arith.truncf %80 : vector<8x8xf32> to vector<8x8xbf16>
    %cst_27 = arith.constant dense<0.000000e+00> : vector<8x16xf32>
    %82 = tpu.matmul %81, %68, %cst_27 {dimension_numbers = #tpu.dot_dimension_numbers<[1], [0], [0], [1], [0, 0, 1, 1], [], []>} : vector<8x8xbf16>, vector<8x16xbf16>, vector<8x16xf32> -> vector<8x16xf32>
    %83 = vector.extract_strided_slice %46 {offsets = [0, 32], sizes = [8, 16], strides = [1, 1]} : vector<8x64xbf16> to vector<8x16xbf16>
    %84 = vector.extract_strided_slice %47 {offsets = [0, 32], sizes = [8, 16], strides = [1, 1]} : vector<8x64xbf16> to vector<8x16xbf16>
    %85 = vector.extract_strided_slice %48 {offsets = [0, 32], sizes = [8, 16], strides = [1, 1]} : vector<8x64xbf16> to vector<8x16xbf16>
    %cst_28 = arith.constant dense<0.000000e+00> : vector<8x8xf32>
    %86 = tpu.matmul %83, %84, %cst_28 {dimension_numbers = #tpu.dot_dimension_numbers<[1], [1], [0], [0], [0, 0, 1, 0], [], []>} : vector<8x16xbf16>, vector<8x16xbf16>, vector<8x8xf32> -> vector<8x8xf32>
    %87 = arith.addf %86, %16 : vector<8x8xf32>
    %cst_29 = arith.constant dense<0xFF800000> : vector<8xf32>
    %88 = vector.multi_reduction <maximumf>, %87, %cst_29 [1] : vector<8x8xf32> to vector<8xf32>
    %89 = vector.shape_cast %88 : vector<8xf32> to vector<8x1xf32>
    %90 = vector.broadcast %89 : vector<8x1xf32> to vector<8x8xf32>
    %91 = arith.subf %87, %90 : vector<8x8xf32>
    %92 = math.exp %91 : vector<8x8xf32>
    %cst_30 = arith.constant dense<0.000000e+00> : vector<8xf32>
    %93 = vector.multi_reduction <add>, %92, %cst_30 [1] : vector<8x8xf32> to vector<8xf32>
    %94 = vector.shape_cast %93 : vector<8xf32> to vector<8x1xf32>
    %95 = tpu.reciprocal %94 {approx = true} : vector<8x1xf32> -> vector<8x1xf32>
    %96 = vector.broadcast %95 : vector<8x1xf32> to vector<8x8xf32>
    %97 = arith.mulf %92, %96 : vector<8x8xf32>
    %98 = arith.truncf %97 : vector<8x8xf32> to vector<8x8xbf16>
    %cst_31 = arith.constant dense<0.000000e+00> : vector<8x16xf32>
    %99 = tpu.matmul %98, %85, %cst_31 {dimension_numbers = #tpu.dot_dimension_numbers<[1], [0], [0], [1], [0, 0, 1, 1], [], []>} : vector<8x8xbf16>, vector<8x16xbf16>, vector<8x16xf32> -> vector<8x16xf32>
    %100 = vector.extract_strided_slice %46 {offsets = [0, 48], sizes = [8, 16], strides = [1, 1]} : vector<8x64xbf16> to vector<8x16xbf16>
    %101 = vector.extract_strided_slice %47 {offsets = [0, 48], sizes = [8, 16], strides = [1, 1]} : vector<8x64xbf16> to vector<8x16xbf16>
    %102 = vector.extract_strided_slice %48 {offsets = [0, 48], sizes = [8, 16], strides = [1, 1]} : vector<8x64xbf16> to vector<8x16xbf16>
    %cst_32 = arith.constant dense<0.000000e+00> : vector<8x8xf32>
    %103 = tpu.matmul %100, %101, %cst_32 {dimension_numbers = #tpu.dot_dimension_numbers<[1], [1], [0], [0], [0, 0, 1, 0], [], []>} : vector<8x16xbf16>, vector<8x16xbf16>, vector<8x8xf32> -> vector<8x8xf32>
    %104 = arith.addf %103, %16 : vector<8x8xf32>
    %cst_33 = arith.constant dense<0xFF800000> : vector<8xf32>
    %105 = vector.multi_reduction <maximumf>, %104, %cst_33 [1] : vector<8x8xf32> to vector<8xf32>
    %106 = vector.shape_cast %105 : vector<8xf32> to vector<8x1xf32>
    %107 = vector.broadcast %106 : vector<8x1xf32> to vector<8x8xf32>
    %108 = arith.subf %104, %107 : vector<8x8xf32>
    %109 = math.exp %108 : vector<8x8xf32>
    %cst_34 = arith.constant dense<0.000000e+00> : vector<8xf32>
    %110 = vector.multi_reduction <add>, %109, %cst_34 [1] : vector<8x8xf32> to vector<8xf32>
    %111 = vector.shape_cast %110 : vector<8xf32> to vector<8x1xf32>
    %112 = tpu.reciprocal %111 {approx = true} : vector<8x1xf32> -> vector<8x1xf32>
    %113 = vector.broadcast %112 : vector<8x1xf32> to vector<8x8xf32>
    %114 = arith.mulf %109, %113 : vector<8x8xf32>
    %115 = arith.truncf %114 : vector<8x8xf32> to vector<8x8xbf16>
    %cst_35 = arith.constant dense<0.000000e+00> : vector<8x16xf32>
    %116 = tpu.matmul %115, %102, %cst_35 {dimension_numbers = #tpu.dot_dimension_numbers<[1], [0], [0], [1], [0, 0, 1, 1], [], []>} : vector<8x8xbf16>, vector<8x16xbf16>, vector<8x16xf32> -> vector<8x16xf32>
    %117 = tpu.concatenate %65, %82, %99, %116 in 1 : vector<8x16xf32>, vector<8x16xf32>, vector<8x16xf32>, vector<8x16xf32> -> vector<8x64xf32>
    %118 = arith.truncf %117 : vector<8x64xf32> to vector<8x64xbf16>
    %c0_36 = arith.constant 0 : index
    %c0_37 = arith.constant 0 : index
    %c0_38 = arith.constant 0 : index
    %119 = vector.load %arg4[%c0_36, %c0_37, %c0_38] : memref<2x64x64xbf16, #tpu.memory_space<vmem>>, vector<1x64x64xbf16>
    %120 = vector.shape_cast %119 : vector<1x64x64xbf16> to vector<64x64xbf16>
    %cst_39 = arith.constant dense<0.000000e+00> : vector<8x64xf32>
    %121 = tpu.matmul %118, %120, %cst_39 {dimension_numbers = #tpu.dot_dimension_numbers<[1], [0], [0], [1], [0, 0, 1, 1], [], []>} : vector<8x64xbf16>, vector<64x64xbf16>, vector<8x64xf32> -> vector<8x64xf32>
    %122 = arith.addf %8, %121 : vector<8x64xf32>
    %c0_40 = arith.constant 0 : index
    %c0_41 = arith.constant 0 : index
    %c0_42 = arith.constant 0 : index
    %123 = vector.load %arg5[%c0_40, %c0_41, %c0_42] : memref<2x1x64xf32, #tpu.memory_space<vmem>>, vector<1x1x64xf32>
    %124 = vector.shape_cast %123 : vector<1x1x64xf32> to vector<1x64xf32>
    %125 = vector.broadcast %124 : vector<1x64xf32> to vector<8x64xf32>
    %126 = arith.addf %122, %125 : vector<8x64xf32>
    %c0_43 = arith.constant 0 : index
    %c0_44 = arith.constant 0 : index
    %c0_45 = arith.constant 0 : index
    %127 = vector.load %arg7[%c0_43, %c0_44, %c0_45] : memref<2x1x64xf32, #tpu.memory_space<vmem>>, vector<1x1x64xf32>
    %128 = vector.shape_cast %127 : vector<1x1x64xf32> to vector<1x64xf32>
    %129 = arith.mulf %126, %126 : vector<8x64xf32>
    %cst_46 = arith.constant dense<0.000000e+00> : vector<8xf32>
    %130 = vector.multi_reduction <add>, %129, %cst_46 [1] : vector<8x64xf32> to vector<8xf32>
    %131 = vector.shape_cast %130 : vector<8xf32> to vector<8x1xf32>
    %cst_47 = arith.constant 6.400000e+01 : f32
    %132 = vector.broadcast %cst_47 : f32 to vector<8x1xf32>
    %133 = arith.divf %131, %132 : vector<8x1xf32>
    %cst_48 = arith.constant 1.000000e-07 : f32
    %134 = vector.broadcast %cst_48 : f32 to vector<8x1xf32>
    %135 = arith.addf %133, %134 : vector<8x1xf32>
    %136 = math.rsqrt %135 : vector<8x1xf32>
    %137 = vector.broadcast %136 : vector<8x1xf32> to vector<8x64xf32>
    %138 = arith.mulf %126, %137 : vector<8x64xf32>
    %139 = vector.broadcast %128 : vector<1x64xf32> to vector<8x64xf32>
    %140 = arith.mulf %138, %139 : vector<8x64xf32>
    %141 = arith.truncf %140 : vector<8x64xf32> to vector<8x64xbf16>
    %c0_49 = arith.constant 0 : index
    %c0_50 = arith.constant 0 : index
    %c0_51 = arith.constant 0 : index
    %142 = vector.load %arg8[%c0_49, %c0_50, %c0_51] : memref<2x64x256xbf16, #tpu.memory_space<vmem>>, vector<1x64x256xbf16>
    %143 = vector.shape_cast %142 : vector<1x64x256xbf16> to vector<64x256xbf16>
    %cst_52 = arith.constant dense<0.000000e+00> : vector<8x256xf32>
    %144 = tpu.matmul %141, %143, %cst_52 {dimension_numbers = #tpu.dot_dimension_numbers<[1], [0], [0], [1], [0, 0, 1, 1], [], []>} : vector<8x64xbf16>, vector<64x256xbf16>, vector<8x256xf32> -> vector<8x256xf32>
    %145 = vector.extract_strided_slice %144 {offsets = [0, 0], sizes = [8, 128], strides = [1, 1]} : vector<8x256xf32> to vector<8x128xf32>
    %146 = vector.extract_strided_slice %144 {offsets = [0, 128], sizes = [8, 128], strides = [1, 1]} : vector<8x256xf32> to vector<8x128xf32>
    %147 = arith.negf %145 : vector<8x128xf32>
    %148 = math.exp %147 : vector<8x128xf32>
    %cst_53 = arith.constant 1.000000e+00 : f32
    %149 = vector.broadcast %cst_53 : f32 to vector<8x128xf32>
    %150 = arith.addf %149, %148 : vector<8x128xf32>
    %151 = arith.divf %149, %150 : vector<8x128xf32>
    %152 = arith.mulf %145, %151 : vector<8x128xf32>
    %153 = arith.mulf %152, %146 : vector<8x128xf32>
    %154 = arith.truncf %153 : vector<8x128xf32> to vector<8x128xbf16>
    %c0_54 = arith.constant 0 : index
    %c0_55 = arith.constant 0 : index
    %c0_56 = arith.constant 0 : index
    %155 = vector.load %arg9[%c0_54, %c0_55, %c0_56] : memref<2x128x64xbf16, #tpu.memory_space<vmem>>, vector<1x128x64xbf16>
    %156 = vector.shape_cast %155 : vector<1x128x64xbf16> to vector<128x64xbf16>
    %cst_57 = arith.constant dense<0.000000e+00> : vector<8x64xf32>
    %157 = tpu.matmul %154, %156, %cst_57 {dimension_numbers = #tpu.dot_dimension_numbers<[1], [0], [0], [1], [0, 0, 1, 1], [], []>} : vector<8x128xbf16>, vector<128x64xbf16>, vector<8x64xf32> -> vector<8x64xf32>
    %158 = arith.addf %126, %157 : vector<8x64xf32>
    %c1 = arith.constant 1 : index
    %c0_58 = arith.constant 0 : index
    %c0_59 = arith.constant 0 : index
    %159 = vector.load %arg6[%c1, %c0_58, %c0_59] : memref<2x1x64xf32, #tpu.memory_space<vmem>>, vector<1x1x64xf32>
    %160 = vector.shape_cast %159 : vector<1x1x64xf32> to vector<1x64xf32>
    %161 = arith.mulf %158, %158 : vector<8x64xf32>
    %cst_60 = arith.constant dense<0.000000e+00> : vector<8xf32>
    %162 = vector.multi_reduction <add>, %161, %cst_60 [1] : vector<8x64xf32> to vector<8xf32>
    %163 = vector.shape_cast %162 : vector<8xf32> to vector<8x1xf32>
    %cst_61 = arith.constant 6.400000e+01 : f32
    %164 = vector.broadcast %cst_61 : f32 to vector<8x1xf32>
    %165 = arith.divf %163, %164 : vector<8x1xf32>
    %cst_62 = arith.constant 1.000000e-07 : f32
    %166 = vector.broadcast %cst_62 : f32 to vector<8x1xf32>
    %167 = arith.addf %165, %166 : vector<8x1xf32>
    %168 = math.rsqrt %167 : vector<8x1xf32>
    %169 = vector.broadcast %168 : vector<8x1xf32> to vector<8x64xf32>
    %170 = arith.mulf %158, %169 : vector<8x64xf32>
    %171 = vector.broadcast %160 : vector<1x64xf32> to vector<8x64xf32>
    %172 = arith.mulf %170, %171 : vector<8x64xf32>
    %173 = arith.truncf %172 : vector<8x64xf32> to vector<8x64xbf16>
    %c1_63 = arith.constant 1 : index
    %c0_64 = arith.constant 0 : index
    %c0_65 = arith.constant 0 : index
    %174 = vector.load %arg3[%c1_63, %c0_64, %c0_65] : memref<2x64x320xbf16, #tpu.memory_space<vmem>>, vector<1x64x320xbf16>
    %175 = vector.shape_cast %174 : vector<1x64x320xbf16> to vector<64x320xbf16>
    %cst_66 = arith.constant dense<0.000000e+00> : vector<8x320xf32>
    %176 = tpu.matmul %173, %175, %cst_66 {dimension_numbers = #tpu.dot_dimension_numbers<[1], [0], [0], [1], [0, 0, 1, 1], [], []>} : vector<8x64xbf16>, vector<64x320xbf16>, vector<8x320xf32> -> vector<8x320xf32>
    %177 = vector.extract_strided_slice %176 {offsets = [0, 0], sizes = [8, 64], strides = [1, 1]} : vector<8x320xf32> to vector<8x64xf32>
    %178 = arith.mulf %177, %9 : vector<8x64xf32>
    %179 = vector.extract_strided_slice %176 {offsets = [0, 64], sizes = [8, 64], strides = [1, 1]} : vector<8x320xf32> to vector<8x64xf32>
    %180 = arith.mulf %179, %10 : vector<8x64xf32>
    %181 = arith.addf %178, %180 : vector<8x64xf32>
    %182 = vector.extract_strided_slice %176 {offsets = [0, 128], sizes = [8, 64], strides = [1, 1]} : vector<8x320xf32> to vector<8x64xf32>
    %183 = arith.mulf %182, %9 : vector<8x64xf32>
    %184 = vector.extract_strided_slice %176 {offsets = [0, 192], sizes = [8, 64], strides = [1, 1]} : vector<8x320xf32> to vector<8x64xf32>
    %185 = arith.mulf %184, %10 : vector<8x64xf32>
    %186 = arith.addf %183, %185 : vector<8x64xf32>
    %187 = vector.extract_strided_slice %176 {offsets = [0, 256], sizes = [8, 64], strides = [1, 1]} : vector<8x320xf32> to vector<8x64xf32>
    %188 = arith.truncf %181 : vector<8x64xf32> to vector<8x64xbf16>
    %189 = arith.truncf %186 : vector<8x64xf32> to vector<8x64xbf16>
    %190 = arith.truncf %187 : vector<8x64xf32> to vector<8x64xbf16>
    %191 = vector.extract_strided_slice %188 {offsets = [0, 0], sizes = [8, 16], strides = [1, 1]} : vector<8x64xbf16> to vector<8x16xbf16>
    %192 = vector.extract_strided_slice %189 {offsets = [0, 0], sizes = [8, 16], strides = [1, 1]} : vector<8x64xbf16> to vector<8x16xbf16>
    %193 = vector.extract_strided_slice %190 {offsets = [0, 0], sizes = [8, 16], strides = [1, 1]} : vector<8x64xbf16> to vector<8x16xbf16>
    %cst_67 = arith.constant dense<0.000000e+00> : vector<8x8xf32>
    %194 = tpu.matmul %191, %192, %cst_67 {dimension_numbers = #tpu.dot_dimension_numbers<[1], [1], [0], [0], [0, 0, 1, 0], [], []>} : vector<8x16xbf16>, vector<8x16xbf16>, vector<8x8xf32> -> vector<8x8xf32>
    %195 = arith.addf %194, %16 : vector<8x8xf32>
    %cst_68 = arith.constant dense<0xFF800000> : vector<8xf32>
    %196 = vector.multi_reduction <maximumf>, %195, %cst_68 [1] : vector<8x8xf32> to vector<8xf32>
    %197 = vector.shape_cast %196 : vector<8xf32> to vector<8x1xf32>
    %198 = vector.broadcast %197 : vector<8x1xf32> to vector<8x8xf32>
    %199 = arith.subf %195, %198 : vector<8x8xf32>
    %200 = math.exp %199 : vector<8x8xf32>
    %cst_69 = arith.constant dense<0.000000e+00> : vector<8xf32>
    %201 = vector.multi_reduction <add>, %200, %cst_69 [1] : vector<8x8xf32> to vector<8xf32>
    %202 = vector.shape_cast %201 : vector<8xf32> to vector<8x1xf32>
    %203 = tpu.reciprocal %202 {approx = true} : vector<8x1xf32> -> vector<8x1xf32>
    %204 = vector.broadcast %203 : vector<8x1xf32> to vector<8x8xf32>
    %205 = arith.mulf %200, %204 : vector<8x8xf32>
    %206 = arith.truncf %205 : vector<8x8xf32> to vector<8x8xbf16>
    %cst_70 = arith.constant dense<0.000000e+00> : vector<8x16xf32>
    %207 = tpu.matmul %206, %193, %cst_70 {dimension_numbers = #tpu.dot_dimension_numbers<[1], [0], [0], [1], [0, 0, 1, 1], [], []>} : vector<8x8xbf16>, vector<8x16xbf16>, vector<8x16xf32> -> vector<8x16xf32>
    %208 = vector.extract_strided_slice %188 {offsets = [0, 16], sizes = [8, 16], strides = [1, 1]} : vector<8x64xbf16> to vector<8x16xbf16>
    %209 = vector.extract_strided_slice %189 {offsets = [0, 16], sizes = [8, 16], strides = [1, 1]} : vector<8x64xbf16> to vector<8x16xbf16>
    %210 = vector.extract_strided_slice %190 {offsets = [0, 16], sizes = [8, 16], strides = [1, 1]} : vector<8x64xbf16> to vector<8x16xbf16>
    %cst_71 = arith.constant dense<0.000000e+00> : vector<8x8xf32>
    %211 = tpu.matmul %208, %209, %cst_71 {dimension_numbers = #tpu.dot_dimension_numbers<[1], [1], [0], [0], [0, 0, 1, 0], [], []>} : vector<8x16xbf16>, vector<8x16xbf16>, vector<8x8xf32> -> vector<8x8xf32>
    %212 = arith.addf %211, %16 : vector<8x8xf32>
    %cst_72 = arith.constant dense<0xFF800000> : vector<8xf32>
    %213 = vector.multi_reduction <maximumf>, %212, %cst_72 [1] : vector<8x8xf32> to vector<8xf32>
    %214 = vector.shape_cast %213 : vector<8xf32> to vector<8x1xf32>
    %215 = vector.broadcast %214 : vector<8x1xf32> to vector<8x8xf32>
    %216 = arith.subf %212, %215 : vector<8x8xf32>
    %217 = math.exp %216 : vector<8x8xf32>
    %cst_73 = arith.constant dense<0.000000e+00> : vector<8xf32>
    %218 = vector.multi_reduction <add>, %217, %cst_73 [1] : vector<8x8xf32> to vector<8xf32>
    %219 = vector.shape_cast %218 : vector<8xf32> to vector<8x1xf32>
    %220 = tpu.reciprocal %219 {approx = true} : vector<8x1xf32> -> vector<8x1xf32>
    %221 = vector.broadcast %220 : vector<8x1xf32> to vector<8x8xf32>
    %222 = arith.mulf %217, %221 : vector<8x8xf32>
    %223 = arith.truncf %222 : vector<8x8xf32> to vector<8x8xbf16>
    %cst_74 = arith.constant dense<0.000000e+00> : vector<8x16xf32>
    %224 = tpu.matmul %223, %210, %cst_74 {dimension_numbers = #tpu.dot_dimension_numbers<[1], [0], [0], [1], [0, 0, 1, 1], [], []>} : vector<8x8xbf16>, vector<8x16xbf16>, vector<8x16xf32> -> vector<8x16xf32>
    %225 = vector.extract_strided_slice %188 {offsets = [0, 32], sizes = [8, 16], strides = [1, 1]} : vector<8x64xbf16> to vector<8x16xbf16>
    %226 = vector.extract_strided_slice %189 {offsets = [0, 32], sizes = [8, 16], strides = [1, 1]} : vector<8x64xbf16> to vector<8x16xbf16>
    %227 = vector.extract_strided_slice %190 {offsets = [0, 32], sizes = [8, 16], strides = [1, 1]} : vector<8x64xbf16> to vector<8x16xbf16>
    %cst_75 = arith.constant dense<0.000000e+00> : vector<8x8xf32>
    %228 = tpu.matmul %225, %226, %cst_75 {dimension_numbers = #tpu.dot_dimension_numbers<[1], [1], [0], [0], [0, 0, 1, 0], [], []>} : vector<8x16xbf16>, vector<8x16xbf16>, vector<8x8xf32> -> vector<8x8xf32>
    %229 = arith.addf %228, %16 : vector<8x8xf32>
    %cst_76 = arith.constant dense<0xFF800000> : vector<8xf32>
    %230 = vector.multi_reduction <maximumf>, %229, %cst_76 [1] : vector<8x8xf32> to vector<8xf32>
    %231 = vector.shape_cast %230 : vector<8xf32> to vector<8x1xf32>
    %232 = vector.broadcast %231 : vector<8x1xf32> to vector<8x8xf32>
    %233 = arith.subf %229, %232 : vector<8x8xf32>
    %234 = math.exp %233 : vector<8x8xf32>
    %cst_77 = arith.constant dense<0.000000e+00> : vector<8xf32>
    %235 = vector.multi_reduction <add>, %234, %cst_77 [1] : vector<8x8xf32> to vector<8xf32>
    %236 = vector.shape_cast %235 : vector<8xf32> to vector<8x1xf32>
    %237 = tpu.reciprocal %236 {approx = true} : vector<8x1xf32> -> vector<8x1xf32>
    %238 = vector.broadcast %237 : vector<8x1xf32> to vector<8x8xf32>
    %239 = arith.mulf %234, %238 : vector<8x8xf32>
    %240 = arith.truncf %239 : vector<8x8xf32> to vector<8x8xbf16>
    %cst_78 = arith.constant dense<0.000000e+00> : vector<8x16xf32>
    %241 = tpu.matmul %240, %227, %cst_78 {dimension_numbers = #tpu.dot_dimension_numbers<[1], [0], [0], [1], [0, 0, 1, 1], [], []>} : vector<8x8xbf16>, vector<8x16xbf16>, vector<8x16xf32> -> vector<8x16xf32>
    %242 = vector.extract_strided_slice %188 {offsets = [0, 48], sizes = [8, 16], strides = [1, 1]} : vector<8x64xbf16> to vector<8x16xbf16>
    %243 = vector.extract_strided_slice %189 {offsets = [0, 48], sizes = [8, 16], strides = [1, 1]} : vector<8x64xbf16> to vector<8x16xbf16>
    %244 = vector.extract_strided_slice %190 {offsets = [0, 48], sizes = [8, 16], strides = [1, 1]} : vector<8x64xbf16> to vector<8x16xbf16>
    %cst_79 = arith.constant dense<0.000000e+00> : vector<8x8xf32>
    %245 = tpu.matmul %242, %243, %cst_79 {dimension_numbers = #tpu.dot_dimension_numbers<[1], [1], [0], [0], [0, 0, 1, 0], [], []>} : vector<8x16xbf16>, vector<8x16xbf16>, vector<8x8xf32> -> vector<8x8xf32>
    %246 = arith.addf %245, %16 : vector<8x8xf32>
    %cst_80 = arith.constant dense<0xFF800000> : vector<8xf32>
    %247 = vector.multi_reduction <maximumf>, %246, %cst_80 [1] : vector<8x8xf32> to vector<8xf32>
    %248 = vector.shape_cast %247 : vector<8xf32> to vector<8x1xf32>
    %249 = vector.broadcast %248 : vector<8x1xf32> to vector<8x8xf32>
    %250 = arith.subf %246, %249 : vector<8x8xf32>
    %251 = math.exp %250 : vector<8x8xf32>
    %cst_81 = arith.constant dense<0.000000e+00> : vector<8xf32>
    %252 = vector.multi_reduction <add>, %251, %cst_81 [1] : vector<8x8xf32> to vector<8xf32>
    %253 = vector.shape_cast %252 : vector<8xf32> to vector<8x1xf32>
    %254 = tpu.reciprocal %253 {approx = true} : vector<8x1xf32> -> vector<8x1xf32>
    %255 = vector.broadcast %254 : vector<8x1xf32> to vector<8x8xf32>
    %256 = arith.mulf %251, %255 : vector<8x8xf32>
    %257 = arith.truncf %256 : vector<8x8xf32> to vector<8x8xbf16>
    %cst_82 = arith.constant dense<0.000000e+00> : vector<8x16xf32>
    %258 = tpu.matmul %257, %244, %cst_82 {dimension_numbers = #tpu.dot_dimension_numbers<[1], [0], [0], [1], [0, 0, 1, 1], [], []>} : vector<8x8xbf16>, vector<8x16xbf16>, vector<8x16xf32> -> vector<8x16xf32>
    %259 = tpu.concatenate %207, %224, %241, %258 in 1 : vector<8x16xf32>, vector<8x16xf32>, vector<8x16xf32>, vector<8x16xf32> -> vector<8x64xf32>
    %260 = arith.truncf %259 : vector<8x64xf32> to vector<8x64xbf16>
    %c1_83 = arith.constant 1 : index
    %c0_84 = arith.constant 0 : index
    %c0_85 = arith.constant 0 : index
    %261 = vector.load %arg4[%c1_83, %c0_84, %c0_85] : memref<2x64x64xbf16, #tpu.memory_space<vmem>>, vector<1x64x64xbf16>
    %262 = vector.shape_cast %261 : vector<1x64x64xbf16> to vector<64x64xbf16>
    %cst_86 = arith.constant dense<0.000000e+00> : vector<8x64xf32>
    %263 = tpu.matmul %260, %262, %cst_86 {dimension_numbers = #tpu.dot_dimension_numbers<[1], [0], [0], [1], [0, 0, 1, 1], [], []>} : vector<8x64xbf16>, vector<64x64xbf16>, vector<8x64xf32> -> vector<8x64xf32>
    %264 = arith.addf %158, %263 : vector<8x64xf32>
    %c1_87 = arith.constant 1 : index
    %c0_88 = arith.constant 0 : index
    %c0_89 = arith.constant 0 : index
    %265 = vector.load %arg5[%c1_87, %c0_88, %c0_89] : memref<2x1x64xf32, #tpu.memory_space<vmem>>, vector<1x1x64xf32>
    %266 = vector.shape_cast %265 : vector<1x1x64xf32> to vector<1x64xf32>
    %267 = vector.broadcast %266 : vector<1x64xf32> to vector<8x64xf32>
    %268 = arith.addf %264, %267 : vector<8x64xf32>
    %c1_90 = arith.constant 1 : index
    %c0_91 = arith.constant 0 : index
    %c0_92 = arith.constant 0 : index
    %269 = vector.load %arg7[%c1_90, %c0_91, %c0_92] : memref<2x1x64xf32, #tpu.memory_space<vmem>>, vector<1x1x64xf32>
    %270 = vector.shape_cast %269 : vector<1x1x64xf32> to vector<1x64xf32>
    %271 = arith.mulf %268, %268 : vector<8x64xf32>
    %cst_93 = arith.constant dense<0.000000e+00> : vector<8xf32>
    %272 = vector.multi_reduction <add>, %271, %cst_93 [1] : vector<8x64xf32> to vector<8xf32>
    %273 = vector.shape_cast %272 : vector<8xf32> to vector<8x1xf32>
    %cst_94 = arith.constant 6.400000e+01 : f32
    %274 = vector.broadcast %cst_94 : f32 to vector<8x1xf32>
    %275 = arith.divf %273, %274 : vector<8x1xf32>
    %cst_95 = arith.constant 1.000000e-07 : f32
    %276 = vector.broadcast %cst_95 : f32 to vector<8x1xf32>
    %277 = arith.addf %275, %276 : vector<8x1xf32>
    %278 = math.rsqrt %277 : vector<8x1xf32>
    %279 = vector.broadcast %278 : vector<8x1xf32> to vector<8x64xf32>
    %280 = arith.mulf %268, %279 : vector<8x64xf32>
    %281 = vector.broadcast %270 : vector<1x64xf32> to vector<8x64xf32>
    %282 = arith.mulf %280, %281 : vector<8x64xf32>
    %283 = arith.truncf %282 : vector<8x64xf32> to vector<8x64xbf16>
    %c1_96 = arith.constant 1 : index
    %c0_97 = arith.constant 0 : index
    %c0_98 = arith.constant 0 : index
    %284 = vector.load %arg8[%c1_96, %c0_97, %c0_98] : memref<2x64x256xbf16, #tpu.memory_space<vmem>>, vector<1x64x256xbf16>
    %285 = vector.shape_cast %284 : vector<1x64x256xbf16> to vector<64x256xbf16>
    %cst_99 = arith.constant dense<0.000000e+00> : vector<8x256xf32>
    %286 = tpu.matmul %283, %285, %cst_99 {dimension_numbers = #tpu.dot_dimension_numbers<[1], [0], [0], [1], [0, 0, 1, 1], [], []>} : vector<8x64xbf16>, vector<64x256xbf16>, vector<8x256xf32> -> vector<8x256xf32>
    %287 = vector.extract_strided_slice %286 {offsets = [0, 0], sizes = [8, 128], strides = [1, 1]} : vector<8x256xf32> to vector<8x128xf32>
    %288 = vector.extract_strided_slice %286 {offsets = [0, 128], sizes = [8, 128], strides = [1, 1]} : vector<8x256xf32> to vector<8x128xf32>
    %289 = arith.negf %287 : vector<8x128xf32>
    %290 = math.exp %289 : vector<8x128xf32>
    %cst_100 = arith.constant 1.000000e+00 : f32
    %291 = vector.broadcast %cst_100 : f32 to vector<8x128xf32>
    %292 = arith.addf %291, %290 : vector<8x128xf32>
    %293 = arith.divf %291, %292 : vector<8x128xf32>
    %294 = arith.mulf %287, %293 : vector<8x128xf32>
    %295 = arith.mulf %294, %288 : vector<8x128xf32>
    %296 = arith.truncf %295 : vector<8x128xf32> to vector<8x128xbf16>
    %c1_101 = arith.constant 1 : index
    %c0_102 = arith.constant 0 : index
    %c0_103 = arith.constant 0 : index
    %297 = vector.load %arg9[%c1_101, %c0_102, %c0_103] : memref<2x128x64xbf16, #tpu.memory_space<vmem>>, vector<1x128x64xbf16>
    %298 = vector.shape_cast %297 : vector<1x128x64xbf16> to vector<128x64xbf16>
    %cst_104 = arith.constant dense<0.000000e+00> : vector<8x64xf32>
    %299 = tpu.matmul %296, %298, %cst_104 {dimension_numbers = #tpu.dot_dimension_numbers<[1], [0], [0], [1], [0, 0, 1, 1], [], []>} : vector<8x128xbf16>, vector<128x64xbf16>, vector<8x64xf32> -> vector<8x64xf32>
    %300 = arith.addf %268, %299 : vector<8x64xf32>
    %c0_105 = arith.constant 0 : index
    %c0_106 = arith.constant 0 : index
    %301 = vector.load %arg10[%c0_105, %c0_106] : memref<1x64xf32, #tpu.memory_space<vmem>>, vector<1x64xf32>
    %302 = arith.mulf %300, %300 : vector<8x64xf32>
    %cst_107 = arith.constant dense<0.000000e+00> : vector<8xf32>
    %303 = vector.multi_reduction <add>, %302, %cst_107 [1] : vector<8x64xf32> to vector<8xf32>
    %304 = vector.shape_cast %303 : vector<8xf32> to vector<8x1xf32>
    %cst_108 = arith.constant 6.400000e+01 : f32
    %305 = vector.broadcast %cst_108 : f32 to vector<8x1xf32>
    %306 = arith.divf %304, %305 : vector<8x1xf32>
    %cst_109 = arith.constant 1.000000e-07 : f32
    %307 = vector.broadcast %cst_109 : f32 to vector<8x1xf32>
    %308 = arith.addf %306, %307 : vector<8x1xf32>
    %309 = math.rsqrt %308 : vector<8x1xf32>
    %310 = vector.broadcast %309 : vector<8x1xf32> to vector<8x64xf32>
    %311 = arith.mulf %300, %310 : vector<8x64xf32>
    %312 = vector.broadcast %301 : vector<1x64xf32> to vector<8x64xf32>
    %313 = arith.mulf %311, %312 : vector<8x64xf32>
    %314 = arith.truncf %313 : vector<8x64xf32> to vector<8x64xbf16>
    %c0_110 = arith.constant 0 : index
    %c0_111 = arith.constant 0 : index
    %315 = vector.load %arg11[%c0_110, %c0_111] : memref<64x256xbf16, #tpu.memory_space<vmem>>, vector<64x256xbf16>
    %cst_112 = arith.constant dense<0.000000e+00> : vector<8x256xf32>
    %316 = tpu.matmul %314, %315, %cst_112 {dimension_numbers = #tpu.dot_dimension_numbers<[1], [0], [0], [1], [0, 0, 1, 1], [], []>} : vector<8x64xbf16>, vector<64x256xbf16>, vector<8x256xf32> -> vector<8x256xf32>
    %c0_113 = arith.constant 0 : index
    %c0_114 = arith.constant 0 : index
    %c0_115 = arith.constant 0 : index
    %317 = vector.load %arg14[%c0_113, %c0_114, %c0_115] : memref<1x8x256xf32, #tpu.memory_space<vmem>>, vector<1x8x256xf32>
    %318 = vector.shape_cast %317 : vector<1x8x256xf32> to vector<8x256xf32>
    %319 = vector.shape_cast %316 : vector<8x256xf32> to vector<1x8x256xf32>
    tpu.vector_store %arg14[%c0_113, %c0_114, %c0_115], %319 {strides = array<i32>} : memref<1x8x256xf32, #tpu.memory_space<vmem>>, vector<1x8x256xf32>,
    return
  }
  func.func @transform_0(%arg0: i32) -> (i32, i32, i32) {
    %c0_i32 = arith.constant 0 : i32
    %c0_i32_0 = arith.constant 0 : i32
    %c0_i32_1 = arith.constant 0 : i32
    return %arg0, %c0_i32, %c0_i32_0 : i32, i32, i32
  }
  func.func @transform_1(%arg0: i32) -> (i32, i32) {
    %c0_i32 = arith.constant 0 : i32
    %c0_i32_0 = arith.constant 0 : i32
    %c0_i32_1 = arith.constant 0 : i32
    return %c0_i32, %c0_i32_0 : i32, i32
  }
  func.func @transform_2(%arg0: i32) -> (i32, i32, i32) {
    %c0_i32 = arith.constant 0 : i32
    %c0_i32_0 = arith.constant 0 : i32
    %c0_i32_1 = arith.constant 0 : i32
    %c0_i32_2 = arith.constant 0 : i32
    return %c0_i32, %c0_i32_0, %c0_i32_1 : i32, i32, i32
  }
  func.func @transform_3(%arg0: i32) -> (i32, i32, i32) {
    %c0_i32 = arith.constant 0 : i32
    %c0_i32_0 = arith.constant 0 : i32
    %c0_i32_1 = arith.constant 0 : i32
    %c0_i32_2 = arith.constant 0 : i32
    return %c0_i32, %c0_i32_0, %c0_i32_1 : i32, i32, i32
  }
  func.func @transform_4(%arg0: i32) -> (i32, i32, i32) {
    %c0_i32 = arith.constant 0 : i32
    %c0_i32_0 = arith.constant 0 : i32
    %c0_i32_1 = arith.constant 0 : i32
    %c0_i32_2 = arith.constant 0 : i32
    return %c0_i32, %c0_i32_0, %c0_i32_1 : i32, i32, i32
  }
  func.func @transform_5(%arg0: i32) -> (i32, i32, i32) {
    %c0_i32 = arith.constant 0 : i32
    %c0_i32_0 = arith.constant 0 : i32
    %c0_i32_1 = arith.constant 0 : i32
    %c0_i32_2 = arith.constant 0 : i32
    return %c0_i32, %c0_i32_0, %c0_i32_1 : i32, i32, i32
  }
  func.func @transform_6(%arg0: i32) -> (i32, i32, i32) {
    %c0_i32 = arith.constant 0 : i32
    %c0_i32_0 = arith.constant 0 : i32
    %c0_i32_1 = arith.constant 0 : i32
    %c0_i32_2 = arith.constant 0 : i32
    return %c0_i32, %c0_i32_0, %c0_i32_1 : i32, i32, i32
  }
  func.func @transform_7(%arg0: i32) -> (i32, i32, i32) {
    %c0_i32 = arith.constant 0 : i32
    %c0_i32_0 = arith.constant 0 : i32
    %c0_i32_1 = arith.constant 0 : i32
    %c0_i32_2 = arith.constant 0 : i32
    return %c0_i32, %c0_i32_0, %c0_i32_1 : i32, i32, i32
  }
  func.func @transform_8(%arg0: i32) -> (i32, i32, i32) {
    %c0_i32 = arith.constant 0 : i32
    %c0_i32_0 = arith.constant 0 : i32
    %c0_i32_1 = arith.constant 0 : i32
    %c0_i32_2 = arith.constant 0 : i32
    return %c0_i32, %c0_i32_0, %c0_i32_1 : i32, i32, i32
  }
  func.func @transform_9(%arg0: i32) -> (i32, i32) {
    %c0_i32 = arith.constant 0 : i32
    %c0_i32_0 = arith.constant 0 : i32
    %c0_i32_1 = arith.constant 0 : i32
    return %c0_i32, %c0_i32_0 : i32, i32
  }
  func.func @transform_10(%arg0: i32) -> (i32, i32) {
    %c0_i32 = arith.constant 0 : i32
    %c0_i32_0 = arith.constant 0 : i32
    %c0_i32_1 = arith.constant 0 : i32
    return %c0_i32, %c0_i32_0 : i32, i32
  }
  func.func @transform_11(%arg0: i32) -> (i32, i32) {
    %c0_i32 = arith.constant 0 : i32
    %c0_i32_0 = arith.constant 0 : i32
    %c0_i32_1 = arith.constant 0 : i32
    return %c0_i32, %c0_i32_0 : i32, i32
  }
  func.func @transform_12(%arg0: i32) -> (i32, i32) {
    %c0_i32 = arith.constant 0 : i32
    %c0_i32_0 = arith.constant 0 : i32
    %c0_i32_1 = arith.constant 0 : i32
    return %c0_i32, %c0_i32_0 : i32, i32
  }
  func.func @transform_13(%arg0: i32) -> (i32, i32, i32) {
    %c0_i32 = arith.constant 0 : i32
    %c0_i32_0 = arith.constant 0 : i32
    %c0_i32_1 = arith.constant 0 : i32
    return %arg0, %c0_i32, %c0_i32_0 : i32, i32, i32
  }
}

</mosaic_0001>

<llo_original>
// kernel: tpu_custom_call.1
$region0: #{tpu_custom_call.1}
  #allocation0 [shape = 'u32[]', space=smem, size = 0x4, offset = 0x4, fixed_abs, tag = 'smem constant byte address 0x4 - core index']
  #allocation1 [shape = 'u32[144,128]{1,0:T(1,128)}', space=vmem, size = 0x12000, scoped, tag = 'internal scratch']
  %s0 = inlined_call_operand.vmem [shape: s32[2,8,1], index: 0, kind: input, shape index: {}]
  %s1 = inlined_call_operand.vmem [shape: f32[256,64], index: 1, kind: input, shape index: {}]
  %s2 = inlined_call_operand.vmem [shape: bf16[2,64,320], index: 2, kind: input, shape index: {}]
  %s3 = inlined_call_operand.vmem [shape: bf16[2,64,64], index: 3, kind: input, shape index: {}]
  %s4 = inlined_call_operand.hbm [shape: f32[2,1,64], index: 4, kind: input, shape index: {}]
  %s5 = inlined_call_operand.hbm [shape: f32[2,1,64], index: 5, kind: input, shape index: {}]
  %s6 = inlined_call_operand.hbm [shape: f32[2,1,64], index: 6, kind: input, shape index: {}]
  %s7 = inlined_call_operand.vmem [shape: bf16[2,64,256], index: 7, kind: input, shape index: {}]
  %s8 = inlined_call_operand.vmem [shape: bf16[2,128,64], index: 8, kind: input, shape index: {}]
  %s9 = inlined_call_operand.hbm [shape: f32[1,64], index: 9, kind: input, shape index: {}]
  %s10 = inlined_call_operand.vmem [shape: bf16[64,256], index: 10, kind: input, shape index: {}]
  %s11 = inlined_call_operand.vmem [shape: f32[16,64], index: 11, kind: input, shape index: {}]
  %s12 = inlined_call_operand.vmem [shape: f32[16,64], index: 12, kind: input, shape index: {}]
  %s13 = inlined_call_operand.hbm [shape: f32[2,8,256], index: 13, kind: output, shape index: {}]
  %s14 = sld [smem:[#allocation0]]
  $region101: #{tpu_custom_call.1} parent=0
    _
  %s16 = ssub.s32 1, %s14
  %s17 = scalar_select 0, %s16, %s14
  $region1: #{tpu_custom_call.1} parent=0
    #allocation2 [shape = 'u8[1024]{0}', space=vmem, size = 0x400, scoped, tag = 'input window, operand 4, single buffered']
    #allocation3 [shape = 's32[2]{0}', space=sflag, size = 0x8, scoped, tag = 'scoped memory for tpu_custom_call.1']
    #allocation4 [shape = 's32[2]{0}', space=sflag, size = 0x8, scoped, tag = 'scoped memory for tpu_custom_call.1']
    #allocation5 [shape = 'u8[1024]{0}', space=vmem, size = 0x400, scoped, tag = 'input window, operand 5, single buffered']
    #allocation6 [shape = 's32[1]{0}', space=sflag, size = 0x4, scoped, tag = 'scoped memory for tpu_custom_call.1']
    #allocation7 [shape = 'u8[1024]{0}', space=vmem, size = 0x400, scoped, tag = 'input window, operand 6, single buffered']
    #allocation8 [shape = 'u8[512]{0}', space=vmem, size = 0x400, scoped, tag = 'input window, operand 9, single buffered']
    #allocation9 [shape = 's32[1]{0}', space=sflag, size = 0x4, scoped, tag = 'scoped memory for tpu_custom_call.1']
    #allocation10 [shape = 'u8[16384]{0}', space=vmem, size = 0x4000, scoped, tag = 'output window, operand 0']
    %18 = vsyncpa [#allocation3], 0
    %19 = vsyncpa [#allocation6], 0
    %20 = vsyncpa [#allocation9], 0
    %21 = vsyncpa [#allocation4], 0
    %s22 = scalar_lea.sflag [#allocation4], 1
    %23 = vsyncpa %s22, 0
    loop: start=0, step=1, limit=4
    $region2: #{tpu_custom_call.1} parent=1 // loop_pre_header
      _
    $region3: #{tpu_custom_call.1} parent=1 // loop_header
      %s25 = sphi 0, %s29
      %p26 = scmp.ge.s32.totalorder %s25, 4
      %s35 = sphi 0, %s37
      %s38 = sphi 0, %s35
      %s39 = sphi 0, %s38
      %s55 = sphi 0, %s39
      %s59 = sphi 0, %s59
      %s61 = sphi 0, %s59
      %s62 = sphi 0, %s61
      %s76 = sphi 0, %s62
      %s80 = sphi 0, %s80
      %s82 = sphi 0, %s80
      %s83 = sphi 0, %s82
      %s97 = sphi 0, %s83
      %s101 = sphi 0, %s101
      %s103 = sphi 0, %s101
      %s104 = sphi 0, %s103
      %s118 = sphi 0, %s104
      %s122 = sphi 0, %s122
      %s124 = sphi 0, %s122
      %s125 = sphi 0, %s124
      %s139 = sphi 0, %s125
      %s143 = sphi 0, %s143
      %s145 = sphi 0, %s143
      %s146 = sphi 0, %s145
      %s160 = sphi 0, %s146
      %s164 = sphi 0, %s164
      %s166 = sphi 0, %s164
      %s167 = sphi 0, %s166
      %s181 = sphi 0, %s167
      %s185 = sphi 0, %s185
      %s187 = sphi 0, %s185
      %s188 = sphi 0, %s187
      %s202 = sphi 0, %s188
      %s206 = sphi 0, %s206
      %s208 = sphi 0, %s206
      %s209 = sphi 0, %s208
      %s223 = sphi 0, %s209
      %s227 = sphi 0, %s227
      %s229 = sphi 0, %s227
      %s230 = sphi 0, %s229
      %s244 = sphi 0, %s230
      %s248 = sphi 0, %s248
      %s250 = sphi 0, %s248
      %s251 = sphi 0, %s250
      %s265 = sphi 0, %s251
      %s269 = sphi 0, %s269
      %s271 = sphi 0, %s269
      %s272 = sphi 0, %s271
      %s286 = sphi 0, %s272
      %s290 = sphi 0, %s290
      %s292 = sphi 0, %s290
      %s293 = sphi 0, %s292
      %s307 = sphi 0, %s293
      %s313 = sphi 0, %s315
      %s316 = sphi 0, %s313
      %s317 = sphi 0, %s316
      %s333 = sphi 0, %s317
    $region4: #{tpu_custom_call.1} parent=1 // loop_header_branch
      %28 = sbr.rel (%p26) target = $region8
    $region5: #{tpu_custom_call.1} parent=1 // loop_body
      %s30 = ssub.s32 %s25, 1
      %s31 = ssub.s32 %s25, 2
      %s32 = sadd.s32 %s25, 1
      %s33 = ssub.s32 %s25, %s32
      %p34 = scmp.eq.s32.totalorder %s33, 0
      %s36 = sadd.s32 %s35, 1
      %s37 = scalar_select %p34, %s35, %s36
      %p40 = pneg %p34
      %p41 = scmp.eq.s32.totalorder %s25, 1
      %p42 = por %p40, %p41
      %p43 = scmp.ne.s32.totalorder %s35, %s38
      %p44 = scmp.eq.s32.totalorder %s25, 0
      %p45 = por %p43, %p44
      %p46 = scmp.ne.s32.totalorder %s35, %s38
      %p47 = scmp.eq.s32.totalorder %s30, 1
      %p48 = por %p46, %p47
      %p49 = scmp.ne.s32.totalorder %s38, %s39
      %p50 = scmp.eq.s32.totalorder %s30, 0
      %p51 = por %p49, %p50
      %p52 = scmp.ne.s32.totalorder %s38, %s39
      %p53 = scmp.eq.s32.totalorder %s31, 1
      %p54 = por %p52, %p53
      %p56 = scmp.ne.s32.totalorder %s39, %s55
      %p57 = scmp.eq.s32.totalorder %s31, 0
      %p58 = por %p56, %p57
      %s60 = sadd.s32 %s59, 1
      %p63 = scmp.eq.s32.totalorder %s25, 1
      %p64 = scmp.ne.s32.totalorder %s59, %s61
      %p65 = scmp.eq.s32.totalorder %s25, 0
      %p66 = por %p64, %p65
      %p67 = scmp.ne.s32.totalorder %s59, %s61
      %p68 = scmp.eq.s32.totalorder %s30, 1
      %p69 = por %p67, %p68
      %p70 = scmp.ne.s32.totalorder %s61, %s62
      %p71 = scmp.eq.s32.totalorder %s30, 0
      %p72 = por %p70, %p71
      %p73 = scmp.ne.s32.totalorder %s61, %s62
      %p74 = scmp.eq.s32.totalorder %s31, 1
      %p75 = por %p73, %p74
      %p77 = scmp.ne.s32.totalorder %s62, %s76
      %p78 = scmp.eq.s32.totalorder %s31, 0
      %p79 = por %p77, %p78
      %s81 = sadd.s32 %s80, 1
      %p84 = scmp.eq.s32.totalorder %s25, 1
      %p85 = scmp.ne.s32.totalorder %s80, %s82
      %p86 = scmp.eq.s32.totalorder %s25, 0
      %p87 = por %p85, %p86
      %p88 = scmp.ne.s32.totalorder %s80, %s82
      %p89 = scmp.eq.s32.totalorder %s30, 1
      %p90 = por %p88, %p89
      %p91 = scmp.ne.s32.totalorder %s82, %s83
      %p92 = scmp.eq.s32.totalorder %s30, 0
      %p93 = por %p91, %p92
      %p94 = scmp.ne.s32.totalorder %s82, %s83
      %p95 = scmp.eq.s32.totalorder %s31, 1
      %p96 = por %p94, %p95
      %p98 = scmp.ne.s32.totalorder %s83, %s97
      %p99 = scmp.eq.s32.totalorder %s31, 0
      %p100 = por %p98, %p99
      %s102 = sadd.s32 %s101, 1
      %p105 = scmp.eq.s32.totalorder %s25, 1
      %p106 = scmp.ne.s32.totalorder %s101, %s103
      %p107 = scmp.eq.s32.totalorder %s25, 0
      %p108 = por %p106, %p107
      %p109 = scmp.ne.s32.totalorder %s101, %s103
      %p110 = scmp.eq.s32.totalorder %s30, 1
      %p111 = por %p109, %p110
      %p112 = scmp.ne.s32.totalorder %s103, %s104
      %p113 = scmp.eq.s32.totalorder %s30, 0
      %p114 = por %p112, %p113
      %p115 = scmp.ne.s32.totalorder %s103, %s104
      %p116 = scmp.eq.s32.totalorder %s31, 1
      %p117 = por %p115, %p116
      %p119 = scmp.ne.s32.totalorder %s104, %s118
      %p120 = scmp.eq.s32.totalorder %s31, 0
      %p121 = por %p119, %p120
      %s123 = sadd.s32 %s122, 1
      %p126 = scmp.eq.s32.totalorder %s25, 1
      %p127 = scmp.ne.s32.totalorder %s122, %s124
      %p128 = scmp.eq.s32.totalorder %s25, 0
      %p129 = por %p127, %p128
      %p130 = scmp.ne.s32.totalorder %s122, %s124
      %p131 = scmp.eq.s32.totalorder %s30, 1
      %p132 = por %p130, %p131
      %p133 = scmp.ne.s32.totalorder %s124, %s125
      %p134 = scmp.eq.s32.totalorder %s30, 0
      %p135 = por %p133, %p134
      %p136 = scmp.ne.s32.totalorder %s124, %s125
      %p137 = scmp.eq.s32.totalorder %s31, 1
      %p138 = por %p136, %p137
      %p140 = scmp.ne.s32.totalorder %s125, %s139
      %p141 = scmp.eq.s32.totalorder %s31, 0
      %p142 = por %p140, %p141
      %s144 = sadd.s32 %s143, 1
      %p147 = scmp.eq.s32.totalorder %s25, 1
      %p148 = scmp.ne.s32.totalorder %s143, %s145
      %p149 = scmp.eq.s32.totalorder %s25, 0
      %p150 = por %p148, %p149
      %p151 = scmp.ne.s32.totalorder %s143, %s145
      %p152 = scmp.eq.s32.totalorder %s30, 1
      %p153 = por %p151, %p152
      %p154 = scmp.ne.s32.totalorder %s145, %s146
      %p155 = scmp.eq.s32.totalorder %s30, 0
      %p156 = por %p154, %p155
      %p157 = scmp.ne.s32.totalorder %s145, %s146
      %p158 = scmp.eq.s32.totalorder %s31, 1
      %p159 = por %p157, %p158
      %p161 = scmp.ne.s32.totalorder %s146, %s160
      %p162 = scmp.eq.s32.totalorder %s31, 0
      %p163 = por %p161, %p162
      %s165 = sadd.s32 %s164, 1
      %p168 = scmp.eq.s32.totalorder %s25, 1
      %p169 = scmp.ne.s32.totalorder %s164, %s166
      %p170 = scmp.eq.s32.totalorder %s25, 0
      %p171 = por %p169, %p170
      %p172 = scmp.ne.s32.totalorder %s164, %s166
      %p173 = scmp.eq.s32.totalorder %s30, 1
      %p174 = por %p172, %p173
      %p175 = scmp.ne.s32.totalorder %s166, %s167
      %p176 = scmp.eq.s32.totalorder %s30, 0
      %p177 = por %p175, %p176
      %p178 = scmp.ne.s32.totalorder %s166, %s167
      %p179 = scmp.eq.s32.totalorder %s31, 1
      %p180 = por %p178, %p179
      %p182 = scmp.ne.s32.totalorder %s167, %s181
      %p183 = scmp.eq.s32.totalorder %s31, 0
      %p184 = por %p182, %p183
      %s186 = sadd.s32 %s185, 1
      %p189 = scmp.eq.s32.totalorder %s25, 1
      %p190 = scmp.ne.s32.totalorder %s185, %s187
      %p191 = scmp.eq.s32.totalorder %s25, 0
      %p192 = por %p190, %p191
      %p193 = scmp.ne.s32.totalorder %s185, %s187
      %p194 = scmp.eq.s32.totalorder %s30, 1
      %p195 = por %p193, %p194
      %p196 = scmp.ne.s32.totalorder %s187, %s188
      %p197 = scmp.eq.s32.totalorder %s30, 0
      %p198 = por %p196, %p197
      %p199 = scmp.ne.s32.totalorder %s187, %s188
      %p200 = scmp.eq.s32.totalorder %s31, 1
      %p201 = por %p199, %p200
      %p203 = scmp.ne.s32.totalorder %s188, %s202
      %p204 = scmp.eq.s32.totalorder %s31, 0
      %p205 = por %p203, %p204
      %s207 = sadd.s32 %s206, 1
      %p210 = scmp.eq.s32.totalorder %s25, 1
      %p211 = scmp.ne.s32.totalorder %s206, %s208
      %p212 = scmp.eq.s32.totalorder %s25, 0
      %p213 = por %p211, %p212
      %p214 = scmp.ne.s32.totalorder %s206, %s208
      %p215 = scmp.eq.s32.totalorder %s30, 1
      %p216 = por %p214, %p215
      %p217 = scmp.ne.s32.totalorder %s208, %s209
      %p218 = scmp.eq.s32.totalorder %s30, 0
      %p219 = por %p217, %p218
      %p220 = scmp.ne.s32.totalorder %s208, %s209
      %p221 = scmp.eq.s32.totalorder %s31, 1
      %p222 = por %p220, %p221
      %p224 = scmp.ne.s32.totalorder %s209, %s223
      %p225 = scmp.eq.s32.totalorder %s31, 0
      %p226 = por %p224, %p225
      %s228 = sadd.s32 %s227, 1
      %p231 = scmp.eq.s32.totalorder %s25, 1
      %p232 = scmp.ne.s32.totalorder %s227, %s229
      %p233 = scmp.eq.s32.totalorder %s25, 0
      %p234 = por %p232, %p233
      %p235 = scmp.ne.s32.totalorder %s227, %s229
      %p236 = scmp.eq.s32.totalorder %s30, 1
      %p237 = por %p235, %p236
      %p238 = scmp.ne.s32.totalorder %s229, %s230
      %p239 = scmp.eq.s32.totalorder %s30, 0
      %p240 = por %p238, %p239
      %p241 = scmp.ne.s32.totalorder %s229, %s230
      %p242 = scmp.eq.s32.totalorder %s31, 1
      %p243 = por %p241, %p242
      %p245 = scmp.ne.s32.totalorder %s230, %s244
      %p246 = scmp.eq.s32.totalorder %s31, 0
      %p247 = por %p245, %p246
      %s249 = sadd.s32 %s248, 1
      %p252 = scmp.eq.s32.totalorder %s25, 1
      %p253 = scmp.ne.s32.totalorder %s248, %s250
      %p254 = scmp.eq.s32.totalorder %s25, 0
      %p255 = por %p253, %p254
      %p256 = scmp.ne.s32.totalorder %s248, %s250
      %p257 = scmp.eq.s32.totalorder %s30, 1
      %p258 = por %p256, %p257
      %p259 = scmp.ne.s32.totalorder %s250, %s251
      %p260 = scmp.eq.s32.totalorder %s30, 0
      %p261 = por %p259, %p260
      %p262 = scmp.ne.s32.totalorder %s250, %s251
      %p263 = scmp.eq.s32.totalorder %s31, 1
      %p264 = por %p262, %p263
      %p266 = scmp.ne.s32.totalorder %s251, %s265
      %p267 = scmp.eq.s32.totalorder %s31, 0
      %p268 = por %p266, %p267
      %s270 = sadd.s32 %s269, 1
      %p273 = scmp.eq.s32.totalorder %s25, 1
      %p274 = scmp.ne.s32.totalorder %s269, %s271
      %p275 = scmp.eq.s32.totalorder %s25, 0
      %p276 = por %p274, %p275
      %p277 = scmp.ne.s32.totalorder %s269, %s271
      %p278 = scmp.eq.s32.totalorder %s30, 1
      %p279 = por %p277, %p278
      %p280 = scmp.ne.s32.totalorder %s271, %s272
      %p281 = scmp.eq.s32.totalorder %s30, 0
      %p282 = por %p280, %p281
      %p283 = scmp.ne.s32.totalorder %s271, %s272
      %p284 = scmp.eq.s32.totalorder %s31, 1
      %p285 = por %p283, %p284
      %p287 = scmp.ne.s32.totalorder %s272, %s286
      %p288 = scmp.eq.s32.totalorder %s31, 0
      %p289 = por %p287, %p288
      %s291 = sadd.s32 %s290, 1
      %p294 = scmp.eq.s32.totalorder %s25, 1
      %p295 = scmp.ne.s32.totalorder %s290, %s292
      %p296 = scmp.eq.s32.totalorder %s25, 0
      %p297 = por %p295, %p296
      %p298 = scmp.ne.s32.totalorder %s290, %s292
      %p299 = scmp.eq.s32.totalorder %s30, 1
      %p300 = por %p298, %p299
      %p301 = scmp.ne.s32.totalorder %s292, %s293
      %p302 = scmp.eq.s32.totalorder %s30, 0
      %p303 = por %p301, %p302
      %p304 = scmp.ne.s32.totalorder %s292, %s293
      %p305 = scmp.eq.s32.totalorder %s31, 1
      %p306 = por %p304, %p305
      %p308 = scmp.ne.s32.totalorder %s293, %s307
      %p309 = scmp.eq.s32.totalorder %s31, 0
      %p310 = por %p308, %p309
      %s311 = ssub.s32 %s25, %s32
      %p312 = scmp.eq.s32.totalorder %s311, 0
      %s314 = sadd.s32 %s313, 1
      %s315 = scalar_select %p312, %s313, %s314
      %p318 = pneg %p312
      %p319 = scmp.eq.s32.totalorder %s25, 1
      %p320 = por %p318, %p319
      %p321 = scmp.ne.s32.totalorder %s313, %s316
      %p322 = scmp.eq.s32.totalorder %s25, 0
      %p323 = por %p321, %p322
      %p324 = scmp.ne.s32.totalorder %s313, %s316
      %p325 = scmp.eq.s32.totalorder %s30, 1
      %p326 = por %p324, %p325
      %p327 = scmp.ne.s32.totalorder %s316, %s317
      %p328 = scmp.eq.s32.totalorder %s30, 0
      %p329 = por %p327, %p328
      %p330 = scmp.ne.s32.totalorder %s316, %s317
      %p331 = scmp.eq.s32.totalorder %s31, 1
      %p332 = por %p330, %p331
      %p334 = scmp.ne.s32.totalorder %s317, %s333
      %p335 = scmp.eq.s32.totalorder %s31, 0
      %p336 = por %p334, %p335
      %p337 = scmp.le.s32.totalorder 1, %s25
      %p338 = scmp.lt.s32.totalorder %s25, 3
      %p339 = pnand %p337, %p338
      %p340 = pneg %p339
      // Predicated region
      $region9: #{tpu_custom_call.1} parent=5 // pred_check
        _
      $region10: #{tpu_custom_call.1} parent=5 // pred_check_branch
        %342 = sbr.rel (%p339) target = $region12
      $region11: #{tpu_custom_call.1} parent=5 // pred_region
        %s343 = ssub.s32 %s25, 1
        // Predicated region
        $region13: #{tpu_custom_call.1} parent=11 // pred_check
          %p344 = pneg %p72
        $region14: #{tpu_custom_call.1} parent=11 // pred_check_branch
          %346 = sbr.rel (%p344) target = $region16
        $region15: #{tpu_custom_call.1} parent=11 // pred_region
          _
        $region16: #{tpu_custom_call.1} parent=11 // pred_fallthru
          _
        // Predicated region
        $region17: #{tpu_custom_call.1} parent=11 // pred_check
          %p347 = pneg %p93
        $region18: #{tpu_custom_call.1} parent=11 // pred_check_branch
          %349 = sbr.rel (%p347) target = $region20
        $region19: #{tpu_custom_call.1} parent=11 // pred_region
          _
        $region20: #{tpu_custom_call.1} parent=11 // pred_fallthru
          _
        // Predicated region
        $region21: #{tpu_custom_call.1} parent=11 // pred_check
          %p350 = pneg %p114
        $region22: #{tpu_custom_call.1} parent=11 // pred_check_branch
          %352 = sbr.rel (%p350) target = $region24
        $region23: #{tpu_custom_call.1} parent=11 // pred_region
          _
        $region24: #{tpu_custom_call.1} parent=11 // pred_fallthru
          _
        // Predicated region
        $region25: #{tpu_custom_call.1} parent=11 // pred_check
          %p353 = pneg %p135
        $region26: #{tpu_custom_call.1} parent=11 // pred_check_branch
          %355 = sbr.rel (%p353) target = $region28
        $region27: #{tpu_custom_call.1} parent=11 // pred_region
          %s357 = ssub.s32 32, 32
          %358 = vsyncadd [#allocation3], %s357
          %s359 = sshll.u32 [#allocation2], 4
          %s360 = int_to_ptr.vmem [resolvable:$true] %s359
          %365 = dma.hbm_to_vmem [thread:$0]  %s4, 32, %s360, [#allocation3], 16, 16, 1
        $region28: #{tpu_custom_call.1} parent=11 // pred_fallthru
          _
        // Predicated region
        $region29: #{tpu_custom_call.1} parent=11 // pred_check
          %p366 = pneg %p156
        $region30: #{tpu_custom_call.1} parent=11 // pred_check_branch
          %368 = sbr.rel (%p366) target = $region32
        $region31: #{tpu_custom_call.1} parent=11 // pred_region
          %s370 = ssub.s32 32, 32
          %371 = vsyncadd [#allocation6], %s370
          %s372 = sshll.u32 [#allocation5], 4
          %s373 = int_to_ptr.vmem [resolvable:$true] %s372
          %378 = dma.hbm_to_vmem [thread:$0]  %s5, 32, %s373, [#allocation6], 16, 16, 1
        $region32: #{tpu_custom_call.1} parent=11 // pred_fallthru
          _
        // Predicated region
        $region33: #{tpu_custom_call.1} parent=11 // pred_check
          %p379 = pneg %p177
        $region34: #{tpu_custom_call.1} parent=11 // pred_check_branch
          %381 = sbr.rel (%p379) target = $region36
        $region35: #{tpu_custom_call.1} parent=11 // pred_region
          %s383 = ssub.s32 32, 32
          %384 = vsyncadd [#allocation6], %s383
          %s385 = sshll.u32 [#allocation7], 4
          %s386 = int_to_ptr.vmem [resolvable:$true] %s385
          %391 = dma.hbm_to_vmem [thread:$0]  %s6, 32, %s386, [#allocation6], 16, 16, 1
        $region36: #{tpu_custom_call.1} parent=11 // pred_fallthru
          _
        // Predicated region
        $region37: #{tpu_custom_call.1} parent=11 // pred_check
          %p392 = pneg %p198
        $region38: #{tpu_custom_call.1} parent=11 // pred_check_branch
          %394 = sbr.rel (%p392) target = $region40
        $region39: #{tpu_custom_call.1} parent=11 // pred_region
          _
        $region40: #{tpu_custom_call.1} parent=11 // pred_fallthru
          _
        // Predicated region
        $region41: #{tpu_custom_call.1} parent=11 // pred_check
          %p395 = pneg %p219
        $region42: #{tpu_custom_call.1} parent=11 // pred_check_branch
          %397 = sbr.rel (%p395) target = $region44
        $region43: #{tpu_custom_call.1} parent=11 // pred_region
          _
        $region44: #{tpu_custom_call.1} parent=11 // pred_fallthru
          _
        // Predicated region
        $region45: #{tpu_custom_call.1} parent=11 // pred_check
          %p398 = pneg %p240
        $region46: #{tpu_custom_call.1} parent=11 // pred_check_branch
          %400 = sbr.rel (%p398) target = $region48
        $region47: #{tpu_custom_call.1} parent=11 // pred_region
          %s402 = ssub.s32 16, 16
          %403 = vsyncadd [#allocation9], %s402
          %s405 = sshll.u32 [#allocation8], 4
          %s406 = int_to_ptr.vmem [resolvable:$true] %s405
          %408 = dma.hbm_to_vmem [thread:$0]  %s9, 16, %s406, [#allocation9]
        $region48: #{tpu_custom_call.1} parent=11 // pred_fallthru
          _
        // Predicated region
        $region49: #{tpu_custom_call.1} parent=11 // pred_check
          %p409 = pneg %p261
        $region50: #{tpu_custom_call.1} parent=11 // pred_check_branch
          %411 = sbr.rel (%p409) target = $region52
        $region51: #{tpu_custom_call.1} parent=11 // pred_region
          _
        $region52: #{tpu_custom_call.1} parent=11 // pred_fallthru
          _
        // Predicated region
        $region53: #{tpu_custom_call.1} parent=11 // pred_check
          %p412 = pneg %p282
        $region54: #{tpu_custom_call.1} parent=11 // pred_check_branch
          %414 = sbr.rel (%p412) target = $region56
        $region55: #{tpu_custom_call.1} parent=11 // pred_region
          _
        $region56: #{tpu_custom_call.1} parent=11 // pred_fallthru
          _
        // Predicated region
        $region57: #{tpu_custom_call.1} parent=11 // pred_check
          %p415 = pneg %p303
        $region58: #{tpu_custom_call.1} parent=11 // pred_check_branch
          %417 = sbr.rel (%p415) target = $region60
        $region59: #{tpu_custom_call.1} parent=11 // pred_region
          _
        $region60: #{tpu_custom_call.1} parent=11 // pred_fallthru
          _
      $region12: #{tpu_custom_call.1} parent=5 // pred_fallthru
        _
      %p418 = scmp.lt.s32.totalorder %s25, 2
      // Predicated region
      $region61: #{tpu_custom_call.1} parent=5 // pred_check
        %p419 = pneg %p418
      $region62: #{tpu_custom_call.1} parent=5 // pred_check_branch
        %421 = sbr.rel (%p419) target = $region64
      $region63: #{tpu_custom_call.1} parent=5 // pred_region
        // Predicated region
        $region65: #{tpu_custom_call.1} parent=63 // pred_check
          %p422 = pneg %p45
        $region66: #{tpu_custom_call.1} parent=63 // pred_check_branch
          %424 = sbr.rel (%p422) target = $region68
        $region67: #{tpu_custom_call.1} parent=63 // pred_region
          %p425 = scmp.lt.s32.totalorder %s25, 1
          %s426 = scalar_select %p425, %s25, 1
          %s427 = smul.addr %s426, 8
          %s428 = scalar_lea.vmem %s0, %s427
        $region68: #{tpu_custom_call.1} parent=63 // pred_fallthru
          _
      $region64: #{tpu_custom_call.1} parent=5 // pred_fallthru
        _
      %p429 = scmp.le.s32.totalorder 1, %s25
      %p430 = scmp.lt.s32.totalorder %s25, 3
      %p431 = pnand %p429, %p430
      %p432 = pneg %p431
      // Predicated region
      $region69: #{tpu_custom_call.1} parent=5 // pred_check
        _
      $region70: #{tpu_custom_call.1} parent=5 // pred_check_branch
        %434 = sbr.rel (%p431) target = $region72
      $region71: #{tpu_custom_call.1} parent=5 // pred_region
        %s435 = ssub.s32 %s25, 1
        // Predicated region
        $region73: #{tpu_custom_call.1} parent=71 // pred_check
          %p436 = pneg %p135
        $region74: #{tpu_custom_call.1} parent=71 // pred_check_branch
          %438 = sbr.rel (%p436) target = $region76
        $region75: #{tpu_custom_call.1} parent=71 // pred_region
          %439 = dma.done [#allocation3], 32
        $region76: #{tpu_custom_call.1} parent=71 // pred_fallthru
          _
        // Predicated region
        $region77: #{tpu_custom_call.1} parent=71 // pred_check
          %p440 = pneg %p156
        $region78: #{tpu_custom_call.1} parent=71 // pred_check_branch
          %442 = sbr.rel (%p440) target = $region80
        $region79: #{tpu_custom_call.1} parent=71 // pred_region
          %443 = dma.done [#allocation6], 32
        $region80: #{tpu_custom_call.1} parent=71 // pred_fallthru
          _
        // Predicated region
        $region81: #{tpu_custom_call.1} parent=71 // pred_check
          %p444 = pneg %p177
        $region82: #{tpu_custom_call.1} parent=71 // pred_check_branch
          %446 = sbr.rel (%p444) target = $region84
        $region83: #{tpu_custom_call.1} parent=71 // pred_region
          %447 = dma.done [#allocation6], 32
        $region84: #{tpu_custom_call.1} parent=71 // pred_fallthru
          _
        // Predicated region
        $region85: #{tpu_custom_call.1} parent=71 // pred_check
          %p448 = pneg %p240
        $region86: #{tpu_custom_call.1} parent=71 // pred_check_branch
          %450 = sbr.rel (%p448) target = $region88
        $region87: #{tpu_custom_call.1} parent=71 // pred_region
          %451 = dma.done [#allocation9], 16
        $region88: #{tpu_custom_call.1} parent=71 // pred_fallthru
          _
        %p452 = scmp.lt.s32.totalorder %s30, 1
        %s453 = scalar_select %p452, %s30, 1
        %s454 = smul.addr %s453, 8
        %s455 = scalar_lea.vmem %s0, %s454
        %p456 = pneg %p51
        %p457 = pneg %p48
        %p458 = pneg %p72
        %p459 = pneg %p69
        %p460 = pneg %p93
        %p461 = pneg %p90
        %p462 = pneg %p114
        %p463 = pneg %p111
        %p464 = pneg %p135
        %p465 = pneg %p132
        %p466 = pneg %p156
        %p467 = pneg %p153
        %p468 = pneg %p177
        %p469 = pneg %p174
        %p470 = pneg %p198
        %p471 = pneg %p195
        %p472 = pneg %p219
        %p473 = pneg %p216
        %p474 = pneg %p240
        %p475 = pneg %p237
        %p476 = pneg %p261
        %p477 = pneg %p258
        %p478 = pneg %p282
        %p479 = pneg %p279
        %p480 = pneg %p303
        %p481 = pneg %p300
        %p482 = pneg %p329
        %p483 = pneg %p326
        %s484 = sand.u32 %s316, 1
        %s485 = scalar_lea.sflag [#allocation4], %s484
        %s486 = sand.u32 %s316, 1
        %s487 = smul.addr %s486, 16
        %s488 = scalar_lea.vmem [#allocation10], %s487
        %p489 = scmp.lt.s32.totalorder %s30, 1
        %s490 = scalar_select %p489, %s30, 1
        %s491 = smul.addr %s490, 8
        %s492 = scalar_lea.vmem %s0, %s491
        %v494 = vld [vmem:[%s492] sm:$0xff]
        %v495 = vlaneseq
        %v496 = vand.u32 %v495, 127
        %v497 = vadd.s32 %v496, 128
        %498 = vset.pattern.permute.xlu0 0
        %499 = vperm.xlu0 %498, %v494
        %v500 = vpop.permute.xlu0 %499
        %vm501 = vcmp.eq.s32.totalorder %v500, %v496
        %vm502 = vcmp.eq.s32.totalorder %v500, %v497
        %v503 = vsel %vm501, 1, 0
        %v504 = vsel %vm502, 1, 0
        %v505 = vcvt.s32.f32 %v503
        %v506 = vcvt.s32.f32 %v504
        %v507 = vld [vmem:[%s1] sm:$0xff]
        %v508 = vld [vmem:[%s1 + $0x8] sm:$0xff]
        %v509 = vld [vmem:[%s1 + $0x10] sm:$0xff]
        %v510 = vld [vmem:[%s1 + $0x18] sm:$0xff]
        %v511 = vld [vmem:[%s1 + $0x20] sm:$0xff]
        %v512 = vld [vmem:[%s1 + $0x28] sm:$0xff]
        %v513 = vld [vmem:[%s1 + $0x30] sm:$0xff]
        %v514 = vld [vmem:[%s1 + $0x38] sm:$0xff]
        %v515 = vld [vmem:[%s1 + $0x40] sm:$0xff]
        %v516 = vld [vmem:[%s1 + $0x48] sm:$0xff]
        %v517 = vld [vmem:[%s1 + $0x50] sm:$0xff]
        %v518 = vld [vmem:[%s1 + $0x58] sm:$0xff]
        %v519 = vld [vmem:[%s1 + $0x60] sm:$0xff]
        %v520 = vld [vmem:[%s1 + $0x68] sm:$0xff]
        %v521 = vld [vmem:[%s1 + $0x70] sm:$0xff]
        %v522 = vld [vmem:[%s1 + $0x78] sm:$0xff]
        %v523 = vld [vmem:[%s1 + $0x80] sm:$0xff]
        %v524 = vld [vmem:[%s1 + $0x88] sm:$0xff]
        %v525 = vld [vmem:[%s1 + $0x90] sm:$0xff]
        %v526 = vld [vmem:[%s1 + $0x98] sm:$0xff]
        %v527 = vld [vmem:[%s1 + $0xa0] sm:$0xff]
        %v528 = vld [vmem:[%s1 + $0xa8] sm:$0xff]
        %v529 = vld [vmem:[%s1 + $0xb0] sm:$0xff]
        %v530 = vld [vmem:[%s1 + $0xb8] sm:$0xff]
        %v531 = vld [vmem:[%s1 + $0xc0] sm:$0xff]
        %v532 = vld [vmem:[%s1 + $0xc8] sm:$0xff]
        %v533 = vld [vmem:[%s1 + $0xd0] sm:$0xff]
        %v534 = vld [vmem:[%s1 + $0xd8] sm:$0xff]
        %v535 = vld [vmem:[%s1 + $0xe0] sm:$0xff]
        %v536 = vld [vmem:[%s1 + $0xe8] sm:$0xff]
        %v537 = vld [vmem:[%s1 + $0xf0] sm:$0xff]
        %v538 = vld [vmem:[%s1 + $0xf8] sm:$0xff]
        %539 = vmatprep.subr.mxu0 0.0
        %540 = vmatpush1.msra.mxu0 %v522
        %541 = vmatprep.subr.mxu0 0.0
        %542 = vmatpush1.msra.mxu0 %v521
        %543 = vmatprep.subr.mxu0 0.0
        %544 = vmatpush1.msra.mxu0 %v520
        %545 = vmatprep.subr.mxu0 0.0
        %546 = vmatpush1.msra.mxu0 %v519
        %547 = vmatprep.subr.mxu0 0.0
        %548 = vmatpush1.msra.mxu0 %v518
        %549 = vmatprep.subr.mxu0 0.0
        %550 = vmatpush1.msra.mxu0 %v517
        %551 = vmatprep.subr.mxu0 0.0
        %552 = vmatpush1.msra.mxu0 %v516
        %553 = vmatprep.subr.mxu0 0.0
        %554 = vmatpush1.msra.mxu0 %v515
        %555 = vmatprep.subr.mxu0 0.0
        %556 = vmatpush1.msra.mxu0 %v514
        %557 = vmatprep.subr.mxu0 0.0
        %558 = vmatpush1.msra.mxu0 %v513
        %559 = vmatprep.subr.mxu0 0.0
        %560 = vmatpush1.msra.mxu0 %v512
        %561 = vmatprep.subr.mxu0 0.0
        %562 = vmatpush1.msra.mxu0 %v511
        %563 = vmatprep.subr.mxu0 0.0
        %564 = vmatpush1.msra.mxu0 %v510
        %565 = vmatprep.subr.mxu0 0.0
        %566 = vmatpush1.msra.mxu0 %v509
        %567 = vmatprep.subr.mxu0 0.0
        %568 = vmatpush1.msra.mxu0 %v508
        %569 = vmatprep.subr.mxu0 0.0
        %570 = vmatpush1.msra.mxu0 %v507
        %571 = vmatprep.subr.mxu0 0.0
        %572 = vmatpush2.msra.mxu0 %v538
        %573 = vmatprep.subr.mxu0 0.0
        %574 = vmatpush2.msra.mxu0 %v537
        %575 = vmatprep.subr.mxu0 0.0
        %576 = vmatpush2.msra.mxu0 %v536
        %577 = vmatprep.subr.mxu0 0.0
        %578 = vmatpush2.msra.mxu0 %v535
        %579 = vmatprep.subr.mxu0 0.0
        %580 = vmatpush2.msra.mxu0 %v534
        %581 = vmatprep.subr.mxu0 0.0
        %582 = vmatpush2.msra.mxu0 %v533
        %583 = vmatprep.subr.mxu0 0.0
        %584 = vmatpush2.msra.mxu0 %v532
        %585 = vmatprep.subr.mxu0 0.0
        %586 = vmatpush2.msra.mxu0 %v531
        %587 = vmatprep.subr.mxu0 0.0
        %588 = vmatpush2.msra.mxu0 %v530
        %589 = vmatprep.subr.mxu0 0.0
        %590 = vmatpush2.msra.mxu0 %v529
        %591 = vmatprep.subr.mxu0 0.0
        %592 = vmatpush2.msra.mxu0 %v528
        %593 = vmatprep.subr.mxu0 0.0
        %594 = vmatpush2.msra.mxu0 %v527
        %595 = vmatprep.subr.mxu0 0.0
        %596 = vmatpush2.msra.mxu0 %v526
        %597 = vmatprep.subr.mxu0 0.0
        %598 = vmatpush2.msra.mxu0 %v525
        %599 = vmatprep.subr.mxu0 0.0
        %600 = vmatpush2.msra.mxu0 %v524
        %601 = vmatprep.subr.mxu0 0.0
        %602 = vmatpush2.msra.mxu0 %v523
        %603 = vmatprep.mubr.f32.mxu0 %v506
        %604 = vmatmul.mubr.f32.gmra.mxu0 %v505
        %v605 = vpop.f32.mrf.mxu0
        %v606 = vadd.f32 0.0, %v605
        %v607 = vpop.f32.mrf.mxu0
        %608 = vdwg.mxu0
        %v609 = vld [vmem:[%s11] sm:$0xff]
        %v610 = vld [vmem:[%s12] sm:$0xff]
        %v611 = vlaneseq
        %v612 = vshrl.u32 %v611, 7
        %vm613 = vcmp.ge.s32.totalorder %v612, %v496
        %v614 = vsel %vm613, 0.0, -1e+30
        %v615 = vld [vmem:[#allocation5] sm:$0x1]
        %v616 = vmul.f32 %v606, %v606
        %vm617 = vcmask 523264
        %v618 = vsel %vm617, %v616, 0.0
        %619 = vadd.xlane.f32.xlu0 %v618
        %v620 = vpop.xlane.xlu0 %619
        %v621 = vrcp.pop 64.0
        %v622 = vmul.f32 %v620, %v621
        %v623 = vadd.f32 %v622, 1e-07
        %v624 = vrsqrt.pop %v623
        %v625 = vmul.f32 %v606, %v624
        %v627 = vlaneseq
        %v628 = vshrl.u32 %v627, 7
        %v629 = vsub.s32 0, %v628
        %v630 = vrot.slane %v615, %v629
        %v632 = vmul.f32 %v625, %v630
        %v633 = vpack.c.bf16 %v632, %v632
        %v634 = vld [vmem:[%s2] sm:$0xff]
        %v635 = vld [vmem:[%s2 + $0x8] sm:$0xf]
        %v636 = vld [vmem:[%s2 + $0xc] sm:$0xff]
        %v637 = vld [vmem:[%s2 + $0x14] sm:$0xf]
        %v638 = vld [vmem:[%s2 + $0x18] sm:$0xff]
        %v639 = vld [vmem:[%s2 + $0x20] sm:$0xf]
        %v640 = vld [vmem:[%s2 + $0x24] sm:$0xff]
        %v641 = vld [vmem:[%s2 + $0x2c] sm:$0xf]
        %v642 = vld [vmem:[%s2 + $0x30] sm:$0xff]
        %v643 = vld [vmem:[%s2 + $0x38] sm:$0xf]
        %v644 = vld [vmem:[%s2 + $0x3c] sm:$0xff]
        %v645 = vld [vmem:[%s2 + $0x44] sm:$0xf]
        %v646 = vld [vmem:[%s2 + $0x48] sm:$0xff]
        %v647 = vld [vmem:[%s2 + $0x50] sm:$0xf]
        %v648 = vld [vmem:[%s2 + $0x54] sm:$0xff]
        %v649 = vld [vmem:[%s2 + $0x5c] sm:$0xf]
        %v666 = vunpack.c.l.b16 %v634
        %v667 = vunpack.c.h.b16 %v634
        %v668 = vunpack.c.l.b16 %v635
        %v669 = vunpack.c.l.b16 %v636
        %v670 = vunpack.c.h.b16 %v636
        %v671 = vunpack.c.l.b16 %v637
        %v672 = vunpack.c.l.b16 %v638
        %v673 = vunpack.c.h.b16 %v638
        %v674 = vunpack.c.l.b16 %v639
        %v675 = vunpack.c.l.b16 %v640
        %v676 = vunpack.c.h.b16 %v640
        %v677 = vunpack.c.l.b16 %v641
        %v678 = vunpack.c.l.b16 %v642
        %v679 = vunpack.c.h.b16 %v642
        %v680 = vunpack.c.l.b16 %v643
        %v681 = vunpack.c.l.b16 %v644
        %v682 = vunpack.c.h.b16 %v644
        %v683 = vunpack.c.l.b16 %v645
        %v684 = vunpack.c.l.b16 %v646
        %v685 = vunpack.c.h.b16 %v646
        %v686 = vunpack.c.l.b16 %v647
        %v687 = vunpack.c.l.b16 %v648
        %v688 = vunpack.c.h.b16 %v648
        %v689 = vunpack.c.l.b16 %v649
        %v690 = vpack.c.b16 %v669, %v666
        %v691 = vpack.c.b16 %v670, %v667
        %v692 = vpack.c.b16 %v671, %v668
        %v693 = vpack.c.b16 %v675, %v672
        %v694 = vpack.c.b16 %v676, %v673
        %v695 = vpack.c.b16 %v677, %v674
        %v696 = vpack.c.b16 %v681, %v678
        %v697 = vpack.c.b16 %v682, %v679
        %v698 = vpack.c.b16 %v683, %v680
        %v699 = vpack.c.b16 %v687, %v684
        %v700 = vpack.c.b16 %v688, %v685
        %v701 = vpack.c.b16 %v689, %v686
        %v715 = vsel %vm617, %v633, 0
        %717 = vmatprep.subr.bf16.mxu0 0
        %718 = vmatpush1.bf16.msra.mxu0 0
        %719 = vmatprep.subr.bf16.mxu0 0
        %720 = vmatpush1.bf16.msra.mxu0 0
        %721 = vmatprep.subr.bf16.mxu0 0
        %722 = vmatpush1.bf16.msra.mxu0 0
        %723 = vmatprep.subr.bf16.mxu0 0
        %724 = vmatpush1.bf16.msra.mxu0 0
        %725 = vmatprep.subr.bf16.mxu0 %v700
        %726 = vmatpush1.bf16.msra.mxu0 %v699
        %727 = vmatprep.subr.bf16.mxu0 %v697
        %728 = vmatpush1.bf16.msra.mxu0 %v696
        %729 = vmatprep.subr.bf16.mxu0 %v694
        %730 = vmatpush1.bf16.msra.mxu0 %v693
        %731 = vmatprep.subr.bf16.mxu0 %v691
        %732 = vmatpush1.bf16.msra.mxu0 %v690
        %733 = vmatprep.subr.bf16.mxu0 0
        %734 = vmatpush2.bf16.msra.mxu0 0
        %735 = vmatprep.subr.bf16.mxu0 0
        %736 = vmatpush2.bf16.msra.mxu0 0
        %737 = vmatprep.subr.bf16.mxu0 0
        %738 = vmatpush2.bf16.msra.mxu0 0
        %739 = vmatprep.subr.bf16.mxu0 0
        %740 = vmatpush2.bf16.msra.mxu0 0
        %741 = vmatprep.subr.bf16.mxu0 0
        %742 = vmatpush2.bf16.msra.mxu0 0
        %743 = vmatprep.subr.bf16.mxu0 0
        %744 = vmatpush2.bf16.msra.mxu0 0
        %745 = vmatprep.subr.bf16.mxu0 0
        %746 = vmatpush2.bf16.msra.mxu0 0
        %747 = vmatprep.subr.bf16.mxu0 0
        %748 = vmatpush2.bf16.msra.mxu0 0
        %749 = vmatprep.mubr.bf16.mxu0 0
        %750 = vmatmul.mubr.bf16.gmra.mxu0 %v715
        %v751 = vpop.f32.mrf.mxu0
        %v752 = vadd.f32 0.0, %v751
        %v753 = vpop.f32.mrf.mxu0
        %v754 = vadd.f32 0.0, %v753
        %v755 = vpop.f32.mrf.mxu0
        %v756 = vpop.f32.mrf.mxu0
        %757 = vdwg.mxu0
        %758 = vmatprep.subr.bf16.mxu0 0
        %759 = vmatpush1.bf16.msra.mxu0 0
        %760 = vmatprep.subr.bf16.mxu0 0
        %761 = vmatpush1.bf16.msra.mxu0 0
        %762 = vmatprep.subr.bf16.mxu0 0
        %763 = vmatpush1.bf16.msra.mxu0 0
        %764 = vmatprep.subr.bf16.mxu0 0
        %765 = vmatpush1.bf16.msra.mxu0 0
        %766 = vmatprep.subr.bf16.mxu0 0
        %767 = vmatpush1.bf16.msra.mxu0 %v701
        %768 = vmatprep.subr.bf16.mxu0 0
        %769 = vmatpush1.bf16.msra.mxu0 %v698
        %770 = vmatprep.subr.bf16.mxu0 0
        %771 = vmatpush1.bf16.msra.mxu0 %v695
        %772 = vmatprep.subr.bf16.mxu0 0
        %773 = vmatpush1.bf16.msra.mxu0 %v692
        %774 = vmatprep.subr.bf16.mxu0 0
        %775 = vmatpush2.bf16.msra.mxu0 0
        %776 = vmatprep.subr.bf16.mxu0 0
        %777 = vmatpush2.bf16.msra.mxu0 0
        %778 = vmatprep.subr.bf16.mxu0 0
        %779 = vmatpush2.bf16.msra.mxu0 0
        %780 = vmatprep.subr.bf16.mxu0 0
        %781 = vmatpush2.bf16.msra.mxu0 0
        %782 = vmatprep.subr.bf16.mxu0 0
        %783 = vmatpush2.bf16.msra.mxu0 0
        %784 = vmatprep.subr.bf16.mxu0 0
        %785 = vmatpush2.bf16.msra.mxu0 0
        %786 = vmatprep.subr.bf16.mxu0 0
        %787 = vmatpush2.bf16.msra.mxu0 0
        %788 = vmatprep.subr.bf16.mxu0 0
        %789 = vmatpush2.bf16.msra.mxu0 0
        %790 = vmatprep.mubr.bf16.mxu0 0
        %791 = vmatmul.mubr.bf16.gmra.mxu0 %v715
        %v792 = vpop.f32.mrf.mxu0
        %v793 = vadd.f32 0.0, %v792
        %v794 = vpop.f32.mrf.mxu0
        %v795 = vpop.f32.mrf.mxu0
        %v796 = vpop.f32.mrf.mxu0
        %797 = vdwg.mxu0
        %v798 = vmul.f32 %v752, %v609
        %800 = vrot.lane.b32.xlu0 %v610, 64
        %v801 = vpop.permute.xlu0 %800
        %v803 = vmul.f32 %v752, %v801
        %805 = vrot.lane.b32.xlu0 %v803, 64
        %v806 = vpop.permute.xlu0 %805
        %v808 = vadd.f32 %v798, %v806
        %v809 = vmul.f32 %v754, %v609
        %v810 = vmul.f32 %v754, %v801
        %812 = vrot.lane.b32.xlu0 %v810, 64
        %v813 = vpop.permute.xlu0 %812
        %v815 = vadd.f32 %v809, %v813
        %v816 = vpack.c.bf16 %v808, %v808
        %v817 = vpack.c.bf16 %v815, %v815
        %v818 = vpack.c.bf16 %v793, %v793
        %vm819 = vcmask 130048
        %v821 = vsel %vm819, %v816, 0
        %v824 = vsel %vm819, %v817, 0
        %826 = vmatprep.subr.bf16.mxu0 0
        %827 = vmatpush1.bf16.xpose.msra.mxu0 0
        %828 = vmatprep.subr.bf16.mxu0 0
        %829 = vmatpush1.bf16.xpose.msra.mxu0 0
        %830 = vmatprep.subr.bf16.mxu0 0
        %831 = vmatpush1.bf16.xpose.msra.mxu0 0
        %832 = vmatprep.subr.bf16.mxu0 0
        %833 = vmatpush1.bf16.xpose.msra.mxu0 0
        %834 = vmatprep.subr.bf16.mxu0 0
        %835 = vmatpush1.bf16.xpose.msra.mxu0 0
        %836 = vmatprep.subr.bf16.mxu0 0
        %837 = vmatpush1.bf16.xpose.msra.mxu0 0
        %838 = vmatprep.subr.bf16.mxu0 0
        %839 = vmatpush1.bf16.xpose.msra.mxu0 0
        %840 = vmatprep.subr.bf16.mxu0 0
        %841 = vmatpush1.bf16.xpose.msra.mxu0 %v824
        %842 = vmatprep.subr.bf16.mxu0 0
        %843 = vmatpush2.bf16.xpose.msra.mxu0 0
        %844 = vmatprep.subr.bf16.mxu0 0
        %845 = vmatpush2.bf16.xpose.msra.mxu0 0
        %846 = vmatprep.subr.bf16.mxu0 0
        %847 = vmatpush2.bf16.xpose.msra.mxu0 0
        %848 = vmatprep.subr.bf16.mxu0 0
        %849 = vmatpush2.bf16.xpose.msra.mxu0 0
        %850 = vmatprep.subr.bf16.mxu0 0
        %851 = vmatpush2.bf16.xpose.msra.mxu0 0
        %852 = vmatprep.subr.bf16.mxu0 0
        %853 = vmatpush2.bf16.xpose.msra.mxu0 0
        %854 = vmatprep.subr.bf16.mxu0 0
        %855 = vmatpush2.bf16.xpose.msra.mxu0 0
        %856 = vmatprep.subr.bf16.mxu0 0
        %857 = vmatpush2.bf16.xpose.msra.mxu0 0
        %858 = vmatprep.mubr.bf16.mxu0 0
        %859 = vmatmul.mubr.bf16.gmra.mxu0 %v821
        %v860 = vpop.f32.mrf.mxu0
        %v861 = vadd.f32 %v614, %v860
        %v862 = vpop.f32.mrf.mxu0
        %v863 = vpop.f32.mrf.mxu0
        %v864 = vpop.f32.mrf.mxu0
        %865 = vdwg.mxu0
        %vm866 = vcmask 64512
        %v867 = vsel %vm866, %v861, -inf
        %868 = vmax.xlane.f32.xlu0 %v867
        %v869 = vpop.xlane.xlu0 %868
        %v870 = vsub.f32 %v861, %v869
        %v871 = vmul.f32 %v870, 1.442695
        %v872 = vpow.pop %v871
        %v873 = vsel %vm866, %v872, 0.0
        %874 = vadd.xlane.f32.xlu0 %v873
        %v875 = vpop.xlane.xlu0 %874
        %v876 = vrcp.pop %v875
        %v877 = vmul.f32 %v872, %v876
        %v878 = vpack.c.bf16 %v877, %v877
        %v880 = vsel %vm866, %v878, 0
        %vm882 = vcmask 1043456
        %v884 = vsel %vm882, %v818, 0
        %886 = vmatprep.subr.bf16.mxu0 0
        %887 = vmatpush1.bf16.msra.mxu0 0
        %888 = vmatprep.subr.bf16.mxu0 0
        %889 = vmatpush1.bf16.msra.mxu0 0
        %890 = vmatprep.subr.bf16.mxu0 0
        %891 = vmatpush1.bf16.msra.mxu0 0
        %892 = vmatprep.subr.bf16.mxu0 0
        %893 = vmatpush1.bf16.msra.mxu0 0
        %894 = vmatprep.subr.bf16.mxu0 0
        %895 = vmatpush1.bf16.msra.mxu0 0
        %896 = vmatprep.subr.bf16.mxu0 0
        %897 = vmatpush1.bf16.msra.mxu0 0
        %898 = vmatprep.subr.bf16.mxu0 0
        %899 = vmatpush1.bf16.msra.mxu0 0
        %900 = vmatprep.subr.bf16.mxu0 0
        %901 = vmatpush1.bf16.msra.mxu0 %v884
        %902 = vmatprep.subr.bf16.mxu0 0
        %903 = vmatpush2.bf16.msra.mxu0 0
        %904 = vmatprep.subr.bf16.mxu0 0
        %905 = vmatpush2.bf16.msra.mxu0 0
        %906 = vmatprep.subr.bf16.mxu0 0
        %907 = vmatpush2.bf16.msra.mxu0 0
        %908 = vmatprep.subr.bf16.mxu0 0
        %909 = vmatpush2.bf16.msra.mxu0 0
        %910 = vmatprep.subr.bf16.mxu0 0
        %911 = vmatpush2.bf16.msra.mxu0 0
        %912 = vmatprep.subr.bf16.mxu0 0
        %913 = vmatpush2.bf16.msra.mxu0 0
        %914 = vmatprep.subr.bf16.mxu0 0
        %915 = vmatpush2.bf16.msra.mxu0 0
        %916 = vmatprep.subr.bf16.mxu0 0
        %917 = vmatpush2.bf16.msra.mxu0 0
        %918 = vmatprep.mubr.bf16.mxu0 0
        %919 = vmatmul.mubr.bf16.gmra.mxu0 %v880
        %v920 = vpop.f32.mrf.mxu0
        %v921 = vadd.f32 0.0, %v920
        %v922 = vpop.f32.mrf.mxu0
        %v923 = vpop.f32.mrf.mxu0
        %v924 = vpop.f32.mrf.mxu0
        %925 = vdwg.mxu0
        %927 = vrot.lane.b32.xlu0 %v816, 112
        %v928 = vpop.permute.xlu0 %927
        %930 = vrot.lane.b32.xlu0 %v817, 112
        %v931 = vpop.permute.xlu0 %930
        %v933 = vsel %vm819, %v928, 0
        %v936 = vsel %vm819, %v931, 0
        %938 = vmatprep.subr.bf16.mxu0 0
        %939 = vmatpush1.bf16.xpose.msra.mxu0 0
        %940 = vmatprep.subr.bf16.mxu0 0
        %941 = vmatpush1.bf16.xpose.msra.mxu0 0
        %942 = vmatprep.subr.bf16.mxu0 0
        %943 = vmatpush1.bf16.xpose.msra.mxu0 0
        %944 = vmatprep.subr.bf16.mxu0 0
        %945 = vmatpush1.bf16.xpose.msra.mxu0 0
        %946 = vmatprep.subr.bf16.mxu0 0
        %947 = vmatpush1.bf16.xpose.msra.mxu0 0
        %948 = vmatprep.subr.bf16.mxu0 0
        %949 = vmatpush1.bf16.xpose.msra.mxu0 0
        %950 = vmatprep.subr.bf16.mxu0 0
        %951 = vmatpush1.bf16.xpose.msra.mxu0 0
        %952 = vmatprep.subr.bf16.mxu0 0
        %953 = vmatpush1.bf16.xpose.msra.mxu0 %v936
        %954 = vmatprep.subr.bf16.mxu0 0
        %955 = vmatpush2.bf16.xpose.msra.mxu0 0
        %956 = vmatprep.subr.bf16.mxu0 0
        %957 = vmatpush2.bf16.xpose.msra.mxu0 0
        %958 = vmatprep.subr.bf16.mxu0 0
        %959 = vmatpush2.bf16.xpose.msra.mxu0 0
        %960 = vmatprep.subr.bf16.mxu0 0
        %961 = vmatpush2.bf16.xpose.msra.mxu0 0
        %962 = vmatprep.subr.bf16.mxu0 0
        %963 = vmatpush2.bf16.xpose.msra.mxu0 0
        %964 = vmatprep.subr.bf16.mxu0 0
        %965 = vmatpush2.bf16.xpose.msra.mxu0 0
        %966 = vmatprep.subr.bf16.mxu0 0
        %967 = vmatpush2.bf16.xpose.msra.mxu0 0
        %968 = vmatprep.subr.bf16.mxu0 0
        %969 = vmatpush2.bf16.xpose.msra.mxu0 0
        %970 = vmatprep.mubr.bf16.mxu0 0
        %971 = vmatmul.mubr.bf16.gmra.mxu0 %v933
        %v972 = vpop.f32.mrf.mxu0
        %v973 = vadd.f32 %v614, %v972
        %v974 = vpop.f32.mrf.mxu0
        %v975 = vpop.f32.mrf.mxu0
        %v976 = vpop.f32.mrf.mxu0
        %977 = vdwg.mxu0
        %v978 = vsel %vm866, %v973, -inf
        %979 = vmax.xlane.f32.xlu0 %v978
        %v980 = vpop.xlane.xlu0 %979
        %v981 = vsub.f32 %v973, %v980
        %v982 = vmul.f32 %v981, 1.442695
        %v983 = vpow.pop %v982
        %v984 = vsel %vm866, %v983, 0.0
        %985 = vadd.xlane.f32.xlu0 %v984
        %v986 = vpop.xlane.xlu0 %985
        %v987 = vrcp.pop %v986
        %v988 = vmul.f32 %v983, %v987
        %v989 = vpack.c.bf16 %v988, %v988
        %991 = vrot.lane.b32.xlu0 %v818, 112
        %v992 = vpop.permute.xlu0 %991
        %v994 = vsel %vm866, %v989, 0
        %v997 = vsel %vm882, %v992, 0
        %999 = vmatprep.subr.bf16.mxu0 0
        %1000 = vmatpush1.bf16.msra.mxu0 0
        %1001 = vmatprep.subr.bf16.mxu0 0
        %1002 = vmatpush1.bf16.msra.mxu0 0
        %1003 = vmatprep.subr.bf16.mxu0 0
        %1004 = vmatpush1.bf16.msra.mxu0 0
        %1005 = vmatprep.subr.bf16.mxu0 0
        %1006 = vmatpush1.bf16.msra.mxu0 0
        %1007 = vmatprep.subr.bf16.mxu0 0
        %1008 = vmatpush1.bf16.msra.mxu0 0
        %1009 = vmatprep.subr.bf16.mxu0 0
        %1010 = vmatpush1.bf16.msra.mxu0 0
        %1011 = vmatprep.subr.bf16.mxu0 0
        %1012 = vmatpush1.bf16.msra.mxu0 0
        %1013 = vmatprep.subr.bf16.mxu0 0
        %1014 = vmatpush1.bf16.msra.mxu0 %v997
        %1015 = vmatprep.subr.bf16.mxu0 0
        %1016 = vmatpush2.bf16.msra.mxu0 0
        %1017 = vmatprep.subr.bf16.mxu0 0
        %1018 = vmatpush2.bf16.msra.mxu0 0
        %1019 = vmatprep.subr.bf16.mxu0 0
        %1020 = vmatpush2.bf16.msra.mxu0 0
        %1021 = vmatprep.subr.bf16.mxu0 0
        %1022 = vmatpush2.bf16.msra.mxu0 0
        %1023 = vmatprep.subr.bf16.mxu0 0
        %1024 = vmatpush2.bf16.msra.mxu0 0
        %1025 = vmatprep.subr.bf16.mxu0 0
        %1026 = vmatpush2.bf16.msra.mxu0 0
        %1027 = vmatprep.subr.bf16.mxu0 0
        %1028 = vmatpush2.bf16.msra.mxu0 0
        %1029 = vmatprep.subr.bf16.mxu0 0
        %1030 = vmatpush2.bf16.msra.mxu0 0
        %1031 = vmatprep.mubr.bf16.mxu0 0
        %1032 = vmatmul.mubr.bf16.gmra.mxu0 %v994
        %v1033 = vpop.f32.mrf.mxu0
        %v1034 = vadd.f32 0.0, %v1033
        %v1035 = vpop.f32.mrf.mxu0
        %v1036 = vpop.f32.mrf.mxu0
        %v1037 = vpop.f32.mrf.mxu0
        %1038 = vdwg.mxu0
        %1039 = vrot.lane.b32.xlu0 %v816, 96
        %v1040 = vpop.permute.xlu0 %1039
        %1041 = vrot.lane.b32.xlu0 %v817, 96
        %v1042 = vpop.permute.xlu0 %1041
        %v1044 = vsel %vm819, %v1040, 0
        %v1047 = vsel %vm819, %v1042, 0
        %1049 = vmatprep.subr.bf16.mxu0 0
        %1050 = vmatpush1.bf16.xpose.msra.mxu0 0
        %1051 = vmatprep.subr.bf16.mxu0 0
        %1052 = vmatpush1.bf16.xpose.msra.mxu0 0
        %1053 = vmatprep.subr.bf16.mxu0 0
        %1054 = vmatpush1.bf16.xpose.msra.mxu0 0
        %1055 = vmatprep.subr.bf16.mxu0 0
        %1056 = vmatpush1.bf16.xpose.msra.mxu0 0
        %1057 = vmatprep.subr.bf16.mxu0 0
        %1058 = vmatpush1.bf16.xpose.msra.mxu0 0
        %1059 = vmatprep.subr.bf16.mxu0 0
        %1060 = vmatpush1.bf16.xpose.msra.mxu0 0
        %1061 = vmatprep.subr.bf16.mxu0 0
        %1062 = vmatpush1.bf16.xpose.msra.mxu0 0
        %1063 = vmatprep.subr.bf16.mxu0 0
        %1064 = vmatpush1.bf16.xpose.msra.mxu0 %v1047
        %1065 = vmatprep.subr.bf16.mxu0 0
        %1066 = vmatpush2.bf16.xpose.msra.mxu0 0
        %1067 = vmatprep.subr.bf16.mxu0 0
        %1068 = vmatpush2.bf16.xpose.msra.mxu0 0
        %1069 = vmatprep.subr.bf16.mxu0 0
        %1070 = vmatpush2.bf16.xpose.msra.mxu0 0
        %1071 = vmatprep.subr.bf16.mxu0 0
        %1072 = vmatpush2.bf16.xpose.msra.mxu0 0
        %1073 = vmatprep.subr.bf16.mxu0 0
        %1074 = vmatpush2.bf16.xpose.msra.mxu0 0
        %1075 = vmatprep.subr.bf16.mxu0 0
        %1076 = vmatpush2.bf16.xpose.msra.mxu0 0
        %1077 = vmatprep.subr.bf16.mxu0 0
        %1078 = vmatpush2.bf16.xpose.msra.mxu0 0
        %1079 = vmatprep.subr.bf16.mxu0 0
        %1080 = vmatpush2.bf16.xpose.msra.mxu0 0
        %1081 = vmatprep.mubr.bf16.mxu0 0
        %1082 = vmatmul.mubr.bf16.gmra.mxu0 %v1044
        %v1083 = vpop.f32.mrf.mxu0
        %v1084 = vadd.f32 %v614, %v1083
        %v1085 = vpop.f32.mrf.mxu0
        %v1086 = vpop.f32.mrf.mxu0
        %v1087 = vpop.f32.mrf.mxu0
        %1088 = vdwg.mxu0
        %v1089 = vsel %vm866, %v1084, -inf
        %1090 = vmax.xlane.f32.xlu0 %v1089
        %v1091 = vpop.xlane.xlu0 %1090
        %v1092 = vsub.f32 %v1084, %v1091
        %v1093 = vmul.f32 %v1092, 1.442695
        %v1094 = vpow.pop %v1093
        %v1095 = vsel %vm866, %v1094, 0.0
        %1096 = vadd.xlane.f32.xlu0 %v1095
        %v1097 = vpop.xlane.xlu0 %1096
        %v1098 = vrcp.pop %v1097
        %v1099 = vmul.f32 %v1094, %v1098
        %v1100 = vpack.c.bf16 %v1099, %v1099
        %1101 = vrot.lane.b32.xlu0 %v818, 96
        %v1102 = vpop.permute.xlu0 %1101
        %v1104 = vsel %vm866, %v1100, 0
        %v1107 = vsel %vm882, %v1102, 0
        %1109 = vmatprep.subr.bf16.mxu0 0
        %1110 = vmatpush1.bf16.msra.mxu0 0
        %1111 = vmatprep.subr.bf16.mxu0 0
        %1112 = vmatpush1.bf16.msra.mxu0 0
        %1113 = vmatprep.subr.bf16.mxu0 0
        %1114 = vmatpush1.bf16.msra.mxu0 0
        %1115 = vmatprep.subr.bf16.mxu0 0
        %1116 = vmatpush1.bf16.msra.mxu0 0
        %1117 = vmatprep.subr.bf16.mxu0 0
        %1118 = vmatpush1.bf16.msra.mxu0 0
        %1119 = vmatprep.subr.bf16.mxu0 0
        %1120 = vmatpush1.bf16.msra.mxu0 0
        %1121 = vmatprep.subr.bf16.mxu0 0
        %1122 = vmatpush1.bf16.msra.mxu0 0
        %1123 = vmatprep.subr.bf16.mxu0 0
        %1124 = vmatpush1.bf16.msra.mxu0 %v1107
        %1125 = vmatprep.subr.bf16.mxu0 0
        %1126 = vmatpush2.bf16.msra.mxu0 0
        %1127 = vmatprep.subr.bf16.mxu0 0
        %1128 = vmatpush2.bf16.msra.mxu0 0
        %1129 = vmatprep.subr.bf16.mxu0 0
        %1130 = vmatpush2.bf16.msra.mxu0 0
        %1131 = vmatprep.subr.bf16.mxu0 0
        %1132 = vmatpush2.bf16.msra.mxu0 0
        %1133 = vmatprep.subr.bf16.mxu0 0
        %1134 = vmatpush2.bf16.msra.mxu0 0
        %1135 = vmatprep.subr.bf16.mxu0 0
        %1136 = vmatpush2.bf16.msra.mxu0 0
        %1137 = vmatprep.subr.bf16.mxu0 0
        %1138 = vmatpush2.bf16.msra.mxu0 0
        %1139 = vmatprep.subr.bf16.mxu0 0
        %1140 = vmatpush2.bf16.msra.mxu0 0
        %1141 = vmatprep.mubr.bf16.mxu0 0
        %1142 = vmatmul.mubr.bf16.gmra.mxu0 %v1104
        %v1143 = vpop.f32.mrf.mxu0
        %v1144 = vadd.f32 0.0, %v1143
        %v1145 = vpop.f32.mrf.mxu0
        %v1146 = vpop.f32.mrf.mxu0
        %v1147 = vpop.f32.mrf.mxu0
        %1148 = vdwg.mxu0
        %1149 = vrot.lane.b32.xlu0 %v816, 80
        %v1150 = vpop.permute.xlu0 %1149
        %1151 = vrot.lane.b32.xlu0 %v817, 80
        %v1152 = vpop.permute.xlu0 %1151
        %v1154 = vsel %vm819, %v1150, 0
        %v1157 = vsel %vm819, %v1152, 0
        %1159 = vmatprep.subr.bf16.mxu0 0
        %1160 = vmatpush1.bf16.xpose.msra.mxu0 0
        %1161 = vmatprep.subr.bf16.mxu0 0
        %1162 = vmatpush1.bf16.xpose.msra.mxu0 0
        %1163 = vmatprep.subr.bf16.mxu0 0
        %1164 = vmatpush1.bf16.xpose.msra.mxu0 0
        %1165 = vmatprep.subr.bf16.mxu0 0
        %1166 = vmatpush1.bf16.xpose.msra.mxu0 0
        %1167 = vmatprep.subr.bf16.mxu0 0
        %1168 = vmatpush1.bf16.xpose.msra.mxu0 0
        %1169 = vmatprep.subr.bf16.mxu0 0
        %1170 = vmatpush1.bf16.xpose.msra.mxu0 0
        %1171 = vmatprep.subr.bf16.mxu0 0
        %1172 = vmatpush1.bf16.xpose.msra.mxu0 0
        %1173 = vmatprep.subr.bf16.mxu0 0
        %1174 = vmatpush1.bf16.xpose.msra.mxu0 %v1157
        %1175 = vmatprep.subr.bf16.mxu0 0
        %1176 = vmatpush2.bf16.xpose.msra.mxu0 0
        %1177 = vmatprep.subr.bf16.mxu0 0
        %1178 = vmatpush2.bf16.xpose.msra.mxu0 0
        %1179 = vmatprep.subr.bf16.mxu0 0
        %1180 = vmatpush2.bf16.xpose.msra.mxu0 0
        %1181 = vmatprep.subr.bf16.mxu0 0
        %1182 = vmatpush2.bf16.xpose.msra.mxu0 0
        %1183 = vmatprep.subr.bf16.mxu0 0
        %1184 = vmatpush2.bf16.xpose.msra.mxu0 0
        %1185 = vmatprep.subr.bf16.mxu0 0
        %1186 = vmatpush2.bf16.xpose.msra.mxu0 0
        %1187 = vmatprep.subr.bf16.mxu0 0
        %1188 = vmatpush2.bf16.xpose.msra.mxu0 0
        %1189 = vmatprep.subr.bf16.mxu0 0
        %1190 = vmatpush2.bf16.xpose.msra.mxu0 0
        %1191 = vmatprep.mubr.bf16.mxu0 0
        %1192 = vmatmul.mubr.bf16.gmra.mxu0 %v1154
        %v1193 = vpop.f32.mrf.mxu0
        %v1194 = vadd.f32 %v614, %v1193
        %v1195 = vpop.f32.mrf.mxu0
        %v1196 = vpop.f32.mrf.mxu0
        %v1197 = vpop.f32.mrf.mxu0
        %1198 = vdwg.mxu0
        %v1199 = vsel %vm866, %v1194, -inf
        %1200 = vmax.xlane.f32.xlu0 %v1199
        %v1201 = vpop.xlane.xlu0 %1200
        %v1202 = vsub.f32 %v1194, %v1201
        %v1203 = vmul.f32 %v1202, 1.442695
        %v1204 = vpow.pop %v1203
        %v1205 = vsel %vm866, %v1204, 0.0
        %1206 = vadd.xlane.f32.xlu0 %v1205
        %v1207 = vpop.xlane.xlu0 %1206
        %v1208 = vrcp.pop %v1207
        %v1209 = vmul.f32 %v1204, %v1208
        %v1210 = vpack.c.bf16 %v1209, %v1209
        %1211 = vrot.lane.b32.xlu0 %v818, 80
        %v1212 = vpop.permute.xlu0 %1211
        %v1214 = vsel %vm866, %v1210, 0
        %v1217 = vsel %vm882, %v1212, 0
        %1219 = vmatprep.subr.bf16.mxu0 0
        %1220 = vmatpush1.bf16.msra.mxu0 0
        %1221 = vmatprep.subr.bf16.mxu0 0
        %1222 = vmatpush1.bf16.msra.mxu0 0
        %1223 = vmatprep.subr.bf16.mxu0 0
        %1224 = vmatpush1.bf16.msra.mxu0 0
        %1225 = vmatprep.subr.bf16.mxu0 0
        %1226 = vmatpush1.bf16.msra.mxu0 0
        %1227 = vmatprep.subr.bf16.mxu0 0
        %1228 = vmatpush1.bf16.msra.mxu0 0
        %1229 = vmatprep.subr.bf16.mxu0 0
        %1230 = vmatpush1.bf16.msra.mxu0 0
        %1231 = vmatprep.subr.bf16.mxu0 0
        %1232 = vmatpush1.bf16.msra.mxu0 0
        %1233 = vmatprep.subr.bf16.mxu0 0
        %1234 = vmatpush1.bf16.msra.mxu0 %v1217
        %1235 = vmatprep.subr.bf16.mxu0 0
        %1236 = vmatpush2.bf16.msra.mxu0 0
        %1237 = vmatprep.subr.bf16.mxu0 0
        %1238 = vmatpush2.bf16.msra.mxu0 0
        %1239 = vmatprep.subr.bf16.mxu0 0
        %1240 = vmatpush2.bf16.msra.mxu0 0
        %1241 = vmatprep.subr.bf16.mxu0 0
        %1242 = vmatpush2.bf16.msra.mxu0 0
        %1243 = vmatprep.subr.bf16.mxu0 0
        %1244 = vmatpush2.bf16.msra.mxu0 0
        %1245 = vmatprep.subr.bf16.mxu0 0
        %1246 = vmatpush2.bf16.msra.mxu0 0
        %1247 = vmatprep.subr.bf16.mxu0 0
        %1248 = vmatpush2.bf16.msra.mxu0 0
        %1249 = vmatprep.subr.bf16.mxu0 0
        %1250 = vmatpush2.bf16.msra.mxu0 0
        %1251 = vmatprep.mubr.bf16.mxu0 0
        %1252 = vmatmul.mubr.bf16.gmra.mxu0 %v1214
        %v1253 = vpop.f32.mrf.mxu0
        %v1254 = vadd.f32 0.0, %v1253
        %v1255 = vpop.f32.mrf.mxu0
        %v1256 = vpop.f32.mrf.mxu0
        %v1257 = vpop.f32.mrf.mxu0
        %1258 = vdwg.mxu0
        %1260 = vrot.lane.b32.xlu0 %v1034, 16
        %v1261 = vpop.permute.xlu0 %1260
        %1264 = vrot.lane.b32.xlu0 %v1144, 32
        %v1265 = vpop.permute.xlu0 %1264
        %1268 = vrot.lane.b32.xlu0 %v1254, 48
        %v1269 = vpop.permute.xlu0 %1268
        %v1271 = vsel %vm819, %v921, %v1261
        %vm1272 = vcmask 261120
        %v1273 = vsel %vm1272, %v1271, %v1265
        %vm1274 = vcmask 392192
        %v1275 = vsel %vm1274, %v1273, %v1269
        %v1276 = vpack.c.bf16 %v1275, %v1275
        %v1277 = vld [vmem:[%s3] sm:$0xf]
        %v1278 = vld [vmem:[%s3 + $0x4] sm:$0xf]
        %v1279 = vld [vmem:[%s3 + $0x8] sm:$0xf]
        %v1280 = vld [vmem:[%s3 + $0xc] sm:$0xf]
        %v1281 = vld [vmem:[%s3 + $0x10] sm:$0xf]
        %v1282 = vld [vmem:[%s3 + $0x14] sm:$0xf]
        %v1283 = vld [vmem:[%s3 + $0x18] sm:$0xf]
        %v1284 = vld [vmem:[%s3 + $0x1c] sm:$0xf]
        %v1293 = vunpack.c.l.b16 %v1277
        %v1294 = vunpack.c.l.b16 %v1278
        %v1295 = vunpack.c.l.b16 %v1279
        %v1296 = vunpack.c.l.b16 %v1280
        %v1297 = vunpack.c.l.b16 %v1281
        %v1298 = vunpack.c.l.b16 %v1282
        %v1299 = vunpack.c.l.b16 %v1283
        %v1300 = vunpack.c.l.b16 %v1284
        %v1301 = vpack.c.b16 %v1294, %v1293
        %v1302 = vpack.c.b16 %v1296, %v1295
        %v1303 = vpack.c.b16 %v1298, %v1297
        %v1304 = vpack.c.b16 %v1300, %v1299
        %v1310 = vsel %vm617, %v1276, 0
        %1312 = vmatprep.subr.bf16.mxu0 0
        %1313 = vmatpush1.bf16.msra.mxu0 0
        %1314 = vmatprep.subr.bf16.mxu0 0
        %1315 = vmatpush1.bf16.msra.mxu0 0
        %1316 = vmatprep.subr.bf16.mxu0 0
        %1317 = vmatpush1.bf16.msra.mxu0 0
        %1318 = vmatprep.subr.bf16.mxu0 0
        %1319 = vmatpush1.bf16.msra.mxu0 0
        %1320 = vmatprep.subr.bf16.mxu0 0
        %1321 = vmatpush1.bf16.msra.mxu0 %v1304
        %1322 = vmatprep.subr.bf16.mxu0 0
        %1323 = vmatpush1.bf16.msra.mxu0 %v1303
        %1324 = vmatprep.subr.bf16.mxu0 0
        %1325 = vmatpush1.bf16.msra.mxu0 %v1302
        %1326 = vmatprep.subr.bf16.mxu0 0
        %1327 = vmatpush1.bf16.msra.mxu0 %v1301
        %1328 = vmatprep.subr.bf16.mxu0 0
        %1329 = vmatpush2.bf16.msra.mxu0 0
        %1330 = vmatprep.subr.bf16.mxu0 0
        %1331 = vmatpush2.bf16.msra.mxu0 0
        %1332 = vmatprep.subr.bf16.mxu0 0
        %1333 = vmatpush2.bf16.msra.mxu0 0
        %1334 = vmatprep.subr.bf16.mxu0 0
        %1335 = vmatpush2.bf16.msra.mxu0 0
        %1336 = vmatprep.subr.bf16.mxu0 0
        %1337 = vmatpush2.bf16.msra.mxu0 0
        %1338 = vmatprep.subr.bf16.mxu0 0
        %1339 = vmatpush2.bf16.msra.mxu0 0
        %1340 = vmatprep.subr.bf16.mxu0 0
        %1341 = vmatpush2.bf16.msra.mxu0 0
        %1342 = vmatprep.subr.bf16.mxu0 0
        %1343 = vmatpush2.bf16.msra.mxu0 0
        %1344 = vmatprep.mubr.bf16.mxu0 0
        %1345 = vmatmul.mubr.bf16.gmra.mxu0 %v1310
        %v1346 = vpop.f32.mrf.mxu0
        %v1347 = vadd.f32 0.0, %v1346
        %v1348 = vpop.f32.mrf.mxu0
        %v1349 = vpop.f32.mrf.mxu0
        %v1350 = vpop.f32.mrf.mxu0
        %1351 = vdwg.mxu0
        %v1352 = vadd.f32 %v606, %v1347
        %v1353 = vld [vmem:[#allocation2] sm:$0x1]
        %v1355 = vlaneseq
        %v1356 = vshrl.u32 %v1355, 7
        %v1357 = vsub.s32 0, %v1356
        %v1358 = vrot.slane %v1353, %v1357
        %v1360 = vadd.f32 %v1352, %v1358
        %v1361 = vld [vmem:[#allocation7] sm:$0x1]
        %v1362 = vmul.f32 %v1360, %v1360
        %v1363 = vsel %vm617, %v1362, 0.0
        %1364 = vadd.xlane.f32.xlu0 %v1363
        %v1365 = vpop.xlane.xlu0 %1364
        %v1366 = vmul.f32 %v1365, %v621
        %v1367 = vadd.f32 %v1366, 1e-07
        %v1368 = vrsqrt.pop %v1367
        %v1369 = vmul.f32 %v1360, %v1368
        %v1371 = vlaneseq
        %v1372 = vshrl.u32 %v1371, 7
        %v1373 = vsub.s32 0, %v1372
        %v1374 = vrot.slane %v1361, %v1373
        %v1376 = vmul.f32 %v1369, %v1374
        %v1377 = vpack.c.bf16 %v1376, %v1376
        %v1378 = vld [vmem:[%s7] sm:$0xff]
        %v1379 = vld [vmem:[%s7 + $0x8] sm:$0xff]
        %v1380 = vld [vmem:[%s7 + $0x10] sm:$0xff]
        %v1381 = vld [vmem:[%s7 + $0x18] sm:$0xff]
        %v1382 = vld [vmem:[%s7 + $0x20] sm:$0xff]
        %v1383 = vld [vmem:[%s7 + $0x28] sm:$0xff]
        %v1384 = vld [vmem:[%s7 + $0x30] sm:$0xff]
        %v1385 = vld [vmem:[%s7 + $0x38] sm:$0xff]
        %v1394 = vunpack.c.l.b16 %v1378
        %v1395 = vunpack.c.h.b16 %v1378
        %v1396 = vunpack.c.l.b16 %v1379
        %v1397 = vunpack.c.h.b16 %v1379
        %v1398 = vunpack.c.l.b16 %v1380
        %v1399 = vunpack.c.h.b16 %v1380
        %v1400 = vunpack.c.l.b16 %v1381
        %v1401 = vunpack.c.h.b16 %v1381
        %v1402 = vunpack.c.l.b16 %v1382
        %v1403 = vunpack.c.h.b16 %v1382
        %v1404 = vunpack.c.l.b16 %v1383
        %v1405 = vunpack.c.h.b16 %v1383
        %v1406 = vunpack.c.l.b16 %v1384
        %v1407 = vunpack.c.h.b16 %v1384
        %v1408 = vunpack.c.l.b16 %v1385
        %v1409 = vunpack.c.h.b16 %v1385
        %v1410 = vpack.c.b16 %v1396, %v1394
        %v1411 = vpack.c.b16 %v1397, %v1395
        %v1412 = vpack.c.b16 %v1400, %v1398
        %v1413 = vpack.c.b16 %v1401, %v1399
        %v1414 = vpack.c.b16 %v1404, %v1402
        %v1415 = vpack.c.b16 %v1405, %v1403
        %v1416 = vpack.c.b16 %v1408, %v1406
        %v1417 = vpack.c.b16 %v1409, %v1407
        %v1427 = vsel %vm617, %v1377, 0
        %1429 = vmatprep.subr.bf16.mxu0 0
        %1430 = vmatpush1.bf16.msra.mxu0 0
        %1431 = vmatprep.subr.bf16.mxu0 0
        %1432 = vmatpush1.bf16.msra.mxu0 0
        %1433 = vmatprep.subr.bf16.mxu0 0
        %1434 = vmatpush1.bf16.msra.mxu0 0
        %1435 = vmatprep.subr.bf16.mxu0 0
        %1436 = vmatpush1.bf16.msra.mxu0 0
        %1437 = vmatprep.subr.bf16.mxu0 %v1417
        %1438 = vmatpush1.bf16.msra.mxu0 %v1416
        %1439 = vmatprep.subr.bf16.mxu0 %v1415
        %1440 = vmatpush1.bf16.msra.mxu0 %v1414
        %1441 = vmatprep.subr.bf16.mxu0 %v1413
        %1442 = vmatpush1.bf16.msra.mxu0 %v1412
        %1443 = vmatprep.subr.bf16.mxu0 %v1411
        %1444 = vmatpush1.bf16.msra.mxu0 %v1410
        %1445 = vmatprep.subr.bf16.mxu0 0
        %1446 = vmatpush2.bf16.msra.mxu0 0
        %1447 = vmatprep.subr.bf16.mxu0 0
        %1448 = vmatpush2.bf16.msra.mxu0 0
        %1449 = vmatprep.subr.bf16.mxu0 0
        %1450 = vmatpush2.bf16.msra.mxu0 0
        %1451 = vmatprep.subr.bf16.mxu0 0
        %1452 = vmatpush2.bf16.msra.mxu0 0
        %1453 = vmatprep.subr.bf16.mxu0 0
        %1454 = vmatpush2.bf16.msra.mxu0 0
        %1455 = vmatprep.subr.bf16.mxu0 0
        %1456 = vmatpush2.bf16.msra.mxu0 0
        %1457 = vmatprep.subr.bf16.mxu0 0
        %1458 = vmatpush2.bf16.msra.mxu0 0
        %1459 = vmatprep.subr.bf16.mxu0 0
        %1460 = vmatpush2.bf16.msra.mxu0 0
        %1461 = vmatprep.mubr.bf16.mxu0 0
        %1462 = vmatmul.mubr.bf16.gmra.mxu0 %v1427
        %v1463 = vpop.f32.mrf.mxu0
        %v1464 = vadd.f32 0.0, %v1463
        %v1465 = vpop.f32.mrf.mxu0
        %v1466 = vadd.f32 0.0, %v1465
        %v1467 = vpop.f32.mrf.mxu0
        %v1468 = vpop.f32.mrf.mxu0
        %1469 = vdwg.mxu0
        %v1470 = vxor.u32 %v1464, 2147483648
        %v1471 = vmul.f32 %v1470, 1.442695
        %v1472 = vpow.pop %v1471
        %v1473 = vadd.f32 %v1472, 1.0
        %v1474 = vrcp.pop %v1473
        %v1475 = vmul.f32 1.0, %v1474
        %v1476 = vmul.f32 %v1464, %v1475
        %v1477 = vmul.f32 %v1476, %v1466
        %v1478 = vpack.c.bf16 %v1477, %v1477
        %v1479 = vld [vmem:[%s8] sm:$0xf]
        %v1480 = vld [vmem:[%s8 + $0x4] sm:$0xf]
        %v1481 = vld [vmem:[%s8 + $0x8] sm:$0xf]
        %v1482 = vld [vmem:[%s8 + $0xc] sm:$0xf]
        %v1483 = vld [vmem:[%s8 + $0x10] sm:$0xf]
        %v1484 = vld [vmem:[%s8 + $0x14] sm:$0xf]
        %v1485 = vld [vmem:[%s8 + $0x18] sm:$0xf]
        %v1486 = vld [vmem:[%s8 + $0x1c] sm:$0xf]
        %v1487 = vld [vmem:[%s8 + $0x20] sm:$0xf]
        %v1488 = vld [vmem:[%s8 + $0x24] sm:$0xf]
        %v1489 = vld [vmem:[%s8 + $0x28] sm:$0xf]
        %v1490 = vld [vmem:[%s8 + $0x2c] sm:$0xf]
        %v1491 = vld [vmem:[%s8 + $0x30] sm:$0xf]
        %v1492 = vld [vmem:[%s8 + $0x34] sm:$0xf]
        %v1493 = vld [vmem:[%s8 + $0x38] sm:$0xf]
        %v1494 = vld [vmem:[%s8 + $0x3c] sm:$0xf]
        %v1511 = vunpack.c.l.b16 %v1479
        %v1512 = vunpack.c.l.b16 %v1480
        %v1513 = vunpack.c.l.b16 %v1481
        %v1514 = vunpack.c.l.b16 %v1482
        %v1515 = vunpack.c.l.b16 %v1483
        %v1516 = vunpack.c.l.b16 %v1484
        %v1517 = vunpack.c.l.b16 %v1485
        %v1518 = vunpack.c.l.b16 %v1486
        %v1519 = vunpack.c.l.b16 %v1487
        %v1520 = vunpack.c.l.b16 %v1488
        %v1521 = vunpack.c.l.b16 %v1489
        %v1522 = vunpack.c.l.b16 %v1490
        %v1523 = vunpack.c.l.b16 %v1491
        %v1524 = vunpack.c.l.b16 %v1492
        %v1525 = vunpack.c.l.b16 %v1493
        %v1526 = vunpack.c.l.b16 %v1494
        %v1527 = vpack.c.b16 %v1512, %v1511
        %v1528 = vpack.c.b16 %v1514, %v1513
        %v1529 = vpack.c.b16 %v1516, %v1515
        %v1530 = vpack.c.b16 %v1518, %v1517
        %v1531 = vpack.c.b16 %v1520, %v1519
        %v1532 = vpack.c.b16 %v1522, %v1521
        %v1533 = vpack.c.b16 %v1524, %v1523
        %v1534 = vpack.c.b16 %v1526, %v1525
        %1543 = vmatprep.subr.bf16.mxu0 0
        %1544 = vmatpush1.bf16.msra.mxu0 %v1534
        %1545 = vmatprep.subr.bf16.mxu0 0
        %1546 = vmatpush1.bf16.msra.mxu0 %v1533
        %1547 = vmatprep.subr.bf16.mxu0 0
        %1548 = vmatpush1.bf16.msra.mxu0 %v1532
        %1549 = vmatprep.subr.bf16.mxu0 0
        %1550 = vmatpush1.bf16.msra.mxu0 %v1531
        %1551 = vmatprep.subr.bf16.mxu0 0
        %1552 = vmatpush1.bf16.msra.mxu0 %v1530
        %1553 = vmatprep.subr.bf16.mxu0 0
        %1554 = vmatpush1.bf16.msra.mxu0 %v1529
        %1555 = vmatprep.subr.bf16.mxu0 0
        %1556 = vmatpush1.bf16.msra.mxu0 %v1528
        %1557 = vmatprep.subr.bf16.mxu0 0
        %1558 = vmatpush1.bf16.msra.mxu0 %v1527
        %1559 = vmatprep.subr.bf16.mxu0 0
        %1560 = vmatpush2.bf16.msra.mxu0 0
        %1561 = vmatprep.subr.bf16.mxu0 0
        %1562 = vmatpush2.bf16.msra.mxu0 0
        %1563 = vmatprep.subr.bf16.mxu0 0
        %1564 = vmatpush2.bf16.msra.mxu0 0
        %1565 = vmatprep.subr.bf16.mxu0 0
        %1566 = vmatpush2.bf16.msra.mxu0 0
        %1567 = vmatprep.subr.bf16.mxu0 0
        %1568 = vmatpush2.bf16.msra.mxu0 0
        %1569 = vmatprep.subr.bf16.mxu0 0
        %1570 = vmatpush2.bf16.msra.mxu0 0
        %1571 = vmatprep.subr.bf16.mxu0 0
        %1572 = vmatpush2.bf16.msra.mxu0 0
        %1573 = vmatprep.subr.bf16.mxu0 0
        %1574 = vmatpush2.bf16.msra.mxu0 0
        %1575 = vmatprep.mubr.bf16.mxu0 0
        %1576 = vmatmul.mubr.bf16.gmra.mxu0 %v1478
        %v1577 = vpop.f32.mrf.mxu0
        %v1578 = vadd.f32 0.0, %v1577
        %v1579 = vpop.f32.mrf.mxu0
        %v1580 = vpop.f32.mrf.mxu0
        %v1581 = vpop.f32.mrf.mxu0
        %1582 = vdwg.mxu0
        %v1583 = vadd.f32 %v1360, %v1578
        %s1584 = scalar_lea.vmem [#allocation5], 1
        %v1585 = vld [vmem:[%s1584] sm:$0x1]
        %v1586 = vmul.f32 %v1583, %v1583
        %v1587 = vsel %vm617, %v1586, 0.0
        %1588 = vadd.xlane.f32.xlu0 %v1587
        %v1589 = vpop.xlane.xlu0 %1588
        %v1590 = vmul.f32 %v1589, %v621
        %v1591 = vadd.f32 %v1590, 1e-07
        %v1592 = vrsqrt.pop %v1591
        %v1593 = vmul.f32 %v1583, %v1592
        %v1595 = vlaneseq
        %v1596 = vshrl.u32 %v1595, 7
        %v1597 = vsub.s32 0, %v1596
        %v1598 = vrot.slane %v1585, %v1597
        %v1600 = vmul.f32 %v1593, %v1598
        %v1601 = vpack.c.bf16 %v1600, %v1600
        %s1602 = scalar_lea.vmem %s2, 96
        %v1603 = vld [vmem:[%s1602] sm:$0xff]
        %v1604 = vld [vmem:[%s1602 + $0x8] sm:$0xf]
        %v1605 = vld [vmem:[%s1602 + $0xc] sm:$0xff]
        %v1606 = vld [vmem:[%s1602 + $0x14] sm:$0xf]
        %v1607 = vld [vmem:[%s1602 + $0x18] sm:$0xff]
        %v1608 = vld [vmem:[%s1602 + $0x20] sm:$0xf]
        %v1609 = vld [vmem:[%s1602 + $0x24] sm:$0xff]
        %v1610 = vld [vmem:[%s1602 + $0x2c] sm:$0xf]
        %v1611 = vld [vmem:[%s1602 + $0x30] sm:$0xff]
        %v1612 = vld [vmem:[%s1602 + $0x38] sm:$0xf]
        %v1613 = vld [vmem:[%s1602 + $0x3c] sm:$0xff]
        %v1614 = vld [vmem:[%s1602 + $0x44] sm:$0xf]
        %v1615 = vld [vmem:[%s1602 + $0x48] sm:$0xff]
        %v1616 = vld [vmem:[%s1602 + $0x50] sm:$0xf]
        %v1617 = vld [vmem:[%s1602 + $0x54] sm:$0xff]
        %v1618 = vld [vmem:[%s1602 + $0x5c] sm:$0xf]
        %v1635 = vunpack.c.l.b16 %v1603
        %v1636 = vunpack.c.h.b16 %v1603
        %v1637 = vunpack.c.l.b16 %v1604
        %v1638 = vunpack.c.l.b16 %v1605
        %v1639 = vunpack.c.h.b16 %v1605
        %v1640 = vunpack.c.l.b16 %v1606
        %v1641 = vunpack.c.l.b16 %v1607
        %v1642 = vunpack.c.h.b16 %v1607
        %v1643 = vunpack.c.l.b16 %v1608
        %v1644 = vunpack.c.l.b16 %v1609
        %v1645 = vunpack.c.h.b16 %v1609
        %v1646 = vunpack.c.l.b16 %v1610
        %v1647 = vunpack.c.l.b16 %v1611
        %v1648 = vunpack.c.h.b16 %v1611
        %v1649 = vunpack.c.l.b16 %v1612
        %v1650 = vunpack.c.l.b16 %v1613
        %v1651 = vunpack.c.h.b16 %v1613
        %v1652 = vunpack.c.l.b16 %v1614
        %v1653 = vunpack.c.l.b16 %v1615
        %v1654 = vunpack.c.h.b16 %v1615
        %v1655 = vunpack.c.l.b16 %v1616
        %v1656 = vunpack.c.l.b16 %v1617
        %v1657 = vunpack.c.h.b16 %v1617
        %v1658 = vunpack.c.l.b16 %v1618
        %v1659 = vpack.c.b16 %v1638, %v1635
        %v1660 = vpack.c.b16 %v1639, %v1636
        %v1661 = vpack.c.b16 %v1640, %v1637
        %v1662 = vpack.c.b16 %v1644, %v1641
        %v1663 = vpack.c.b16 %v1645, %v1642
        %v1664 = vpack.c.b16 %v1646, %v1643
        %v1665 = vpack.c.b16 %v1650, %v1647
        %v1666 = vpack.c.b16 %v1651, %v1648
        %v1667 = vpack.c.b16 %v1652, %v1649
        %v1668 = vpack.c.b16 %v1656, %v1653
        %v1669 = vpack.c.b16 %v1657, %v1654
        %v1670 = vpack.c.b16 %v1658, %v1655
        %v1684 = vsel %vm617, %v1601, 0
        %1686 = vmatprep.subr.bf16.mxu0 0
        %1687 = vmatpush1.bf16.msra.mxu0 0
        %1688 = vmatprep.subr.bf16.mxu0 0
        %1689 = vmatpush1.bf16.msra.mxu0 0
        %1690 = vmatprep.subr.bf16.mxu0 0
        %1691 = vmatpush1.bf16.msra.mxu0 0
        %1692 = vmatprep.subr.bf16.mxu0 0
        %1693 = vmatpush1.bf16.msra.mxu0 0
        %1694 = vmatprep.subr.bf16.mxu0 %v1669
        %1695 = vmatpush1.bf16.msra.mxu0 %v1668
        %1696 = vmatprep.subr.bf16.mxu0 %v1666
        %1697 = vmatpush1.bf16.msra.mxu0 %v1665
        %1698 = vmatprep.subr.bf16.mxu0 %v1663
        %1699 = vmatpush1.bf16.msra.mxu0 %v1662
        %1700 = vmatprep.subr.bf16.mxu0 %v1660
        %1701 = vmatpush1.bf16.msra.mxu0 %v1659
        %1702 = vmatprep.subr.bf16.mxu0 0
        %1703 = vmatpush2.bf16.msra.mxu0 0
        %1704 = vmatprep.subr.bf16.mxu0 0
        %1705 = vmatpush2.bf16.msra.mxu0 0
        %1706 = vmatprep.subr.bf16.mxu0 0
        %1707 = vmatpush2.bf16.msra.mxu0 0
        %1708 = vmatprep.subr.bf16.mxu0 0
        %1709 = vmatpush2.bf16.msra.mxu0 0
        %1710 = vmatprep.subr.bf16.mxu0 0
        %1711 = vmatpush2.bf16.msra.mxu0 0
        %1712 = vmatprep.subr.bf16.mxu0 0
        %1713 = vmatpush2.bf16.msra.mxu0 0
        %1714 = vmatprep.subr.bf16.mxu0 0
        %1715 = vmatpush2.bf16.msra.mxu0 0
        %1716 = vmatprep.subr.bf16.mxu0 0
        %1717 = vmatpush2.bf16.msra.mxu0 0
        %1718 = vmatprep.mubr.bf16.mxu0 0
        %1719 = vmatmul.mubr.bf16.gmra.mxu0 %v1684
        %v1720 = vpop.f32.mrf.mxu0
        %v1721 = vadd.f32 0.0, %v1720
        %v1722 = vpop.f32.mrf.mxu0
        %v1723 = vadd.f32 0.0, %v1722
        %v1724 = vpop.f32.mrf.mxu0
        %v1725 = vpop.f32.mrf.mxu0
        %1726 = vdwg.mxu0
        %1727 = vmatprep.subr.bf16.mxu0 0
        %1728 = vmatpush1.bf16.msra.mxu0 0
        %1729 = vmatprep.subr.bf16.mxu0 0
        %1730 = vmatpush1.bf16.msra.mxu0 0
        %1731 = vmatprep.subr.bf16.mxu0 0
        %1732 = vmatpush1.bf16.msra.mxu0 0
        %1733 = vmatprep.subr.bf16.mxu0 0
        %1734 = vmatpush1.bf16.msra.mxu0 0
        %1735 = vmatprep.subr.bf16.mxu0 0
        %1736 = vmatpush1.bf16.msra.mxu0 %v1670
        %1737 = vmatprep.subr.bf16.mxu0 0
        %1738 = vmatpush1.bf16.msra.mxu0 %v1667
        %1739 = vmatprep.subr.bf16.mxu0 0
        %1740 = vmatpush1.bf16.msra.mxu0 %v1664
        %1741 = vmatprep.subr.bf16.mxu0 0
        %1742 = vmatpush1.bf16.msra.mxu0 %v1661
        %1743 = vmatprep.subr.bf16.mxu0 0
        %1744 = vmatpush2.bf16.msra.mxu0 0
        %1745 = vmatprep.subr.bf16.mxu0 0
        %1746 = vmatpush2.bf16.msra.mxu0 0
        %1747 = vmatprep.subr.bf16.mxu0 0
        %1748 = vmatpush2.bf16.msra.mxu0 0
        %1749 = vmatprep.subr.bf16.mxu0 0
        %1750 = vmatpush2.bf16.msra.mxu0 0
        %1751 = vmatprep.subr.bf16.mxu0 0
        %1752 = vmatpush2.bf16.msra.mxu0 0
        %1753 = vmatprep.subr.bf16.mxu0 0
        %1754 = vmatpush2.bf16.msra.mxu0 0
        %1755 = vmatprep.subr.bf16.mxu0 0
        %1756 = vmatpush2.bf16.msra.mxu0 0
        %1757 = vmatprep.subr.bf16.mxu0 0
        %1758 = vmatpush2.bf16.msra.mxu0 0
        %1759 = vmatprep.mubr.bf16.mxu0 0
        %1760 = vmatmul.mubr.bf16.gmra.mxu0 %v1684
        %v1761 = vpop.f32.mrf.mxu0
        %v1762 = vadd.f32 0.0, %v1761
        %v1763 = vpop.f32.mrf.mxu0
        %v1764 = vpop.f32.mrf.mxu0
        %v1765 = vpop.f32.mrf.mxu0
        %1766 = vdwg.mxu0
        %v1767 = vmul.f32 %v1721, %v609
        %v1768 = vmul.f32 %v1721, %v801
        %1770 = vrot.lane.b32.xlu0 %v1768, 64
        %v1771 = vpop.permute.xlu0 %1770
        %v1773 = vadd.f32 %v1767, %v1771
        %v1774 = vmul.f32 %v1723, %v609
        %v1775 = vmul.f32 %v1723, %v801
        %1777 = vrot.lane.b32.xlu0 %v1775, 64
        %v1778 = vpop.permute.xlu0 %1777
        %v1780 = vadd.f32 %v1774, %v1778
        %v1781 = vpack.c.bf16 %v1773, %v1773
        %v1782 = vpack.c.bf16 %v1780, %v1780
        %v1783 = vpack.c.bf16 %v1762, %v1762
        %v1785 = vsel %vm819, %v1781, 0
        %v1788 = vsel %vm819, %v1782, 0
        %1790 = vmatprep.subr.bf16.mxu0 0
        %1791 = vmatpush1.bf16.xpose.msra.mxu0 0
        %1792 = vmatprep.subr.bf16.mxu0 0
        %1793 = vmatpush1.bf16.xpose.msra.mxu0 0
        %1794 = vmatprep.subr.bf16.mxu0 0
        %1795 = vmatpush1.bf16.xpose.msra.mxu0 0
        %1796 = vmatprep.subr.bf16.mxu0 0
        %1797 = vmatpush1.bf16.xpose.msra.mxu0 0
        %1798 = vmatprep.subr.bf16.mxu0 0
        %1799 = vmatpush1.bf16.xpose.msra.mxu0 0
        %1800 = vmatprep.subr.bf16.mxu0 0
        %1801 = vmatpush1.bf16.xpose.msra.mxu0 0
        %1802 = vmatprep.subr.bf16.mxu0 0
        %1803 = vmatpush1.bf16.xpose.msra.mxu0 0
        %1804 = vmatprep.subr.bf16.mxu0 0
        %1805 = vmatpush1.bf16.xpose.msra.mxu0 %v1788
        %1806 = vmatprep.subr.bf16.mxu0 0
        %1807 = vmatpush2.bf16.xpose.msra.mxu0 0
        %1808 = vmatprep.subr.bf16.mxu0 0
        %1809 = vmatpush2.bf16.xpose.msra.mxu0 0
        %1810 = vmatprep.subr.bf16.mxu0 0
        %1811 = vmatpush2.bf16.xpose.msra.mxu0 0
        %1812 = vmatprep.subr.bf16.mxu0 0
        %1813 = vmatpush2.bf16.xpose.msra.mxu0 0
        %1814 = vmatprep.subr.bf16.mxu0 0
        %1815 = vmatpush2.bf16.xpose.msra.mxu0 0
        %1816 = vmatprep.subr.bf16.mxu0 0
        %1817 = vmatpush2.bf16.xpose.msra.mxu0 0
        %1818 = vmatprep.subr.bf16.mxu0 0
        %1819 = vmatpush2.bf16.xpose.msra.mxu0 0
        %1820 = vmatprep.subr.bf16.mxu0 0
        %1821 = vmatpush2.bf16.xpose.msra.mxu0 0
        %1822 = vmatprep.mubr.bf16.mxu0 0
        %1823 = vmatmul.mubr.bf16.gmra.mxu0 %v1785
        %v1824 = vpop.f32.mrf.mxu0
        %v1825 = vadd.f32 %v614, %v1824
        %v1826 = vpop.f32.mrf.mxu0
        %v1827 = vpop.f32.mrf.mxu0
        %v1828 = vpop.f32.mrf.mxu0
        %1829 = vdwg.mxu0
        %v1830 = vsel %vm866, %v1825, -inf
        %1831 = vmax.xlane.f32.xlu0 %v1830
        %v1832 = vpop.xlane.xlu0 %1831
        %v1833 = vsub.f32 %v1825, %v1832
        %v1834 = vmul.f32 %v1833, 1.442695
        %v1835 = vpow.pop %v1834
        %v1836 = vsel %vm866, %v1835, 0.0
        %1837 = vadd.xlane.f32.xlu0 %v1836
        %v1838 = vpop.xlane.xlu0 %1837
        %v1839 = vrcp.pop %v1838
        %v1840 = vmul.f32 %v1835, %v1839
        %v1841 = vpack.c.bf16 %v1840, %v1840
        %v1843 = vsel %vm866, %v1841, 0
        %v1846 = vsel %vm882, %v1783, 0
        %1848 = vmatprep.subr.bf16.mxu0 0
        %1849 = vmatpush1.bf16.msra.mxu0 0
        %1850 = vmatprep.subr.bf16.mxu0 0
        %1851 = vmatpush1.bf16.msra.mxu0 0
        %1852 = vmatprep.subr.bf16.mxu0 0
        %1853 = vmatpush1.bf16.msra.mxu0 0
        %1854 = vmatprep.subr.bf16.mxu0 0
        %1855 = vmatpush1.bf16.msra.mxu0 0
        %1856 = vmatprep.subr.bf16.mxu0 0
        %1857 = vmatpush1.bf16.msra.mxu0 0
        %1858 = vmatprep.subr.bf16.mxu0 0
        %1859 = vmatpush1.bf16.msra.mxu0 0
        %1860 = vmatprep.subr.bf16.mxu0 0
        %1861 = vmatpush1.bf16.msra.mxu0 0
        %1862 = vmatprep.subr.bf16.mxu0 0
        %1863 = vmatpush1.bf16.msra.mxu0 %v1846
        %1864 = vmatprep.subr.bf16.mxu0 0
        %1865 = vmatpush2.bf16.msra.mxu0 0
        %1866 = vmatprep.subr.bf16.mxu0 0
        %1867 = vmatpush2.bf16.msra.mxu0 0
        %1868 = vmatprep.subr.bf16.mxu0 0
        %1869 = vmatpush2.bf16.msra.mxu0 0
        %1870 = vmatprep.subr.bf16.mxu0 0
        %1871 = vmatpush2.bf16.msra.mxu0 0
        %1872 = vmatprep.subr.bf16.mxu0 0
        %1873 = vmatpush2.bf16.msra.mxu0 0
        %1874 = vmatprep.subr.bf16.mxu0 0
        %1875 = vmatpush2.bf16.msra.mxu0 0
        %1876 = vmatprep.subr.bf16.mxu0 0
        %1877 = vmatpush2.bf16.msra.mxu0 0
        %1878 = vmatprep.subr.bf16.mxu0 0
        %1879 = vmatpush2.bf16.msra.mxu0 0
        %1880 = vmatprep.mubr.bf16.mxu0 0
        %1881 = vmatmul.mubr.bf16.gmra.mxu0 %v1843
        %v1882 = vpop.f32.mrf.mxu0
        %v1883 = vadd.f32 0.0, %v1882
        %v1884 = vpop.f32.mrf.mxu0
        %v1885 = vpop.f32.mrf.mxu0
        %v1886 = vpop.f32.mrf.mxu0
        %1887 = vdwg.mxu0
        %1889 = vrot.lane.b32.xlu0 %v1781, 112
        %v1890 = vpop.permute.xlu0 %1889
        %1892 = vrot.lane.b32.xlu0 %v1782, 112
        %v1893 = vpop.permute.xlu0 %1892
        %v1895 = vsel %vm819, %v1890, 0
        %v1898 = vsel %vm819, %v1893, 0
        %1900 = vmatprep.subr.bf16.mxu0 0
        %1901 = vmatpush1.bf16.xpose.msra.mxu0 0
        %1902 = vmatprep.subr.bf16.mxu0 0
        %1903 = vmatpush1.bf16.xpose.msra.mxu0 0
        %1904 = vmatprep.subr.bf16.mxu0 0
        %1905 = vmatpush1.bf16.xpose.msra.mxu0 0
        %1906 = vmatprep.subr.bf16.mxu0 0
        %1907 = vmatpush1.bf16.xpose.msra.mxu0 0
        %1908 = vmatprep.subr.bf16.mxu0 0
        %1909 = vmatpush1.bf16.xpose.msra.mxu0 0
        %1910 = vmatprep.subr.bf16.mxu0 0
        %1911 = vmatpush1.bf16.xpose.msra.mxu0 0
        %1912 = vmatprep.subr.bf16.mxu0 0
        %1913 = vmatpush1.bf16.xpose.msra.mxu0 0
        %1914 = vmatprep.subr.bf16.mxu0 0
        %1915 = vmatpush1.bf16.xpose.msra.mxu0 %v1898
        %1916 = vmatprep.subr.bf16.mxu0 0
        %1917 = vmatpush2.bf16.xpose.msra.mxu0 0
        %1918 = vmatprep.subr.bf16.mxu0 0
        %1919 = vmatpush2.bf16.xpose.msra.mxu0 0
        %1920 = vmatprep.subr.bf16.mxu0 0
        %1921 = vmatpush2.bf16.xpose.msra.mxu0 0
        %1922 = vmatprep.subr.bf16.mxu0 0
        %1923 = vmatpush2.bf16.xpose.msra.mxu0 0
        %1924 = vmatprep.subr.bf16.mxu0 0
        %1925 = vmatpush2.bf16.xpose.msra.mxu0 0
        %1926 = vmatprep.subr.bf16.mxu0 0
        %1927 = vmatpush2.bf16.xpose.msra.mxu0 0
        %1928 = vmatprep.subr.bf16.mxu0 0
        %1929 = vmatpush2.bf16.xpose.msra.mxu0 0
        %1930 = vmatprep.subr.bf16.mxu0 0
        %1931 = vmatpush2.bf16.xpose.msra.mxu0 0
        %1932 = vmatprep.mubr.bf16.mxu0 0
        %1933 = vmatmul.mubr.bf16.gmra.mxu0 %v1895
        %v1934 = vpop.f32.mrf.mxu0
        %v1935 = vadd.f32 %v614, %v1934
        %v1936 = vpop.f32.mrf.mxu0
        %v1937 = vpop.f32.mrf.mxu0
        %v1938 = vpop.f32.mrf.mxu0
        %1939 = vdwg.mxu0
        %v1940 = vsel %vm866, %v1935, -inf
        %1941 = vmax.xlane.f32.xlu0 %v1940
        %v1942 = vpop.xlane.xlu0 %1941
        %v1943 = vsub.f32 %v1935, %v1942
        %v1944 = vmul.f32 %v1943, 1.442695
        %v1945 = vpow.pop %v1944
        %v1946 = vsel %vm866, %v1945, 0.0
        %1947 = vadd.xlane.f32.xlu0 %v1946
        %v1948 = vpop.xlane.xlu0 %1947
        %v1949 = vrcp.pop %v1948
        %v1950 = vmul.f32 %v1945, %v1949
        %v1951 = vpack.c.bf16 %v1950, %v1950
        %1953 = vrot.lane.b32.xlu0 %v1783, 112
        %v1954 = vpop.permute.xlu0 %1953
        %v1956 = vsel %vm866, %v1951, 0
        %v1959 = vsel %vm882, %v1954, 0
        %1961 = vmatprep.subr.bf16.mxu0 0
        %1962 = vmatpush1.bf16.msra.mxu0 0
        %1963 = vmatprep.subr.bf16.mxu0 0
        %1964 = vmatpush1.bf16.msra.mxu0 0
        %1965 = vmatprep.subr.bf16.mxu0 0
        %1966 = vmatpush1.bf16.msra.mxu0 0
        %1967 = vmatprep.subr.bf16.mxu0 0
        %1968 = vmatpush1.bf16.msra.mxu0 0
        %1969 = vmatprep.subr.bf16.mxu0 0
        %1970 = vmatpush1.bf16.msra.mxu0 0
        %1971 = vmatprep.subr.bf16.mxu0 0
        %1972 = vmatpush1.bf16.msra.mxu0 0
        %1973 = vmatprep.subr.bf16.mxu0 0
        %1974 = vmatpush1.bf16.msra.mxu0 0
        %1975 = vmatprep.subr.bf16.mxu0 0
        %1976 = vmatpush1.bf16.msra.mxu0 %v1959
        %1977 = vmatprep.subr.bf16.mxu0 0
        %1978 = vmatpush2.bf16.msra.mxu0 0
        %1979 = vmatprep.subr.bf16.mxu0 0
        %1980 = vmatpush2.bf16.msra.mxu0 0
        %1981 = vmatprep.subr.bf16.mxu0 0
        %1982 = vmatpush2.bf16.msra.mxu0 0
        %1983 = vmatprep.subr.bf16.mxu0 0
        %1984 = vmatpush2.bf16.msra.mxu0 0
        %1985 = vmatprep.subr.bf16.mxu0 0
        %1986 = vmatpush2.bf16.msra.mxu0 0
        %1987 = vmatprep.subr.bf16.mxu0 0
        %1988 = vmatpush2.bf16.msra.mxu0 0
        %1989 = vmatprep.subr.bf16.mxu0 0
        %1990 = vmatpush2.bf16.msra.mxu0 0
        %1991 = vmatprep.subr.bf16.mxu0 0
        %1992 = vmatpush2.bf16.msra.mxu0 0
        %1993 = vmatprep.mubr.bf16.mxu0 0
        %1994 = vmatmul.mubr.bf16.gmra.mxu0 %v1956
        %v1995 = vpop.f32.mrf.mxu0
        %v1996 = vadd.f32 0.0, %v1995
        %v1997 = vpop.f32.mrf.mxu0
        %v1998 = vpop.f32.mrf.mxu0
        %v1999 = vpop.f32.mrf.mxu0
        %2000 = vdwg.mxu0
        %2001 = vrot.lane.b32.xlu0 %v1781, 96
        %v2002 = vpop.permute.xlu0 %2001
        %2003 = vrot.lane.b32.xlu0 %v1782, 96
        %v2004 = vpop.permute.xlu0 %2003
        %v2006 = vsel %vm819, %v2002, 0
        %v2009 = vsel %vm819, %v2004, 0
        %2011 = vmatprep.subr.bf16.mxu0 0
        %2012 = vmatpush1.bf16.xpose.msra.mxu0 0
        %2013 = vmatprep.subr.bf16.mxu0 0
        %2014 = vmatpush1.bf16.xpose.msra.mxu0 0
        %2015 = vmatprep.subr.bf16.mxu0 0
        %2016 = vmatpush1.bf16.xpose.msra.mxu0 0
        %2017 = vmatprep.subr.bf16.mxu0 0
        %2018 = vmatpush1.bf16.xpose.msra.mxu0 0
        %2019 = vmatprep.subr.bf16.mxu0 0
        %2020 = vmatpush1.bf16.xpose.msra.mxu0 0
        %2021 = vmatprep.subr.bf16.mxu0 0
        %2022 = vmatpush1.bf16.xpose.msra.mxu0 0
        %2023 = vmatprep.subr.bf16.mxu0 0
        %2024 = vmatpush1.bf16.xpose.msra.mxu0 0
        %2025 = vmatprep.subr.bf16.mxu0 0
        %2026 = vmatpush1.bf16.xpose.msra.mxu0 %v2009
        %2027 = vmatprep.subr.bf16.mxu0 0
        %2028 = vmatpush2.bf16.xpose.msra.mxu0 0
        %2029 = vmatprep.subr.bf16.mxu0 0
        %2030 = vmatpush2.bf16.xpose.msra.mxu0 0
        %2031 = vmatprep.subr.bf16.mxu0 0
        %2032 = vmatpush2.bf16.xpose.msra.mxu0 0
        %2033 = vmatprep.subr.bf16.mxu0 0
        %2034 = vmatpush2.bf16.xpose.msra.mxu0 0
        %2035 = vmatprep.subr.bf16.mxu0 0
        %2036 = vmatpush2.bf16.xpose.msra.mxu0 0
        %2037 = vmatprep.subr.bf16.mxu0 0
        %2038 = vmatpush2.bf16.xpose.msra.mxu0 0
        %2039 = vmatprep.subr.bf16.mxu0 0
        %2040 = vmatpush2.bf16.xpose.msra.mxu0 0
        %2041 = vmatprep.subr.bf16.mxu0 0
        %2042 = vmatpush2.bf16.xpose.msra.mxu0 0
        %2043 = vmatprep.mubr.bf16.mxu0 0
        %2044 = vmatmul.mubr.bf16.gmra.mxu0 %v2006
        %v2045 = vpop.f32.mrf.mxu0
        %v2046 = vadd.f32 %v614, %v2045
        %v2047 = vpop.f32.mrf.mxu0
        %v2048 = vpop.f32.mrf.mxu0
        %v2049 = vpop.f32.mrf.mxu0
        %2050 = vdwg.mxu0
        %v2051 = vsel %vm866, %v2046, -inf
        %2052 = vmax.xlane.f32.xlu0 %v2051
        %v2053 = vpop.xlane.xlu0 %2052
        %v2054 = vsub.f32 %v2046, %v2053
        %v2055 = vmul.f32 %v2054, 1.442695
        %v2056 = vpow.pop %v2055
        %v2057 = vsel %vm866, %v2056, 0.0
        %2058 = vadd.xlane.f32.xlu0 %v2057
        %v2059 = vpop.xlane.xlu0 %2058
        %v2060 = vrcp.pop %v2059
        %v2061 = vmul.f32 %v2056, %v2060
        %v2062 = vpack.c.bf16 %v2061, %v2061
        %2063 = vrot.lane.b32.xlu0 %v1783, 96
        %v2064 = vpop.permute.xlu0 %2063
        %v2066 = vsel %vm866, %v2062, 0
        %v2069 = vsel %vm882, %v2064, 0
        %2071 = vmatprep.subr.bf16.mxu0 0
        %2072 = vmatpush1.bf16.msra.mxu0 0
        %2073 = vmatprep.subr.bf16.mxu0 0
        %2074 = vmatpush1.bf16.msra.mxu0 0
        %2075 = vmatprep.subr.bf16.mxu0 0
        %2076 = vmatpush1.bf16.msra.mxu0 0
        %2077 = vmatprep.subr.bf16.mxu0 0
        %2078 = vmatpush1.bf16.msra.mxu0 0
        %2079 = vmatprep.subr.bf16.mxu0 0
        %2080 = vmatpush1.bf16.msra.mxu0 0
        %2081 = vmatprep.subr.bf16.mxu0 0
        %2082 = vmatpush1.bf16.msra.mxu0 0
        %2083 = vmatprep.subr.bf16.mxu0 0
        %2084 = vmatpush1.bf16.msra.mxu0 0
        %2085 = vmatprep.subr.bf16.mxu0 0
        %2086 = vmatpush1.bf16.msra.mxu0 %v2069
        %2087 = vmatprep.subr.bf16.mxu0 0
        %2088 = vmatpush2.bf16.msra.mxu0 0
        %2089 = vmatprep.subr.bf16.mxu0 0
        %2090 = vmatpush2.bf16.msra.mxu0 0
        %2091 = vmatprep.subr.bf16.mxu0 0
        %2092 = vmatpush2.bf16.msra.mxu0 0
        %2093 = vmatprep.subr.bf16.mxu0 0
        %2094 = vmatpush2.bf16.msra.mxu0 0
        %2095 = vmatprep.subr.bf16.mxu0 0
        %2096 = vmatpush2.bf16.msra.mxu0 0
        %2097 = vmatprep.subr.bf16.mxu0 0
        %2098 = vmatpush2.bf16.msra.mxu0 0
        %2099 = vmatprep.subr.bf16.mxu0 0
        %2100 = vmatpush2.bf16.msra.mxu0 0
        %2101 = vmatprep.subr.bf16.mxu0 0
        %2102 = vmatpush2.bf16.msra.mxu0 0
        %2103 = vmatprep.mubr.bf16.mxu0 0
        %2104 = vmatmul.mubr.bf16.gmra.mxu0 %v2066
        %v2105 = vpop.f32.mrf.mxu0
        %v2106 = vadd.f32 0.0, %v2105
        %v2107 = vpop.f32.mrf.mxu0
        %v2108 = vpop.f32.mrf.mxu0
        %v2109 = vpop.f32.mrf.mxu0
        %2110 = vdwg.mxu0
        %2111 = vrot.lane.b32.xlu0 %v1781, 80
        %v2112 = vpop.permute.xlu0 %2111
        %2113 = vrot.lane.b32.xlu0 %v1782, 80
        %v2114 = vpop.permute.xlu0 %2113
        %v2116 = vsel %vm819, %v2112, 0
        %v2119 = vsel %vm819, %v2114, 0
        %2121 = vmatprep.subr.bf16.mxu0 0
        %2122 = vmatpush1.bf16.xpose.msra.mxu0 0
        %2123 = vmatprep.subr.bf16.mxu0 0
        %2124 = vmatpush1.bf16.xpose.msra.mxu0 0
        %2125 = vmatprep.subr.bf16.mxu0 0
        %2126 = vmatpush1.bf16.xpose.msra.mxu0 0
        %2127 = vmatprep.subr.bf16.mxu0 0
        %2128 = vmatpush1.bf16.xpose.msra.mxu0 0
        %2129 = vmatprep.subr.bf16.mxu0 0
        %2130 = vmatpush1.bf16.xpose.msra.mxu0 0
        %2131 = vmatprep.subr.bf16.mxu0 0
        %2132 = vmatpush1.bf16.xpose.msra.mxu0 0
        %2133 = vmatprep.subr.bf16.mxu0 0
        %2134 = vmatpush1.bf16.xpose.msra.mxu0 0
        %2135 = vmatprep.subr.bf16.mxu0 0
        %2136 = vmatpush1.bf16.xpose.msra.mxu0 %v2119
        %2137 = vmatprep.subr.bf16.mxu0 0
        %2138 = vmatpush2.bf16.xpose.msra.mxu0 0
        %2139 = vmatprep.subr.bf16.mxu0 0
        %2140 = vmatpush2.bf16.xpose.msra.mxu0 0
        %2141 = vmatprep.subr.bf16.mxu0 0
        %2142 = vmatpush2.bf16.xpose.msra.mxu0 0
        %2143 = vmatprep.subr.bf16.mxu0 0
        %2144 = vmatpush2.bf16.xpose.msra.mxu0 0
        %2145 = vmatprep.subr.bf16.mxu0 0
        %2146 = vmatpush2.bf16.xpose.msra.mxu0 0
        %2147 = vmatprep.subr.bf16.mxu0 0
        %2148 = vmatpush2.bf16.xpose.msra.mxu0 0
        %2149 = vmatprep.subr.bf16.mxu0 0
        %2150 = vmatpush2.bf16.xpose.msra.mxu0 0
        %2151 = vmatprep.subr.bf16.mxu0 0
        %2152 = vmatpush2.bf16.xpose.msra.mxu0 0
        %2153 = vmatprep.mubr.bf16.mxu0 0
        %2154 = vmatmul.mubr.bf16.gmra.mxu0 %v2116
        %v2155 = vpop.f32.mrf.mxu0
        %v2156 = vadd.f32 %v614, %v2155
        %v2157 = vpop.f32.mrf.mxu0
        %v2158 = vpop.f32.mrf.mxu0
        %v2159 = vpop.f32.mrf.mxu0
        %2160 = vdwg.mxu0
        %v2161 = vsel %vm866, %v2156, -inf
        %2162 = vmax.xlane.f32.xlu0 %v2161
        %v2163 = vpop.xlane.xlu0 %2162
        %v2164 = vsub.f32 %v2156, %v2163
        %v2165 = vmul.f32 %v2164, 1.442695
        %v2166 = vpow.pop %v2165
        %v2167 = vsel %vm866, %v2166, 0.0
        %2168 = vadd.xlane.f32.xlu0 %v2167
        %v2169 = vpop.xlane.xlu0 %2168
        %v2170 = vrcp.pop %v2169
        %v2171 = vmul.f32 %v2166, %v2170
        %v2172 = vpack.c.bf16 %v2171, %v2171
        %2173 = vrot.lane.b32.xlu0 %v1783, 80
        %v2174 = vpop.permute.xlu0 %2173
        %v2176 = vsel %vm866, %v2172, 0
        %v2179 = vsel %vm882, %v2174, 0
        %2181 = vmatprep.subr.bf16.mxu0 0
        %2182 = vmatpush1.bf16.msra.mxu0 0
        %2183 = vmatprep.subr.bf16.mxu0 0
        %2184 = vmatpush1.bf16.msra.mxu0 0
        %2185 = vmatprep.subr.bf16.mxu0 0
        %2186 = vmatpush1.bf16.msra.mxu0 0
        %2187 = vmatprep.subr.bf16.mxu0 0
        %2188 = vmatpush1.bf16.msra.mxu0 0
        %2189 = vmatprep.subr.bf16.mxu0 0
        %2190 = vmatpush1.bf16.msra.mxu0 0
        %2191 = vmatprep.subr.bf16.mxu0 0
        %2192 = vmatpush1.bf16.msra.mxu0 0
        %2193 = vmatprep.subr.bf16.mxu0 0
        %2194 = vmatpush1.bf16.msra.mxu0 0
        %2195 = vmatprep.subr.bf16.mxu0 0
        %2196 = vmatpush1.bf16.msra.mxu0 %v2179
        %2197 = vmatprep.subr.bf16.mxu0 0
        %2198 = vmatpush2.bf16.msra.mxu0 0
        %2199 = vmatprep.subr.bf16.mxu0 0
        %2200 = vmatpush2.bf16.msra.mxu0 0
        %2201 = vmatprep.subr.bf16.mxu0 0
        %2202 = vmatpush2.bf16.msra.mxu0 0
        %2203 = vmatprep.subr.bf16.mxu0 0
        %2204 = vmatpush2.bf16.msra.mxu0 0
        %2205 = vmatprep.subr.bf16.mxu0 0
        %2206 = vmatpush2.bf16.msra.mxu0 0
        %2207 = vmatprep.subr.bf16.mxu0 0
        %2208 = vmatpush2.bf16.msra.mxu0 0
        %2209 = vmatprep.subr.bf16.mxu0 0
        %2210 = vmatpush2.bf16.msra.mxu0 0
        %2211 = vmatprep.subr.bf16.mxu0 0
        %2212 = vmatpush2.bf16.msra.mxu0 0
        %2213 = vmatprep.mubr.bf16.mxu0 0
        %2214 = vmatmul.mubr.bf16.gmra.mxu0 %v2176
        %v2215 = vpop.f32.mrf.mxu0
        %v2216 = vadd.f32 0.0, %v2215
        %v2217 = vpop.f32.mrf.mxu0
        %v2218 = vpop.f32.mrf.mxu0
        %v2219 = vpop.f32.mrf.mxu0
        %2220 = vdwg.mxu0
        %2222 = vrot.lane.b32.xlu0 %v1996, 16
        %v2223 = vpop.permute.xlu0 %2222
        %2226 = vrot.lane.b32.xlu0 %v2106, 32
        %v2227 = vpop.permute.xlu0 %2226
        %2230 = vrot.lane.b32.xlu0 %v2216, 48
        %v2231 = vpop.permute.xlu0 %2230
        %v2233 = vsel %vm819, %v1883, %v2223
        %v2234 = vsel %vm1272, %v2233, %v2227
        %v2235 = vsel %vm1274, %v2234, %v2231
        %v2236 = vpack.c.bf16 %v2235, %v2235
        %s2237 = scalar_lea.vmem %s3, 32
        %v2238 = vld [vmem:[%s2237] sm:$0xf]
        %v2239 = vld [vmem:[%s2237 + $0x4] sm:$0xf]
        %v2240 = vld [vmem:[%s2237 + $0x8] sm:$0xf]
        %v2241 = vld [vmem:[%s2237 + $0xc] sm:$0xf]
        %v2242 = vld [vmem:[%s2237 + $0x10] sm:$0xf]
        %v2243 = vld [vmem:[%s2237 + $0x14] sm:$0xf]
        %v2244 = vld [vmem:[%s2237 + $0x18] sm:$0xf]
        %v2245 = vld [vmem:[%s2237 + $0x1c] sm:$0xf]
        %v2254 = vunpack.c.l.b16 %v2238
        %v2255 = vunpack.c.l.b16 %v2239
        %v2256 = vunpack.c.l.b16 %v2240
        %v2257 = vunpack.c.l.b16 %v2241
        %v2258 = vunpack.c.l.b16 %v2242
        %v2259 = vunpack.c.l.b16 %v2243
        %v2260 = vunpack.c.l.b16 %v2244
        %v2261 = vunpack.c.l.b16 %v2245
        %v2262 = vpack.c.b16 %v2255, %v2254
        %v2263 = vpack.c.b16 %v2257, %v2256
        %v2264 = vpack.c.b16 %v2259, %v2258
        %v2265 = vpack.c.b16 %v2261, %v2260
        %v2271 = vsel %vm617, %v2236, 0
        %2273 = vmatprep.subr.bf16.mxu0 0
        %2274 = vmatpush1.bf16.msra.mxu0 0
        %2275 = vmatprep.subr.bf16.mxu0 0
        %2276 = vmatpush1.bf16.msra.mxu0 0
        %2277 = vmatprep.subr.bf16.mxu0 0
        %2278 = vmatpush1.bf16.msra.mxu0 0
        %2279 = vmatprep.subr.bf16.mxu0 0
        %2280 = vmatpush1.bf16.msra.mxu0 0
        %2281 = vmatprep.subr.bf16.mxu0 0
        %2282 = vmatpush1.bf16.msra.mxu0 %v2265
        %2283 = vmatprep.subr.bf16.mxu0 0
        %2284 = vmatpush1.bf16.msra.mxu0 %v2264
        %2285 = vmatprep.subr.bf16.mxu0 0
        %2286 = vmatpush1.bf16.msra.mxu0 %v2263
        %2287 = vmatprep.subr.bf16.mxu0 0
        %2288 = vmatpush1.bf16.msra.mxu0 %v2262
        %2289 = vmatprep.subr.bf16.mxu0 0
        %2290 = vmatpush2.bf16.msra.mxu0 0
        %2291 = vmatprep.subr.bf16.mxu0 0
        %2292 = vmatpush2.bf16.msra.mxu0 0
        %2293 = vmatprep.subr.bf16.mxu0 0
        %2294 = vmatpush2.bf16.msra.mxu0 0
        %2295 = vmatprep.subr.bf16.mxu0 0
        %2296 = vmatpush2.bf16.msra.mxu0 0
        %2297 = vmatprep.subr.bf16.mxu0 0
        %2298 = vmatpush2.bf16.msra.mxu0 0
        %2299 = vmatprep.subr.bf16.mxu0 0
        %2300 = vmatpush2.bf16.msra.mxu0 0
        %2301 = vmatprep.subr.bf16.mxu0 0
        %2302 = vmatpush2.bf16.msra.mxu0 0
        %2303 = vmatprep.subr.bf16.mxu0 0
        %2304 = vmatpush2.bf16.msra.mxu0 0
        %2305 = vmatprep.mubr.bf16.mxu0 0
        %2306 = vmatmul.mubr.bf16.gmra.mxu0 %v2271
        %v2307 = vpop.f32.mrf.mxu0
        %v2308 = vadd.f32 0.0, %v2307
        %v2309 = vpop.f32.mrf.mxu0
        %v2310 = vpop.f32.mrf.mxu0
        %v2311 = vpop.f32.mrf.mxu0
        %2312 = vdwg.mxu0
        %v2313 = vadd.f32 %v1583, %v2308
        %s2314 = scalar_lea.vmem [#allocation2], 1
        %v2315 = vld [vmem:[%s2314] sm:$0x1]
        %v2317 = vlaneseq
        %v2318 = vshrl.u32 %v2317, 7
        %v2319 = vsub.s32 0, %v2318
        %v2320 = vrot.slane %v2315, %v2319
        %v2322 = vadd.f32 %v2313, %v2320
        %s2323 = scalar_lea.vmem [#allocation7], 1
        %v2324 = vld [vmem:[%s2323] sm:$0x1]
        %v2325 = vmul.f32 %v2322, %v2322
        %v2326 = vsel %vm617, %v2325, 0.0
        %2327 = vadd.xlane.f32.xlu0 %v2326
        %v2328 = vpop.xlane.xlu0 %2327
        %v2329 = vmul.f32 %v2328, %v621
        %v2330 = vadd.f32 %v2329, 1e-07
        %v2331 = vrsqrt.pop %v2330
        %v2332 = vmul.f32 %v2322, %v2331
        %v2334 = vlaneseq
        %v2335 = vshrl.u32 %v2334, 7
        %v2336 = vsub.s32 0, %v2335
        %v2337 = vrot.slane %v2324, %v2336
        %v2339 = vmul.f32 %v2332, %v2337
        %v2340 = vpack.c.bf16 %v2339, %v2339
        %s2341 = scalar_lea.vmem %s7, 64
        %v2342 = vld [vmem:[%s2341] sm:$0xff]
        %v2343 = vld [vmem:[%s2341 + $0x8] sm:$0xff]
        %v2344 = vld [vmem:[%s2341 + $0x10] sm:$0xff]
        %v2345 = vld [vmem:[%s2341 + $0x18] sm:$0xff]
        %v2346 = vld [vmem:[%s2341 + $0x20] sm:$0xff]
        %v2347 = vld [vmem:[%s2341 + $0x28] sm:$0xff]
        %v2348 = vld [vmem:[%s2341 + $0x30] sm:$0xff]
        %v2349 = vld [vmem:[%s2341 + $0x38] sm:$0xff]
        %v2358 = vunpack.c.l.b16 %v2342
        %v2359 = vunpack.c.h.b16 %v2342
        %v2360 = vunpack.c.l.b16 %v2343
        %v2361 = vunpack.c.h.b16 %v2343
        %v2362 = vunpack.c.l.b16 %v2344
        %v2363 = vunpack.c.h.b16 %v2344
        %v2364 = vunpack.c.l.b16 %v2345
        %v2365 = vunpack.c.h.b16 %v2345
        %v2366 = vunpack.c.l.b16 %v2346
        %v2367 = vunpack.c.h.b16 %v2346
        %v2368 = vunpack.c.l.b16 %v2347
        %v2369 = vunpack.c.h.b16 %v2347
        %v2370 = vunpack.c.l.b16 %v2348
        %v2371 = vunpack.c.h.b16 %v2348
        %v2372 = vunpack.c.l.b16 %v2349
        %v2373 = vunpack.c.h.b16 %v2349
        %v2374 = vpack.c.b16 %v2360, %v2358
        %v2375 = vpack.c.b16 %v2361, %v2359
        %v2376 = vpack.c.b16 %v2364, %v2362
        %v2377 = vpack.c.b16 %v2365, %v2363
        %v2378 = vpack.c.b16 %v2368, %v2366
        %v2379 = vpack.c.b16 %v2369, %v2367
        %v2380 = vpack.c.b16 %v2372, %v2370
        %v2381 = vpack.c.b16 %v2373, %v2371
        %v2391 = vsel %vm617, %v2340, 0
        %2393 = vmatprep.subr.bf16.mxu0 0
        %2394 = vmatpush1.bf16.msra.mxu0 0
        %2395 = vmatprep.subr.bf16.mxu0 0
        %2396 = vmatpush1.bf16.msra.mxu0 0
        %2397 = vmatprep.subr.bf16.mxu0 0
        %2398 = vmatpush1.bf16.msra.mxu0 0
        %2399 = vmatprep.subr.bf16.mxu0 0
        %2400 = vmatpush1.bf16.msra.mxu0 0
        %2401 = vmatprep.subr.bf16.mxu0 %v2381
        %2402 = vmatpush1.bf16.msra.mxu0 %v2380
        %2403 = vmatprep.subr.bf16.mxu0 %v2379
        %2404 = vmatpush1.bf16.msra.mxu0 %v2378
        %2405 = vmatprep.subr.bf16.mxu0 %v2377
        %2406 = vmatpush1.bf16.msra.mxu0 %v2376
        %2407 = vmatprep.subr.bf16.mxu0 %v2375
        %2408 = vmatpush1.bf16.msra.mxu0 %v2374
        %2409 = vmatprep.subr.bf16.mxu0 0
        %2410 = vmatpush2.bf16.msra.mxu0 0
        %2411 = vmatprep.subr.bf16.mxu0 0
        %2412 = vmatpush2.bf16.msra.mxu0 0
        %2413 = vmatprep.subr.bf16.mxu0 0
        %2414 = vmatpush2.bf16.msra.mxu0 0
        %2415 = vmatprep.subr.bf16.mxu0 0
        %2416 = vmatpush2.bf16.msra.mxu0 0
        %2417 = vmatprep.subr.bf16.mxu0 0
        %2418 = vmatpush2.bf16.msra.mxu0 0
        %2419 = vmatprep.subr.bf16.mxu0 0
        %2420 = vmatpush2.bf16.msra.mxu0 0
        %2421 = vmatprep.subr.bf16.mxu0 0
        %2422 = vmatpush2.bf16.msra.mxu0 0
        %2423 = vmatprep.subr.bf16.mxu0 0
        %2424 = vmatpush2.bf16.msra.mxu0 0
        %2425 = vmatprep.mubr.bf16.mxu0 0
        %2426 = vmatmul.mubr.bf16.gmra.mxu0 %v2391
        %v2427 = vpop.f32.mrf.mxu0
        %v2428 = vadd.f32 0.0, %v2427
        %v2429 = vpop.f32.mrf.mxu0
        %v2430 = vadd.f32 0.0, %v2429
        %v2431 = vpop.f32.mrf.mxu0
        %v2432 = vpop.f32.mrf.mxu0
        %2433 = vdwg.mxu0
        %v2434 = vxor.u32 %v2428, 2147483648
        %v2435 = vmul.f32 %v2434, 1.442695
        %v2436 = vpow.pop %v2435
        %v2437 = vadd.f32 %v2436, 1.0
        %v2438 = vrcp.pop %v2437
        %v2439 = vmul.f32 1.0, %v2438
        %v2440 = vmul.f32 %v2428, %v2439
        %v2441 = vmul.f32 %v2440, %v2430
        %v2442 = vpack.c.bf16 %v2441, %v2441
        %s2443 = scalar_lea.vmem %s8, 64
        %v2444 = vld [vmem:[%s2443] sm:$0xf]
        %v2445 = vld [vmem:[%s2443 + $0x4] sm:$0xf]
        %v2446 = vld [vmem:[%s2443 + $0x8] sm:$0xf]
        %v2447 = vld [vmem:[%s2443 + $0xc] sm:$0xf]
        %v2448 = vld [vmem:[%s2443 + $0x10] sm:$0xf]
        %v2449 = vld [vmem:[%s2443 + $0x14] sm:$0xf]
        %v2450 = vld [vmem:[%s2443 + $0x18] sm:$0xf]
        %v2451 = vld [vmem:[%s2443 + $0x1c] sm:$0xf]
        %v2452 = vld [vmem:[%s2443 + $0x20] sm:$0xf]
        %v2453 = vld [vmem:[%s2443 + $0x24] sm:$0xf]
        %v2454 = vld [vmem:[%s2443 + $0x28] sm:$0xf]
        %v2455 = vld [vmem:[%s2443 + $0x2c] sm:$0xf]
        %v2456 = vld [vmem:[%s2443 + $0x30] sm:$0xf]
        %v2457 = vld [vmem:[%s2443 + $0x34] sm:$0xf]
        %v2458 = vld [vmem:[%s2443 + $0x38] sm:$0xf]
        %v2459 = vld [vmem:[%s2443 + $0x3c] sm:$0xf]
        %v2476 = vunpack.c.l.b16 %v2444
        %v2477 = vunpack.c.l.b16 %v2445
        %v2478 = vunpack.c.l.b16 %v2446
        %v2479 = vunpack.c.l.b16 %v2447
        %v2480 = vunpack.c.l.b16 %v2448
        %v2481 = vunpack.c.l.b16 %v2449
        %v2482 = vunpack.c.l.b16 %v2450
        %v2483 = vunpack.c.l.b16 %v2451
        %v2484 = vunpack.c.l.b16 %v2452
        %v2485 = vunpack.c.l.b16 %v2453
        %v2486 = vunpack.c.l.b16 %v2454
        %v2487 = vunpack.c.l.b16 %v2455
        %v2488 = vunpack.c.l.b16 %v2456
        %v2489 = vunpack.c.l.b16 %v2457
        %v2490 = vunpack.c.l.b16 %v2458
        %v2491 = vunpack.c.l.b16 %v2459
        %v2492 = vpack.c.b16 %v2477, %v2476
        %v2493 = vpack.c.b16 %v2479, %v2478
        %v2494 = vpack.c.b16 %v2481, %v2480
        %v2495 = vpack.c.b16 %v2483, %v2482
        %v2496 = vpack.c.b16 %v2485, %v2484
        %v2497 = vpack.c.b16 %v2487, %v2486
        %v2498 = vpack.c.b16 %v2489, %v2488
        %v2499 = vpack.c.b16 %v2491, %v2490
        %2508 = vmatprep.subr.bf16.mxu0 0
        %2509 = vmatpush1.bf16.msra.mxu0 %v2499
        %2510 = vmatprep.subr.bf16.mxu0 0
        %2511 = vmatpush1.bf16.msra.mxu0 %v2498
        %2512 = vmatprep.subr.bf16.mxu0 0
        %2513 = vmatpush1.bf16.msra.mxu0 %v2497
        %2514 = vmatprep.subr.bf16.mxu0 0
        %2515 = vmatpush1.bf16.msra.mxu0 %v2496
        %2516 = vmatprep.subr.bf16.mxu0 0
        %2517 = vmatpush1.bf16.msra.mxu0 %v2495
        %2518 = vmatprep.subr.bf16.mxu0 0
        %2519 = vmatpush1.bf16.msra.mxu0 %v2494
        %2520 = vmatprep.subr.bf16.mxu0 0
        %2521 = vmatpush1.bf16.msra.mxu0 %v2493
        %2522 = vmatprep.subr.bf16.mxu0 0
        %2523 = vmatpush1.bf16.msra.mxu0 %v2492
        %2524 = vmatprep.subr.bf16.mxu0 0
        %2525 = vmatpush2.bf16.msra.mxu0 0
        %2526 = vmatprep.subr.bf16.mxu0 0
        %2527 = vmatpush2.bf16.msra.mxu0 0
        %2528 = vmatprep.subr.bf16.mxu0 0
        %2529 = vmatpush2.bf16.msra.mxu0 0
        %2530 = vmatprep.subr.bf16.mxu0 0
        %2531 = vmatpush2.bf16.msra.mxu0 0
        %2532 = vmatprep.subr.bf16.mxu0 0
        %2533 = vmatpush2.bf16.msra.mxu0 0
        %2534 = vmatprep.subr.bf16.mxu0 0
        %2535 = vmatpush2.bf16.msra.mxu0 0
        %2536 = vmatprep.subr.bf16.mxu0 0
        %2537 = vmatpush2.bf16.msra.mxu0 0
        %2538 = vmatprep.subr.bf16.mxu0 0
        %2539 = vmatpush2.bf16.msra.mxu0 0
        %2540 = vmatprep.mubr.bf16.mxu0 0
        %2541 = vmatmul.mubr.bf16.gmra.mxu0 %v2442
        %v2542 = vpop.f32.mrf.mxu0
        %v2543 = vadd.f32 0.0, %v2542
        %v2544 = vpop.f32.mrf.mxu0
        %v2545 = vpop.f32.mrf.mxu0
        %v2546 = vpop.f32.mrf.mxu0
        %2547 = vdwg.mxu0
        %v2548 = vadd.f32 %v2322, %v2543
        %v2549 = vld [vmem:[#allocation8] sm:$0x1]
        %v2550 = vmul.f32 %v2548, %v2548
        %v2551 = vsel %vm617, %v2550, 0.0
        %2552 = vadd.xlane.f32.xlu0 %v2551
        %v2553 = vpop.xlane.xlu0 %2552
        %v2554 = vmul.f32 %v2553, %v621
        %v2555 = vadd.f32 %v2554, 1e-07
        %v2556 = vrsqrt.pop %v2555
        %v2557 = vmul.f32 %v2548, %v2556
        %v2559 = vlaneseq
        %v2560 = vshrl.u32 %v2559, 7
        %v2561 = vsub.s32 0, %v2560
        %v2562 = vrot.slane %v2549, %v2561
        %v2564 = vmul.f32 %v2557, %v2562
        %v2565 = vpack.c.bf16 %v2564, %v2564
        %v2566 = vld [vmem:[%s10] sm:$0xff]
        %v2567 = vld [vmem:[%s10 + $0x8] sm:$0xff]
        %v2568 = vld [vmem:[%s10 + $0x10] sm:$0xff]
        %v2569 = vld [vmem:[%s10 + $0x18] sm:$0xff]
        %v2570 = vld [vmem:[%s10 + $0x20] sm:$0xff]
        %v2571 = vld [vmem:[%s10 + $0x28] sm:$0xff]
        %v2572 = vld [vmem:[%s10 + $0x30] sm:$0xff]
        %v2573 = vld [vmem:[%s10 + $0x38] sm:$0xff]
        %v2582 = vunpack.c.l.b16 %v2566
        %v2583 = vunpack.c.h.b16 %v2566
        %v2584 = vunpack.c.l.b16 %v2567
        %v2585 = vunpack.c.h.b16 %v2567
        %v2586 = vunpack.c.l.b16 %v2568
        %v2587 = vunpack.c.h.b16 %v2568
        %v2588 = vunpack.c.l.b16 %v2569
        %v2589 = vunpack.c.h.b16 %v2569
        %v2590 = vunpack.c.l.b16 %v2570
        %v2591 = vunpack.c.h.b16 %v2570
        %v2592 = vunpack.c.l.b16 %v2571
        %v2593 = vunpack.c.h.b16 %v2571
        %v2594 = vunpack.c.l.b16 %v2572
        %v2595 = vunpack.c.h.b16 %v2572
        %v2596 = vunpack.c.l.b16 %v2573
        %v2597 = vunpack.c.h.b16 %v2573
        %v2598 = vpack.c.b16 %v2584, %v2582
        %v2599 = vpack.c.b16 %v2585, %v2583
        %v2600 = vpack.c.b16 %v2588, %v2586
        %v2601 = vpack.c.b16 %v2589, %v2587
        %v2602 = vpack.c.b16 %v2592, %v2590
        %v2603 = vpack.c.b16 %v2593, %v2591
        %v2604 = vpack.c.b16 %v2596, %v2594
        %v2605 = vpack.c.b16 %v2597, %v2595
        %v2615 = vsel %vm617, %v2565, 0
        %2617 = vmatprep.subr.bf16.mxu0 0
        %2618 = vmatpush1.bf16.msra.mxu0 0
        %2619 = vmatprep.subr.bf16.mxu0 0
        %2620 = vmatpush1.bf16.msra.mxu0 0
        %2621 = vmatprep.subr.bf16.mxu0 0
        %2622 = vmatpush1.bf16.msra.mxu0 0
        %2623 = vmatprep.subr.bf16.mxu0 0
        %2624 = vmatpush1.bf16.msra.mxu0 0
        %2625 = vmatprep.subr.bf16.mxu0 %v2605
        %2626 = vmatpush1.bf16.msra.mxu0 %v2604
        %2627 = vmatprep.subr.bf16.mxu0 %v2603
        %2628 = vmatpush1.bf16.msra.mxu0 %v2602
        %2629 = vmatprep.subr.bf16.mxu0 %v2601
        %2630 = vmatpush1.bf16.msra.mxu0 %v2600
        %2631 = vmatprep.subr.bf16.mxu0 %v2599
        %2632 = vmatpush1.bf16.msra.mxu0 %v2598
        %2633 = vmatprep.subr.bf16.mxu0 0
        %2634 = vmatpush2.bf16.msra.mxu0 0
        %2635 = vmatprep.subr.bf16.mxu0 0
        %2636 = vmatpush2.bf16.msra.mxu0 0
        %2637 = vmatprep.subr.bf16.mxu0 0
        %2638 = vmatpush2.bf16.msra.mxu0 0
        %2639 = vmatprep.subr.bf16.mxu0 0
        %2640 = vmatpush2.bf16.msra.mxu0 0
        %2641 = vmatprep.subr.bf16.mxu0 0
        %2642 = vmatpush2.bf16.msra.mxu0 0
        %2643 = vmatprep.subr.bf16.mxu0 0
        %2644 = vmatpush2.bf16.msra.mxu0 0
        %2645 = vmatprep.subr.bf16.mxu0 0
        %2646 = vmatpush2.bf16.msra.mxu0 0
        %2647 = vmatprep.subr.bf16.mxu0 0
        %2648 = vmatpush2.bf16.msra.mxu0 0
        %2649 = vmatprep.mubr.bf16.mxu0 0
        %2650 = vmatmul.mubr.bf16.gmra.mxu0 %v2615
        %v2651 = vpop.f32.mrf.mxu0
        %v2652 = vadd.f32 0.0, %v2651
        %v2653 = vpop.f32.mrf.mxu0
        %v2654 = vadd.f32 0.0, %v2653
        %v2655 = vpop.f32.mrf.mxu0
        %v2656 = vpop.f32.mrf.mxu0
        %2657 = vdwg.mxu0
        %2658 = vst [vmem:[%s488] sm:$0xff] %v2652
        %2659 = vst [vmem:[%s488 + $0x8] sm:$0xff] %v2654
        %s2660 = sand.u32 %s316, 1
        %s2661 = scalar_lea.sflag [#allocation4], %s2660
        %s2662 = sand.u32 %s316, 1
        %s2663 = smul.addr %s2662, 16
        %s2664 = scalar_lea.vmem [#allocation10], %s2663
        // Predicated region
        $region89: #{tpu_custom_call.1} parent=71 // pred_check
          %p2665 = pneg %p326
        $region90: #{tpu_custom_call.1} parent=71 // pred_check_branch
          %2667 = sbr.rel (%p2665) target = $region92
        $region91: #{tpu_custom_call.1} parent=71 // pred_region
          %s2669 = ssub.s32 256, 256
          %2670 = vsyncadd %s2661, %s2669
          %s2671 = smul.addr %s30, 2
          %s2672 = smul.addr %s2671, 128
          %s2673 = scalar_lea.hbm %s13, %s2672
          %s2675 = sshll.u32 %s2664, 4
          %s2676 = int_to_ptr.vmem [resolvable:$true] %s2675
          %2678 = dma.vmem_to_hbm [thread:$0]  %s2676, 256, %s2673, %s2661
        $region92: #{tpu_custom_call.1} parent=71 // pred_fallthru
          _
      $region72: #{tpu_custom_call.1} parent=5 // pred_fallthru
        _
      %p2679 = scmp.le.s32.totalorder 2, %s25
      // Predicated region
      $region93: #{tpu_custom_call.1} parent=5 // pred_check
        %p2680 = pneg %p2679
      $region94: #{tpu_custom_call.1} parent=5 // pred_check_branch
        %2682 = sbr.rel (%p2680) target = $region96
      $region95: #{tpu_custom_call.1} parent=5 // pred_region
        %s2683 = ssub.s32 %s25, 2
        // Predicated region
        $region97: #{tpu_custom_call.1} parent=95 // pred_check
          %p2684 = pneg %p332
        $region98: #{tpu_custom_call.1} parent=95 // pred_check_branch
          %2686 = sbr.rel (%p2684) target = $region100
        $region99: #{tpu_custom_call.1} parent=95 // pred_region
          %s2687 = sand.u32 %s317, 1
          %s2688 = scalar_lea.sflag [#allocation4], %s2687
          %s2689 = sand.u32 %s317, 1
          %s2690 = smul.addr %s2689, 16
          %s2691 = scalar_lea.vmem [#allocation10], %s2690
          %2692 = dma.done %s2688, 256
        $region100: #{tpu_custom_call.1} parent=95 // pred_fallthru
          _
      $region96: #{tpu_custom_call.1} parent=5 // pred_fallthru
        _
    $region6: #{tpu_custom_call.1} parent=1 // loop_footer
      %s29 = sadd.s32 1, %s25
    $region7: #{tpu_custom_call.1} parent=1 // loop_footer_branch
      %24 = sbr.rel target = $region3
    $region8: #{tpu_custom_call.1} parent=1 // loop_exit
      _
    %2693 = vsyncpa [#allocation3], 1
    %s2694 = scalar_lea.sflag [#allocation3], 1
    %2695 = vsyncpa %s2694, 1
    %2696 = vsyncpa [#allocation6], 1
    %2697 = vsyncpa [#allocation9], 1
    %2698 = vsyncpa [#allocation4], 1
    %s2699 = scalar_lea.sflag [#allocation4], 1
    %2700 = vsyncpa %s2699, 1

</llo_original>
